<compile_context>
chip_gen: v7x
topology: tpu7x:2x2x1
jax: 0.10.0
libtpu: 0.0.40
codegen_flags: <defaults>
</compile_context>

<pallas_src>
import jax
import jax.numpy as jnp
from jax.experimental import pallas as pl
from jax.experimental.pallas import tpu as pltpu

HORIZON = 1
NUM_BLOCKS = 3            # number of N-BEATS blocks in the stack
NUM_FC_LAYERS = 4         # FC layers per block (1 input layer + 3 hidden)
LOOKBACK = 8              # length of the input window (seq)
HIDDEN = 32               # MLP hidden width

THETA_PAD = HIDDEN        # padded theta width (>= LOOKBACK + HORIZON), keeps the
                          # weight slab a uniform 32 lanes wide
W_ROWS_PER_BLOCK = LOOKBACK + (NUM_FC_LAYERS - 1) * HIDDEN + HIDDEN   # 136 (mult of 8)
BIAS_ROWS_PER_BLOCK = 8   # 5 used rows (in, 3 hid, theta) padded to a sublane tile


def nbeats_kernel(x_ref, w_ref, b_ref, out_ref):
    """Full N-Beats stack on one (TB, L) batch tile. Weights stay VMEM-resident."""
    residuals = x_ref[...]                                   # (TB, L), ORIGINAL time order
    forecast = jnp.zeros((residuals.shape[0], HORIZON), jnp.float32)

    for blk in range(NUM_BLOCKS):
        w_off = blk * W_ROWS_PER_BLOCK
        b_off = blk * BIAS_ROWS_PER_BLOCK

        # input FC layer: (TB, L) @ (L, H) + (1, H) -> ReLU
        h = jnp.maximum(
            jnp.dot(residuals, w_ref[w_off:w_off + LOOKBACK, :],
                    preferred_element_type=jnp.float32)
            + b_ref[b_off:b_off + 1, :],
            0.0)
        w_off += LOOKBACK
        b_off += 1

        # remaining hidden FC layers: (TB, H) @ (H, H)
        for _ in range(NUM_FC_LAYERS - 1):
            h = jnp.maximum(
                jnp.dot(h, w_ref[w_off:w_off + HIDDEN, :],
                        preferred_element_type=jnp.float32)
                + b_ref[b_off:b_off + 1, :],
                0.0)
            w_off += HIDDEN
            b_off += 1

        # fused theta head: cols [0:L) = backcast (time-flip already folded in),
        # col [L:L+HORIZON) = forecast, remaining cols are zero padding.
        theta = (jnp.dot(h, w_ref[w_off:w_off + HIDDEN, :],
                         preferred_element_type=jnp.float32)
                 + b_ref[b_off:b_off + 1, :])                # (TB, THETA_PAD)

        residuals = residuals - theta[:, :LOOKBACK]
        forecast = forecast + theta[:, LOOKBACK:LOOKBACK + HORIZON]

    out_ref[...] = forecast


def init_params(key):
    """Torch-style synthetic weights matching the N-BEATS block shapes."""
    keys = jax.random.split(key, 8)
    s = 0.1
    w_in = s * jax.random.normal(keys[0], (NUM_BLOCKS, LOOKBACK, HIDDEN), jnp.float32)
    b_in = s * jax.random.normal(keys[1], (NUM_BLOCKS, 1, HIDDEN), jnp.float32)
    w_hid = s * jax.random.normal(keys[2], (NUM_BLOCKS, NUM_FC_LAYERS - 1, HIDDEN, HIDDEN),
                                  jnp.float32)
    b_hid = s * jax.random.normal(keys[3], (NUM_BLOCKS, NUM_FC_LAYERS - 1, 1, HIDDEN),
                                  jnp.float32)
    w_back = s * jax.random.normal(keys[4], (NUM_BLOCKS, HIDDEN, LOOKBACK), jnp.float32)
    b_back = s * jax.random.normal(keys[5], (NUM_BLOCKS, 1, LOOKBACK), jnp.float32)
    w_fore = s * jax.random.normal(keys[6], (NUM_BLOCKS, HIDDEN, HORIZON), jnp.float32)
    b_fore = s * jax.random.normal(keys[7], (NUM_BLOCKS, 1, HORIZON), jnp.float32)
    return (w_in, b_in, w_hid, b_hid, w_back, b_back, w_fore, b_fore)


def pack_params(params):
    """Pack the 8 torch-style arrays into one weight slab + one bias slab.

    The time flip is folded in: rows of w_in are reversed (input side) and the
    output columns of w_back / b_back are reversed, so the kernel can operate on
    the UNflipped series and still produce identical forecasts.
    The back/fore heads are fused into a single theta matrix, zero-padded to
    THETA_PAD lanes.
    """
    w_in, b_in, w_hid, b_hid, w_back, b_back, w_fore, b_fore = params
    pad_cols = THETA_PAD - LOOKBACK - HORIZON

    w_rows, b_rows = [], []
    for blk in range(NUM_BLOCKS):
        # --- weights ---
        w_rows.append(w_in[blk, ::-1, :])                     # (L, H), flip folded
        for layer in range(NUM_FC_LAYERS - 1):
            w_rows.append(w_hid[blk, layer])                  # (H, H)
        w_theta = jnp.concatenate(
            [w_back[blk][:, ::-1],                            # (H, L), flip folded
             w_fore[blk],                                     # (H, HORIZON)
             jnp.zeros((HIDDEN, pad_cols), jnp.float32)], axis=1)
        w_rows.append(w_theta)                                # (H, THETA_PAD)

        # --- biases (one row each, padded to BIAS_ROWS_PER_BLOCK rows) ---
        b_blk = [jnp.reshape(b_in[blk], (1, HIDDEN))]
        for layer in range(NUM_FC_LAYERS - 1):
            b_blk.append(jnp.reshape(b_hid[blk, layer], (1, HIDDEN)))
        b_theta = jnp.concatenate(
            [b_back[blk][:, ::-1], b_fore[blk],
             jnp.zeros((1, pad_cols), jnp.float32)], axis=1)
        b_blk.append(b_theta)
        b_blk.append(jnp.zeros((BIAS_ROWS_PER_BLOCK - len(b_blk), HIDDEN), jnp.float32))
        b_rows.append(jnp.concatenate(b_blk, axis=0))

    w_slab = jnp.concatenate(w_rows, axis=0)   # (NUM_BLOCKS * 136, 32)
    b_slab = jnp.concatenate(b_rows, axis=0)   # (NUM_BLOCKS * 8,   32)
    return w_slab, b_slab


@jax.jit
def nbeats_forward(x, w_slab, b_slab, tb=256):
    B = x.shape[0]
    x2 = jnp.reshape(x, (B, LOOKBACK))     # squeeze(-1): free bitcast, no flip needed
    tb = min(tb, B)
    assert B % tb == 0 and tb % 8 == 0, "batch must be a multiple of the tile size"
    grid = (B // tb,)

    flops = 2 * B * NUM_BLOCKS * (LOOKBACK * HIDDEN
                                  + (NUM_FC_LAYERS - 1) * HIDDEN * HIDDEN
                                  + HIDDEN * (LOOKBACK + HORIZON))
    bytes_accessed = 4 * (x2.size + w_slab.size + b_slab.size + B * HORIZON)

    return pl.pallas_call(
        nbeats_kernel,
        out_shape=jax.ShapeDtypeStruct((B, HORIZON), jnp.float32),
        grid_spec=pltpu.PrefetchScalarGridSpec(
            num_scalar_prefetch=0,
            grid=grid,
            in_specs=[
                pl.BlockSpec((tb, LOOKBACK), lambda i: (i, 0)),
                # weight / bias slabs: same block every step -> VMEM-resident
                pl.BlockSpec((NUM_BLOCKS * W_ROWS_PER_BLOCK, HIDDEN), lambda i: (0, 0)),
                pl.BlockSpec((NUM_BLOCKS * BIAS_ROWS_PER_BLOCK, HIDDEN), lambda i: (0, 0)),
            ],
            out_specs=pl.BlockSpec((tb, HORIZON), lambda i: (i, 0)),
        ),
        compiler_params=pltpu.CompilerParams(
            dimension_semantics=("parallel",)),
        cost_estimate=pl.CostEstimate(
            flops=flops, transcendentals=0, bytes_accessed=bytes_accessed),
    )(x2, w_slab, b_slab)


def nbeats_reference(x, params):
    """Pure-JAX reference mirroring the PyTorch forward (unpacked weights, real flip)."""
    w_in, b_in, w_hid, b_hid, w_back, b_back, w_fore, b_fore = params
    x2 = x[..., 0]
    residuals = x2[:, ::-1]
    mask = jnp.ones_like(residuals)
    forecast = jnp.zeros((x2.shape[0], HORIZON), jnp.float32)
    for blk in range(NUM_BLOCKS):
        h = jnp.maximum(residuals @ w_in[blk] + b_in[blk], 0.0)
        for layer in range(NUM_FC_LAYERS - 1):
            h = jnp.maximum(h @ w_hid[blk, layer] + b_hid[blk, layer], 0.0)
        back = h @ w_back[blk] + b_back[blk]
        fore = h @ w_fore[blk] + b_fore[blk]
        residuals = (residuals - back) * mask
        forecast = forecast + fore
    return forecast


if __name__ == "__main__":
    BATCH = 512

    key = jax.random.PRNGKey(0)
    k_x, k_p = jax.random.split(key)
    x = jax.random.normal(k_x, (BATCH, LOOKBACK, 1), jnp.float32)
    params = init_params(k_p)
    w_slab, b_slab = pack_params(params)

    out = nbeats_forward(x, w_slab, b_slab)
    out = jax.block_until_ready(out)

    ref = nbeats_reference(x, params)
    assert out.shape == (BATCH, HORIZON)
    assert jnp.allclose(out, ref, atol=1e-4, rtol=1e-4)
    print("KERNEL_OK")
</pallas_src>

<mosaic_0001>
module attributes {stable_mosaic.version = 11 : i64} {
  func.func @nbeats_kernel(%arg0: i32, %arg1: memref<256x8xf32, #tpu.memory_space<vmem>>, %arg2: memref<408x32xf32, #tpu.memory_space<vmem>>, %arg3: memref<24x32xf32, #tpu.memory_space<vmem>>, %arg4: memref<256x1xf32, #tpu.memory_space<vmem>>) attributes {dimension_semantics = [#tpu.dimension_semantics<parallel>], iteration_bounds = array<i64: 2>, scalar_prefetch = 0 : i64, scratch_operands = 0 : i64, tpu.core_type = #tpu.core_type<tc>, window_params = [{transform_indices = @transform_0, window_bounds = array<i64: 256, 8>}, {pipeline_mode = #tpu.pipeline_mode<synchronous>, transform_indices = @transform_1, window_bounds = array<i64: 408, 32>}, {pipeline_mode = #tpu.pipeline_mode<synchronous>, transform_indices = @transform_2, window_bounds = array<i64: 24, 32>}, {transform_indices = @transform_3, window_bounds = array<i64: 256, 1>}]} {
    %c0 = arith.constant 0 : index
    %c0_0 = arith.constant 0 : index
    %0 = vector.load %arg1[%c0, %c0_0] : memref<256x8xf32, #tpu.memory_space<vmem>>, vector<256x8xf32>
    %cst = arith.constant 0.000000e+00 : f32
    %1 = vector.broadcast %cst : f32 to vector<256x1xf32>
    %c0_1 = arith.constant 0 : index
    %c0_2 = arith.constant 0 : index
    %2 = vector.load %arg2[%c0_1, %c0_2] : memref<408x32xf32, #tpu.memory_space<vmem>>, vector<8x32xf32>
    %cst_3 = arith.constant dense<0.000000e+00> : vector<256x32xf32>
    %3 = tpu.matmul %0, %2, %cst_3 {dimension_numbers = #tpu.dot_dimension_numbers<[1], [0], [0], [1], [0, 0, 1, 1], [], []>} : vector<256x8xf32>, vector<8x32xf32>, vector<256x32xf32> -> vector<256x32xf32>
    %c0_4 = arith.constant 0 : index
    %c0_5 = arith.constant 0 : index
    %4 = vector.load %arg3[%c0_4, %c0_5] : memref<24x32xf32, #tpu.memory_space<vmem>>, vector<1x32xf32>
    %5 = vector.broadcast %4 : vector<1x32xf32> to vector<256x32xf32>
    %6 = arith.addf %3, %5 : vector<256x32xf32>
    %cst_6 = arith.constant 0.000000e+00 : f32
    %7 = vector.broadcast %cst_6 : f32 to vector<256x32xf32>
    %8 = arith.maximumf %6, %7 : vector<256x32xf32>
    %c8 = arith.constant 8 : index
    %c0_7 = arith.constant 0 : index
    %9 = vector.load %arg2[%c8, %c0_7] : memref<408x32xf32, #tpu.memory_space<vmem>>, vector<32x32xf32>
    %cst_8 = arith.constant dense<0.000000e+00> : vector<256x32xf32>
    %10 = tpu.matmul %8, %9, %cst_8 {dimension_numbers = #tpu.dot_dimension_numbers<[1], [0], [0], [1], [0, 0, 1, 1], [], []>} : vector<256x32xf32>, vector<32x32xf32>, vector<256x32xf32> -> vector<256x32xf32>
    %c1 = arith.constant 1 : index
    %c0_9 = arith.constant 0 : index
    %11 = vector.load %arg3[%c1, %c0_9] : memref<24x32xf32, #tpu.memory_space<vmem>>, vector<1x32xf32>
    %12 = vector.broadcast %11 : vector<1x32xf32> to vector<256x32xf32>
    %13 = arith.addf %10, %12 : vector<256x32xf32>
    %cst_10 = arith.constant 0.000000e+00 : f32
    %14 = vector.broadcast %cst_10 : f32 to vector<256x32xf32>
    %15 = arith.maximumf %13, %14 : vector<256x32xf32>
    %c40 = arith.constant 40 : index
    %c0_11 = arith.constant 0 : index
    %16 = vector.load %arg2[%c40, %c0_11] : memref<408x32xf32, #tpu.memory_space<vmem>>, vector<32x32xf32>
    %cst_12 = arith.constant dense<0.000000e+00> : vector<256x32xf32>
    %17 = tpu.matmul %15, %16, %cst_12 {dimension_numbers = #tpu.dot_dimension_numbers<[1], [0], [0], [1], [0, 0, 1, 1], [], []>} : vector<256x32xf32>, vector<32x32xf32>, vector<256x32xf32> -> vector<256x32xf32>
    %c2 = arith.constant 2 : index
    %c0_13 = arith.constant 0 : index
    %18 = vector.load %arg3[%c2, %c0_13] : memref<24x32xf32, #tpu.memory_space<vmem>>, vector<1x32xf32>
    %19 = vector.broadcast %18 : vector<1x32xf32> to vector<256x32xf32>
    %20 = arith.addf %17, %19 : vector<256x32xf32>
    %cst_14 = arith.constant 0.000000e+00 : f32
    %21 = vector.broadcast %cst_14 : f32 to vector<256x32xf32>
    %22 = arith.maximumf %20, %21 : vector<256x32xf32>
    %c72 = arith.constant 72 : index
    %c0_15 = arith.constant 0 : index
    %23 = vector.load %arg2[%c72, %c0_15] : memref<408x32xf32, #tpu.memory_space<vmem>>, vector<32x32xf32>
    %cst_16 = arith.constant dense<0.000000e+00> : vector<256x32xf32>
    %24 = tpu.matmul %22, %23, %cst_16 {dimension_numbers = #tpu.dot_dimension_numbers<[1], [0], [0], [1], [0, 0, 1, 1], [], []>} : vector<256x32xf32>, vector<32x32xf32>, vector<256x32xf32> -> vector<256x32xf32>
    %c3 = arith.constant 3 : index
    %c0_17 = arith.constant 0 : index
    %25 = vector.load %arg3[%c3, %c0_17] : memref<24x32xf32, #tpu.memory_space<vmem>>, vector<1x32xf32>
    %26 = vector.broadcast %25 : vector<1x32xf32> to vector<256x32xf32>
    %27 = arith.addf %24, %26 : vector<256x32xf32>
    %cst_18 = arith.constant 0.000000e+00 : f32
    %28 = vector.broadcast %cst_18 : f32 to vector<256x32xf32>
    %29 = arith.maximumf %27, %28 : vector<256x32xf32>
    %c104 = arith.constant 104 : index
    %c0_19 = arith.constant 0 : index
    %30 = vector.load %arg2[%c104, %c0_19] : memref<408x32xf32, #tpu.memory_space<vmem>>, vector<32x32xf32>
    %cst_20 = arith.constant dense<0.000000e+00> : vector<256x32xf32>
    %31 = tpu.matmul %29, %30, %cst_20 {dimension_numbers = #tpu.dot_dimension_numbers<[1], [0], [0], [1], [0, 0, 1, 1], [], []>} : vector<256x32xf32>, vector<32x32xf32>, vector<256x32xf32> -> vector<256x32xf32>
    %c4 = arith.constant 4 : index
    %c0_21 = arith.constant 0 : index
    %32 = vector.load %arg3[%c4, %c0_21] : memref<24x32xf32, #tpu.memory_space<vmem>>, vector<1x32xf32>
    %33 = vector.broadcast %32 : vector<1x32xf32> to vector<256x32xf32>
    %34 = arith.addf %31, %33 : vector<256x32xf32>
    %35 = vector.extract_strided_slice %34 {offsets = [0, 0], sizes = [256, 8], strides = [1, 1]} : vector<256x32xf32> to vector<256x8xf32>
    %36 = arith.subf %0, %35 : vector<256x8xf32>
    %37 = vector.extract_strided_slice %34 {offsets = [0, 8], sizes = [256, 1], strides = [1, 1]} : vector<256x32xf32> to vector<256x1xf32>
    %38 = arith.addf %1, %37 : vector<256x1xf32>
    %c136 = arith.constant 136 : index
    %c0_22 = arith.constant 0 : index
    %39 = vector.load %arg2[%c136, %c0_22] : memref<408x32xf32, #tpu.memory_space<vmem>>, vector<8x32xf32>
    %cst_23 = arith.constant dense<0.000000e+00> : vector<256x32xf32>
    %40 = tpu.matmul %36, %39, %cst_23 {dimension_numbers = #tpu.dot_dimension_numbers<[1], [0], [0], [1], [0, 0, 1, 1], [], []>} : vector<256x8xf32>, vector<8x32xf32>, vector<256x32xf32> -> vector<256x32xf32>
    %c8_24 = arith.constant 8 : index
    %c0_25 = arith.constant 0 : index
    %41 = vector.load %arg3[%c8_24, %c0_25] : memref<24x32xf32, #tpu.memory_space<vmem>>, vector<1x32xf32>
    %42 = vector.broadcast %41 : vector<1x32xf32> to vector<256x32xf32>
    %43 = arith.addf %40, %42 : vector<256x32xf32>
    %cst_26 = arith.constant 0.000000e+00 : f32
    %44 = vector.broadcast %cst_26 : f32 to vector<256x32xf32>
    %45 = arith.maximumf %43, %44 : vector<256x32xf32>
    %c144 = arith.constant 144 : index
    %c0_27 = arith.constant 0 : index
    %46 = vector.load %arg2[%c144, %c0_27] : memref<408x32xf32, #tpu.memory_space<vmem>>, vector<32x32xf32>
    %cst_28 = arith.constant dense<0.000000e+00> : vector<256x32xf32>
    %47 = tpu.matmul %45, %46, %cst_28 {dimension_numbers = #tpu.dot_dimension_numbers<[1], [0], [0], [1], [0, 0, 1, 1], [], []>} : vector<256x32xf32>, vector<32x32xf32>, vector<256x32xf32> -> vector<256x32xf32>
    %c9 = arith.constant 9 : index
    %c0_29 = arith.constant 0 : index
    %48 = vector.load %arg3[%c9, %c0_29] : memref<24x32xf32, #tpu.memory_space<vmem>>, vector<1x32xf32>
    %49 = vector.broadcast %48 : vector<1x32xf32> to vector<256x32xf32>
    %50 = arith.addf %47, %49 : vector<256x32xf32>
    %cst_30 = arith.constant 0.000000e+00 : f32
    %51 = vector.broadcast %cst_30 : f32 to vector<256x32xf32>
    %52 = arith.maximumf %50, %51 : vector<256x32xf32>
    %c176 = arith.constant 176 : index
    %c0_31 = arith.constant 0 : index
    %53 = vector.load %arg2[%c176, %c0_31] : memref<408x32xf32, #tpu.memory_space<vmem>>, vector<32x32xf32>
    %cst_32 = arith.constant dense<0.000000e+00> : vector<256x32xf32>
    %54 = tpu.matmul %52, %53, %cst_32 {dimension_numbers = #tpu.dot_dimension_numbers<[1], [0], [0], [1], [0, 0, 1, 1], [], []>} : vector<256x32xf32>, vector<32x32xf32>, vector<256x32xf32> -> vector<256x32xf32>
    %c10 = arith.constant 10 : index
    %c0_33 = arith.constant 0 : index
    %55 = vector.load %arg3[%c10, %c0_33] : memref<24x32xf32, #tpu.memory_space<vmem>>, vector<1x32xf32>
    %56 = vector.broadcast %55 : vector<1x32xf32> to vector<256x32xf32>
    %57 = arith.addf %54, %56 : vector<256x32xf32>
    %cst_34 = arith.constant 0.000000e+00 : f32
    %58 = vector.broadcast %cst_34 : f32 to vector<256x32xf32>
    %59 = arith.maximumf %57, %58 : vector<256x32xf32>
    %c208 = arith.constant 208 : index
    %c0_35 = arith.constant 0 : index
    %60 = vector.load %arg2[%c208, %c0_35] : memref<408x32xf32, #tpu.memory_space<vmem>>, vector<32x32xf32>
    %cst_36 = arith.constant dense<0.000000e+00> : vector<256x32xf32>
    %61 = tpu.matmul %59, %60, %cst_36 {dimension_numbers = #tpu.dot_dimension_numbers<[1], [0], [0], [1], [0, 0, 1, 1], [], []>} : vector<256x32xf32>, vector<32x32xf32>, vector<256x32xf32> -> vector<256x32xf32>
    %c11 = arith.constant 11 : index
    %c0_37 = arith.constant 0 : index
    %62 = vector.load %arg3[%c11, %c0_37] : memref<24x32xf32, #tpu.memory_space<vmem>>, vector<1x32xf32>
    %63 = vector.broadcast %62 : vector<1x32xf32> to vector<256x32xf32>
    %64 = arith.addf %61, %63 : vector<256x32xf32>
    %cst_38 = arith.constant 0.000000e+00 : f32
    %65 = vector.broadcast %cst_38 : f32 to vector<256x32xf32>
    %66 = arith.maximumf %64, %65 : vector<256x32xf32>
    %c240 = arith.constant 240 : index
    %c0_39 = arith.constant 0 : index
    %67 = vector.load %arg2[%c240, %c0_39] : memref<408x32xf32, #tpu.memory_space<vmem>>, vector<32x32xf32>
    %cst_40 = arith.constant dense<0.000000e+00> : vector<256x32xf32>
    %68 = tpu.matmul %66, %67, %cst_40 {dimension_numbers = #tpu.dot_dimension_numbers<[1], [0], [0], [1], [0, 0, 1, 1], [], []>} : vector<256x32xf32>, vector<32x32xf32>, vector<256x32xf32> -> vector<256x32xf32>
    %c12 = arith.constant 12 : index
    %c0_41 = arith.constant 0 : index
    %69 = vector.load %arg3[%c12, %c0_41] : memref<24x32xf32, #tpu.memory_space<vmem>>, vector<1x32xf32>
    %70 = vector.broadcast %69 : vector<1x32xf32> to vector<256x32xf32>
    %71 = arith.addf %68, %70 : vector<256x32xf32>
    %72 = vector.extract_strided_slice %71 {offsets = [0, 0], sizes = [256, 8], strides = [1, 1]} : vector<256x32xf32> to vector<256x8xf32>
    %73 = arith.subf %36, %72 : vector<256x8xf32>
    %74 = vector.extract_strided_slice %71 {offsets = [0, 8], sizes = [256, 1], strides = [1, 1]} : vector<256x32xf32> to vector<256x1xf32>
    %75 = arith.addf %38, %74 : vector<256x1xf32>
    %c272 = arith.constant 272 : index
    %c0_42 = arith.constant 0 : index
    %76 = vector.load %arg2[%c272, %c0_42] : memref<408x32xf32, #tpu.memory_space<vmem>>, vector<8x32xf32>
    %cst_43 = arith.constant dense<0.000000e+00> : vector<256x32xf32>
    %77 = tpu.matmul %73, %76, %cst_43 {dimension_numbers = #tpu.dot_dimension_numbers<[1], [0], [0], [1], [0, 0, 1, 1], [], []>} : vector<256x8xf32>, vector<8x32xf32>, vector<256x32xf32> -> vector<256x32xf32>
    %c16 = arith.constant 16 : index
    %c0_44 = arith.constant 0 : index
    %78 = vector.load %arg3[%c16, %c0_44] : memref<24x32xf32, #tpu.memory_space<vmem>>, vector<1x32xf32>
    %79 = vector.broadcast %78 : vector<1x32xf32> to vector<256x32xf32>
    %80 = arith.addf %77, %79 : vector<256x32xf32>
    %cst_45 = arith.constant 0.000000e+00 : f32
    %81 = vector.broadcast %cst_45 : f32 to vector<256x32xf32>
    %82 = arith.maximumf %80, %81 : vector<256x32xf32>
    %c280 = arith.constant 280 : index
    %c0_46 = arith.constant 0 : index
    %83 = vector.load %arg2[%c280, %c0_46] : memref<408x32xf32, #tpu.memory_space<vmem>>, vector<32x32xf32>
    %cst_47 = arith.constant dense<0.000000e+00> : vector<256x32xf32>
    %84 = tpu.matmul %82, %83, %cst_47 {dimension_numbers = #tpu.dot_dimension_numbers<[1], [0], [0], [1], [0, 0, 1, 1], [], []>} : vector<256x32xf32>, vector<32x32xf32>, vector<256x32xf32> -> vector<256x32xf32>
    %c17 = arith.constant 17 : index
    %c0_48 = arith.constant 0 : index
    %85 = vector.load %arg3[%c17, %c0_48] : memref<24x32xf32, #tpu.memory_space<vmem>>, vector<1x32xf32>
    %86 = vector.broadcast %85 : vector<1x32xf32> to vector<256x32xf32>
    %87 = arith.addf %84, %86 : vector<256x32xf32>
    %cst_49 = arith.constant 0.000000e+00 : f32
    %88 = vector.broadcast %cst_49 : f32 to vector<256x32xf32>
    %89 = arith.maximumf %87, %88 : vector<256x32xf32>
    %c312 = arith.constant 312 : index
    %c0_50 = arith.constant 0 : index
    %90 = vector.load %arg2[%c312, %c0_50] : memref<408x32xf32, #tpu.memory_space<vmem>>, vector<32x32xf32>
    %cst_51 = arith.constant dense<0.000000e+00> : vector<256x32xf32>
    %91 = tpu.matmul %89, %90, %cst_51 {dimension_numbers = #tpu.dot_dimension_numbers<[1], [0], [0], [1], [0, 0, 1, 1], [], []>} : vector<256x32xf32>, vector<32x32xf32>, vector<256x32xf32> -> vector<256x32xf32>
    %c18 = arith.constant 18 : index
    %c0_52 = arith.constant 0 : index
    %92 = vector.load %arg3[%c18, %c0_52] : memref<24x32xf32, #tpu.memory_space<vmem>>, vector<1x32xf32>
    %93 = vector.broadcast %92 : vector<1x32xf32> to vector<256x32xf32>
    %94 = arith.addf %91, %93 : vector<256x32xf32>
    %cst_53 = arith.constant 0.000000e+00 : f32
    %95 = vector.broadcast %cst_53 : f32 to vector<256x32xf32>
    %96 = arith.maximumf %94, %95 : vector<256x32xf32>
    %c344 = arith.constant 344 : index
    %c0_54 = arith.constant 0 : index
    %97 = vector.load %arg2[%c344, %c0_54] : memref<408x32xf32, #tpu.memory_space<vmem>>, vector<32x32xf32>
    %cst_55 = arith.constant dense<0.000000e+00> : vector<256x32xf32>
    %98 = tpu.matmul %96, %97, %cst_55 {dimension_numbers = #tpu.dot_dimension_numbers<[1], [0], [0], [1], [0, 0, 1, 1], [], []>} : vector<256x32xf32>, vector<32x32xf32>, vector<256x32xf32> -> vector<256x32xf32>
    %c19 = arith.constant 19 : index
    %c0_56 = arith.constant 0 : index
    %99 = vector.load %arg3[%c19, %c0_56] : memref<24x32xf32, #tpu.memory_space<vmem>>, vector<1x32xf32>
    %100 = vector.broadcast %99 : vector<1x32xf32> to vector<256x32xf32>
    %101 = arith.addf %98, %100 : vector<256x32xf32>
    %cst_57 = arith.constant 0.000000e+00 : f32
    %102 = vector.broadcast %cst_57 : f32 to vector<256x32xf32>
    %103 = arith.maximumf %101, %102 : vector<256x32xf32>
    %c376 = arith.constant 376 : index
    %c0_58 = arith.constant 0 : index
    %104 = vector.load %arg2[%c376, %c0_58] : memref<408x32xf32, #tpu.memory_space<vmem>>, vector<32x32xf32>
    %cst_59 = arith.constant dense<0.000000e+00> : vector<256x32xf32>
    %105 = tpu.matmul %103, %104, %cst_59 {dimension_numbers = #tpu.dot_dimension_numbers<[1], [0], [0], [1], [0, 0, 1, 1], [], []>} : vector<256x32xf32>, vector<32x32xf32>, vector<256x32xf32> -> vector<256x32xf32>
    %c20 = arith.constant 20 : index
    %c0_60 = arith.constant 0 : index
    %106 = vector.load %arg3[%c20, %c0_60] : memref<24x32xf32, #tpu.memory_space<vmem>>, vector<1x32xf32>
    %107 = vector.broadcast %106 : vector<1x32xf32> to vector<256x32xf32>
    %108 = arith.addf %105, %107 : vector<256x32xf32>
    %109 = vector.extract_strided_slice %108 {offsets = [0, 8], sizes = [256, 1], strides = [1, 1]} : vector<256x32xf32> to vector<256x1xf32>
    %110 = arith.addf %75, %109 : vector<256x1xf32>
    %c0_61 = arith.constant 0 : index
    %c0_62 = arith.constant 0 : index
    %111 = vector.load %arg4[%c0_61, %c0_62] : memref<256x1xf32, #tpu.memory_space<vmem>>, vector<256x1xf32>
    tpu.vector_store %arg4[%c0_61, %c0_62], %110 {strides = array<i32>} : memref<256x1xf32, #tpu.memory_space<vmem>>, vector<256x1xf32>,
    return
  }
  func.func @transform_0(%arg0: i32) -> (i32, i32) {
    %c0_i32 = arith.constant 0 : i32
    %c0_i32_0 = arith.constant 0 : i32
    return %arg0, %c0_i32 : i32, i32
  }
  func.func @transform_1(%arg0: i32) -> (i32, i32) {
    %c0_i32 = arith.constant 0 : i32
    %c0_i32_0 = arith.constant 0 : i32
    %c0_i32_1 = arith.constant 0 : i32
    return %c0_i32, %c0_i32_0 : i32, i32
  }
  func.func @transform_2(%arg0: i32) -> (i32, i32) {
    %c0_i32 = arith.constant 0 : i32
    %c0_i32_0 = arith.constant 0 : i32
    %c0_i32_1 = arith.constant 0 : i32
    return %c0_i32, %c0_i32_0 : i32, i32
  }
  func.func @transform_3(%arg0: i32) -> (i32, i32) {
    %c0_i32 = arith.constant 0 : i32
    %c0_i32_0 = arith.constant 0 : i32
    return %arg0, %c0_i32 : i32, i32
  }
}

</mosaic_0001>

<llo_original>
// kernel: nbeats_forward.1
$region0: #{nbeats_forward.1}
  #allocation0 [shape = 'u32[]', space=smem, size = 0x4, offset = 0x4, fixed_abs, tag = 'smem constant byte address 0x4 - core index']
  #allocation1 [shape = 'u32[144,128]{1,0:T(1,128)}', space=vmem, size = 0x12000, scoped, tag = 'internal scratch']
  %s0 = inlined_call_operand.vmem [shape: f32[512,8], index: 0, kind: input, shape index: {}]
  %s1 = inlined_call_operand.vmem [shape: f32[408,32], index: 1, kind: input, shape index: {}]
  %s2 = inlined_call_operand.vmem [shape: f32[24,32], index: 2, kind: input, shape index: {}]
  %s3 = inlined_call_operand.vmem [shape: f32[512,1], index: 3, kind: output, shape index: {}]
  %s4 = sld [smem:[#allocation0]]
  $region45: #{nbeats_forward.1} parent=0
    _
  %s6 = ssub.s32 1, %s4
  %s7 = scalar_select 0, %s6, %s4
  loop: start=0, step=1, limit=4
  $region2: #{nbeats_forward.1} parent=0 // loop_pre_header
    _
  $region3: #{nbeats_forward.1} parent=0 // loop_header
    %s9 = sphi 0, %s13
    %p10 = scmp.ge.s32.totalorder %s9, 4
    %s19 = sphi 0, %s21
    %s22 = sphi 0, %s19
    %s23 = sphi 0, %s22
    %s39 = sphi 0, %s23
    %s43 = sphi 0, %s43
    %s45 = sphi 0, %s43
    %s46 = sphi 0, %s45
    %s60 = sphi 0, %s46
    %s64 = sphi 0, %s64
    %s66 = sphi 0, %s64
    %s67 = sphi 0, %s66
    %s81 = sphi 0, %s67
    %s87 = sphi 0, %s89
    %s90 = sphi 0, %s87
    %s91 = sphi 0, %s90
    %s107 = sphi 0, %s91
  $region4: #{nbeats_forward.1} parent=0 // loop_header_branch
    %12 = sbr.rel (%p10) target = $region8
  $region5: #{nbeats_forward.1} parent=0 // loop_body
    %s14 = ssub.s32 %s9, 1
    %s15 = ssub.s32 %s9, 2
    %s16 = sadd.s32 %s9, 1
    %s17 = ssub.s32 %s9, %s16
    %p18 = scmp.eq.s32.totalorder %s17, 0
    %s20 = sadd.s32 %s19, 1
    %s21 = scalar_select %p18, %s19, %s20
    %p24 = pneg %p18
    %p25 = scmp.eq.s32.totalorder %s9, 1
    %p26 = por %p24, %p25
    %p27 = scmp.ne.s32.totalorder %s19, %s22
    %p28 = scmp.eq.s32.totalorder %s9, 0
    %p29 = por %p27, %p28
    %p30 = scmp.ne.s32.totalorder %s19, %s22
    %p31 = scmp.eq.s32.totalorder %s14, 1
    %p32 = por %p30, %p31
    %p33 = scmp.ne.s32.totalorder %s22, %s23
    %p34 = scmp.eq.s32.totalorder %s14, 0
    %p35 = por %p33, %p34
    %p36 = scmp.ne.s32.totalorder %s22, %s23
    %p37 = scmp.eq.s32.totalorder %s15, 1
    %p38 = por %p36, %p37
    %p40 = scmp.ne.s32.totalorder %s23, %s39
    %p41 = scmp.eq.s32.totalorder %s15, 0
    %p42 = por %p40, %p41
    %s44 = sadd.s32 %s43, 1
    %p47 = scmp.eq.s32.totalorder %s9, 1
    %p48 = scmp.ne.s32.totalorder %s43, %s45
    %p49 = scmp.eq.s32.totalorder %s9, 0
    %p50 = por %p48, %p49
    %p51 = scmp.ne.s32.totalorder %s43, %s45
    %p52 = scmp.eq.s32.totalorder %s14, 1
    %p53 = por %p51, %p52
    %p54 = scmp.ne.s32.totalorder %s45, %s46
    %p55 = scmp.eq.s32.totalorder %s14, 0
    %p56 = por %p54, %p55
    %p57 = scmp.ne.s32.totalorder %s45, %s46
    %p58 = scmp.eq.s32.totalorder %s15, 1
    %p59 = por %p57, %p58
    %p61 = scmp.ne.s32.totalorder %s46, %s60
    %p62 = scmp.eq.s32.totalorder %s15, 0
    %p63 = por %p61, %p62
    %s65 = sadd.s32 %s64, 1
    %p68 = scmp.eq.s32.totalorder %s9, 1
    %p69 = scmp.ne.s32.totalorder %s64, %s66
    %p70 = scmp.eq.s32.totalorder %s9, 0
    %p71 = por %p69, %p70
    %p72 = scmp.ne.s32.totalorder %s64, %s66
    %p73 = scmp.eq.s32.totalorder %s14, 1
    %p74 = por %p72, %p73
    %p75 = scmp.ne.s32.totalorder %s66, %s67
    %p76 = scmp.eq.s32.totalorder %s14, 0
    %p77 = por %p75, %p76
    %p78 = scmp.ne.s32.totalorder %s66, %s67
    %p79 = scmp.eq.s32.totalorder %s15, 1
    %p80 = por %p78, %p79
    %p82 = scmp.ne.s32.totalorder %s67, %s81
    %p83 = scmp.eq.s32.totalorder %s15, 0
    %p84 = por %p82, %p83
    %s85 = ssub.s32 %s9, %s16
    %p86 = scmp.eq.s32.totalorder %s85, 0
    %s88 = sadd.s32 %s87, 1
    %s89 = scalar_select %p86, %s87, %s88
    %p92 = pneg %p86
    %p93 = scmp.eq.s32.totalorder %s9, 1
    %p94 = por %p92, %p93
    %p95 = scmp.ne.s32.totalorder %s87, %s90
    %p96 = scmp.eq.s32.totalorder %s9, 0
    %p97 = por %p95, %p96
    %p98 = scmp.ne.s32.totalorder %s87, %s90
    %p99 = scmp.eq.s32.totalorder %s14, 1
    %p100 = por %p98, %p99
    %p101 = scmp.ne.s32.totalorder %s90, %s91
    %p102 = scmp.eq.s32.totalorder %s14, 0
    %p103 = por %p101, %p102
    %p104 = scmp.ne.s32.totalorder %s90, %s91
    %p105 = scmp.eq.s32.totalorder %s15, 1
    %p106 = por %p104, %p105
    %p108 = scmp.ne.s32.totalorder %s91, %s107
    %p109 = scmp.eq.s32.totalorder %s15, 0
    %p110 = por %p108, %p109
    %p111 = scmp.le.s32.totalorder 1, %s9
    %p112 = scmp.lt.s32.totalorder %s9, 3
    %p113 = pnand %p111, %p112
    %p114 = pneg %p113
    // Predicated region
    $region9: #{nbeats_forward.1} parent=5 // pred_check
      _
    $region10: #{nbeats_forward.1} parent=5 // pred_check_branch
      %116 = sbr.rel (%p113) target = $region12
    $region11: #{nbeats_forward.1} parent=5 // pred_region
      %s117 = ssub.s32 %s9, 1
      // Predicated region
      $region13: #{nbeats_forward.1} parent=11 // pred_check
        %p118 = pneg %p56
      $region14: #{nbeats_forward.1} parent=11 // pred_check_branch
        %120 = sbr.rel (%p118) target = $region16
      $region15: #{nbeats_forward.1} parent=11 // pred_region
        _
      $region16: #{nbeats_forward.1} parent=11 // pred_fallthru
        _
      // Predicated region
      $region17: #{nbeats_forward.1} parent=11 // pred_check
        %p121 = pneg %p77
      $region18: #{nbeats_forward.1} parent=11 // pred_check_branch
        %123 = sbr.rel (%p121) target = $region20
      $region19: #{nbeats_forward.1} parent=11 // pred_region
        _
      $region20: #{nbeats_forward.1} parent=11 // pred_fallthru
        _
    $region12: #{nbeats_forward.1} parent=5 // pred_fallthru
      _
    %p124 = scmp.lt.s32.totalorder %s9, 2
    // Predicated region
    $region21: #{nbeats_forward.1} parent=5 // pred_check
      %p125 = pneg %p124
    $region22: #{nbeats_forward.1} parent=5 // pred_check_branch
      %127 = sbr.rel (%p125) target = $region24
    $region23: #{nbeats_forward.1} parent=5 // pred_region
      // Predicated region
      $region25: #{nbeats_forward.1} parent=23 // pred_check
        %p128 = pneg %p29
      $region26: #{nbeats_forward.1} parent=23 // pred_check_branch
        %130 = sbr.rel (%p128) target = $region28
      $region27: #{nbeats_forward.1} parent=23 // pred_region
        %s131 = smul.u32 32, %s9
        %p132 = scmp.lt.s32.totalorder %s131, 63
        %s133 = scalar_select %p132, %s131, 63
        %s134 = smul.addr %s133, 8
        %s135 = scalar_lea.vmem %s0, %s134
        %s136 = smul.u32 32, %s9
      $region28: #{nbeats_forward.1} parent=23 // pred_fallthru
        _
    $region24: #{nbeats_forward.1} parent=5 // pred_fallthru
      _
    %p137 = scmp.le.s32.totalorder 1, %s9
    %p138 = scmp.lt.s32.totalorder %s9, 3
    %p139 = pnand %p137, %p138
    %p140 = pneg %p139
    // Predicated region
    $region29: #{nbeats_forward.1} parent=5 // pred_check
      _
    $region30: #{nbeats_forward.1} parent=5 // pred_check_branch
      %142 = sbr.rel (%p139) target = $region32
    $region31: #{nbeats_forward.1} parent=5 // pred_region
      %s143 = ssub.s32 %s9, 1
      %s144 = smul.u32 32, %s14
      %p145 = scmp.lt.s32.totalorder %s144, 63
      %s146 = scalar_select %p145, %s144, 63
      %s147 = smul.addr %s146, 8
      %s148 = scalar_lea.vmem %s0, %s147
      %p149 = pneg %p35
      %p150 = pneg %p32
      %p151 = pneg %p56
      %p152 = pneg %p53
      %p153 = pneg %p77
      %p154 = pneg %p74
      %p155 = pneg %p103
      %p156 = pneg %p100
      %s157 = smul.u32 32, %s14
      %p158 = scmp.lt.s32.totalorder %s157, 63
      %s159 = scalar_select %p158, %s157, 63
      %s160 = smul.addr %s159, 8
      %s161 = scalar_lea.vmem %s3, %s160
      %s162 = smul.u32 32, %s14
      %p163 = scmp.lt.s32.totalorder %s162, 63
      %s164 = scalar_select %p163, %s162, 63
      %s165 = smul.addr %s164, 8
      %s166 = scalar_lea.vmem %s0, %s165
      %s167 = smul.u32 32, %s14
      %s168 = smul.u32 32, %s14
      %p169 = scmp.lt.s32.totalorder %s168, 63
      %s170 = scalar_select %p169, %s168, 63
      %s171 = smul.addr %s170, 8
      %s172 = scalar_lea.vmem %s3, %s171
      %s173 = smul.u32 32, %s14
      %v174 = vld [vmem:[%s166] sm:$0xff]
      %v175 = vld [vmem:[%s166 + $0x8] sm:$0xff]
      %v176 = vld [vmem:[%s166 + $0x10] sm:$0xff]
      %v177 = vld [vmem:[%s166 + $0x18] sm:$0xff]
      %v178 = vld [vmem:[%s166 + $0x20] sm:$0xff]
      %v179 = vld [vmem:[%s166 + $0x28] sm:$0xff]
      %v180 = vld [vmem:[%s166 + $0x30] sm:$0xff]
      %v181 = vld [vmem:[%s166 + $0x38] sm:$0xff]
      %v182 = vld [vmem:[%s166 + $0x40] sm:$0xff]
      %v183 = vld [vmem:[%s166 + $0x48] sm:$0xff]
      %v184 = vld [vmem:[%s166 + $0x50] sm:$0xff]
      %v185 = vld [vmem:[%s166 + $0x58] sm:$0xff]
      %v186 = vld [vmem:[%s166 + $0x60] sm:$0xff]
      %v187 = vld [vmem:[%s166 + $0x68] sm:$0xff]
      %v188 = vld [vmem:[%s166 + $0x70] sm:$0xff]
      %v189 = vld [vmem:[%s166 + $0x78] sm:$0xff]
      %v190 = vld [vmem:[%s166 + $0x80] sm:$0xff]
      %v191 = vld [vmem:[%s166 + $0x88] sm:$0xff]
      %v192 = vld [vmem:[%s166 + $0x90] sm:$0xff]
      %v193 = vld [vmem:[%s166 + $0x98] sm:$0xff]
      %v194 = vld [vmem:[%s166 + $0xa0] sm:$0xff]
      %v195 = vld [vmem:[%s166 + $0xa8] sm:$0xff]
      %v196 = vld [vmem:[%s166 + $0xb0] sm:$0xff]
      %v197 = vld [vmem:[%s166 + $0xb8] sm:$0xff]
      %v198 = vld [vmem:[%s166 + $0xc0] sm:$0xff]
      %v199 = vld [vmem:[%s166 + $0xc8] sm:$0xff]
      %v200 = vld [vmem:[%s166 + $0xd0] sm:$0xff]
      %v201 = vld [vmem:[%s166 + $0xd8] sm:$0xff]
      %v202 = vld [vmem:[%s166 + $0xe0] sm:$0xff]
      %v203 = vld [vmem:[%s166 + $0xe8] sm:$0xff]
      %v204 = vld [vmem:[%s166 + $0xf0] sm:$0xff]
      %v205 = vld [vmem:[%s166 + $0xf8] sm:$0xff]
      %v206 = vld [vmem:[%s1] sm:$0xff]
      %v207 = vld [vmem:[%s2] sm:$0x1]
      %v208 = vlaneseq
      %v209 = vshrl.u32 %v208, 7
      %v210 = vsub.s32 0, %v209
      %v211 = vrot.slane %v207, %v210
      %vm212 = vcmask 64512
      %v214 = vsel %vm212, %v174, 0
      %v217 = vsel %vm212, %v175, 0
      %v220 = vsel %vm212, %v176, 0
      %v223 = vsel %vm212, %v177, 0
      %v226 = vsel %vm212, %v178, 0
      %v229 = vsel %vm212, %v179, 0
      %v232 = vsel %vm212, %v180, 0
      %v235 = vsel %vm212, %v181, 0
      %v238 = vsel %vm212, %v182, 0
      %v241 = vsel %vm212, %v183, 0
      %v244 = vsel %vm212, %v184, 0
      %v247 = vsel %vm212, %v185, 0
      %v250 = vsel %vm212, %v186, 0
      %v253 = vsel %vm212, %v187, 0
      %v256 = vsel %vm212, %v188, 0
      %v259 = vsel %vm212, %v189, 0
      %v262 = vsel %vm212, %v190, 0
      %v265 = vsel %vm212, %v191, 0
      %v268 = vsel %vm212, %v192, 0
      %v271 = vsel %vm212, %v193, 0
      %v274 = vsel %vm212, %v194, 0
      %v277 = vsel %vm212, %v195, 0
      %v280 = vsel %vm212, %v196, 0
      %v283 = vsel %vm212, %v197, 0
      %v286 = vsel %vm212, %v198, 0
      %v289 = vsel %vm212, %v199, 0
      %v292 = vsel %vm212, %v200, 0
      %v295 = vsel %vm212, %v201, 0
      %v298 = vsel %vm212, %v202, 0
      %v301 = vsel %vm212, %v203, 0
      %v304 = vsel %vm212, %v204, 0
      %v307 = vsel %vm212, %v205, 0
      %309 = vmatprep.subr.mxu0 0.0
      %310 = vmatpush1.msra.mxu0 %v206
      %311 = vmatprep.subr.mxu0 0.0
      %312 = vmatpush1.msra.mxu0 0.0
      %313 = vmatprep.subr.mxu0 0.0
      %314 = vmatpush1.msra.mxu0 0.0
      %315 = vmatprep.subr.mxu0 0.0
      %316 = vmatpush1.msra.mxu0 0.0
      %317 = vmatprep.subr.mxu0 0.0
      %318 = vmatpush1.msra.mxu0 0.0
      %319 = vmatprep.subr.mxu0 0.0
      %320 = vmatpush1.msra.mxu0 0.0
      %321 = vmatprep.subr.mxu0 0.0
      %322 = vmatpush1.msra.mxu0 0.0
      %323 = vmatprep.subr.mxu0 0.0
      %324 = vmatpush1.msra.mxu0 0.0
      %325 = vmatprep.subr.mxu0 0.0
      %326 = vmatpush1.msra.mxu0 0.0
      %327 = vmatprep.subr.mxu0 0.0
      %328 = vmatpush1.msra.mxu0 0.0
      %329 = vmatprep.subr.mxu0 0.0
      %330 = vmatpush1.msra.mxu0 0.0
      %331 = vmatprep.subr.mxu0 0.0
      %332 = vmatpush1.msra.mxu0 0.0
      %333 = vmatprep.subr.mxu0 0.0
      %334 = vmatpush1.msra.mxu0 0.0
      %335 = vmatprep.subr.mxu0 0.0
      %336 = vmatpush1.msra.mxu0 0.0
      %337 = vmatprep.subr.mxu0 0.0
      %338 = vmatpush1.msra.mxu0 0.0
      %339 = vmatprep.subr.mxu0 0.0
      %340 = vmatpush1.msra.mxu0 0.0
      %341 = vmatprep.subr.mxu0 0.0
      %342 = vmatpush1.msra.mxu0 0.0
      %343 = vmatprep.subr.mxu0 0.0
      %344 = vmatpush1.msra.mxu0 0.0
      %345 = vmatprep.subr.mxu0 0.0
      %346 = vmatpush1.msra.mxu0 0.0
      %347 = vmatprep.subr.mxu0 0.0
      %348 = vmatpush1.msra.mxu0 0.0
      %349 = vmatprep.subr.mxu0 0.0
      %350 = vmatpush1.msra.mxu0 0.0
      %351 = vmatprep.subr.mxu0 0.0
      %352 = vmatpush1.msra.mxu0 0.0
      %353 = vmatprep.subr.mxu0 0.0
      %354 = vmatpush1.msra.mxu0 0.0
      %355 = vmatprep.subr.mxu0 0.0
      %356 = vmatpush1.msra.mxu0 0.0
      %357 = vmatprep.subr.mxu0 0.0
      %358 = vmatpush1.msra.mxu0 0.0
      %359 = vmatprep.subr.mxu0 0.0
      %360 = vmatpush1.msra.mxu0 0.0
      %361 = vmatprep.subr.mxu0 0.0
      %362 = vmatpush1.msra.mxu0 0.0
      %363 = vmatprep.subr.mxu0 0.0
      %364 = vmatpush1.msra.mxu0 0.0
      %365 = vmatprep.subr.mxu0 0.0
      %366 = vmatpush1.msra.mxu0 0.0
      %367 = vmatprep.subr.mxu0 0.0
      %368 = vmatpush1.msra.mxu0 0.0
      %369 = vmatprep.subr.mxu0 0.0
      %370 = vmatpush1.msra.mxu0 0.0
      %371 = vmatprep.subr.mxu0 0.0
      %372 = vmatpush1.msra.mxu0 0.0
      %373 = vmatprep.mubr.f32.mxu0 0.0
      %374 = vmatmul.mubr.f32.gmra.mrb[0].mxu0 %v214
      %v375 = vpop.f32.mrb[0].mxu0
      %v376 = vadd.f32 %v211, %v375
      %v377 = vpop.f32.mrb[0].mxu0
      %378 = vmatprep.mubr.f32.mxu0 0.0
      %379 = vmatmul.mubr.f32.gmra.mrb[0].mxu0 %v217
      %v380 = vpop.f32.mrb[0].mxu0
      %v381 = vadd.f32 %v211, %v380
      %v382 = vpop.f32.mrb[0].mxu0
      %383 = vmatprep.mubr.f32.mxu0 0.0
      %384 = vmatmul.mubr.f32.gmra.mrb[0].mxu0 %v220
      %v385 = vpop.f32.mrb[0].mxu0
      %v386 = vadd.f32 %v211, %v385
      %v387 = vpop.f32.mrb[0].mxu0
      %388 = vmatprep.mubr.f32.mxu0 0.0
      %389 = vmatmul.mubr.f32.gmra.mrb[0].mxu0 %v223
      %v390 = vpop.f32.mrb[0].mxu0
      %v391 = vadd.f32 %v211, %v390
      %v392 = vpop.f32.mrb[0].mxu0
      %393 = vmatprep.mubr.f32.mxu0 0.0
      %394 = vmatmul.mubr.f32.gmra.mrb[0].mxu0 %v226
      %v395 = vpop.f32.mrb[0].mxu0
      %v396 = vadd.f32 %v211, %v395
      %v397 = vpop.f32.mrb[0].mxu0
      %398 = vmatprep.mubr.f32.mxu0 0.0
      %399 = vmatmul.mubr.f32.gmra.mrb[0].mxu0 %v229
      %v400 = vpop.f32.mrb[0].mxu0
      %v401 = vadd.f32 %v211, %v400
      %v402 = vpop.f32.mrb[0].mxu0
      %403 = vmatprep.mubr.f32.mxu0 0.0
      %404 = vmatmul.mubr.f32.gmra.mrb[0].mxu0 %v232
      %v405 = vpop.f32.mrb[0].mxu0
      %v406 = vadd.f32 %v211, %v405
      %v407 = vpop.f32.mrb[0].mxu0
      %408 = vmatprep.mubr.f32.mxu0 0.0
      %409 = vmatmul.mubr.f32.gmra.mrb[0].mxu0 %v235
      %v410 = vpop.f32.mrb[0].mxu0
      %v411 = vadd.f32 %v211, %v410
      %v412 = vpop.f32.mrb[0].mxu0
      %413 = vmatprep.mubr.f32.mxu0 0.0
      %414 = vmatmul.mubr.f32.gmra.mrb[0].mxu0 %v238
      %v415 = vpop.f32.mrb[0].mxu0
      %v416 = vadd.f32 %v211, %v415
      %v417 = vpop.f32.mrb[0].mxu0
      %418 = vmatprep.mubr.f32.mxu0 0.0
      %419 = vmatmul.mubr.f32.gmra.mrb[0].mxu0 %v241
      %v420 = vpop.f32.mrb[0].mxu0
      %v421 = vadd.f32 %v211, %v420
      %v422 = vpop.f32.mrb[0].mxu0
      %423 = vmatprep.mubr.f32.mxu0 0.0
      %424 = vmatmul.mubr.f32.gmra.mrb[0].mxu0 %v244
      %v425 = vpop.f32.mrb[0].mxu0
      %v426 = vadd.f32 %v211, %v425
      %v427 = vpop.f32.mrb[0].mxu0
      %428 = vmatprep.mubr.f32.mxu0 0.0
      %429 = vmatmul.mubr.f32.gmra.mrb[0].mxu0 %v247
      %v430 = vpop.f32.mrb[0].mxu0
      %v431 = vadd.f32 %v211, %v430
      %v432 = vpop.f32.mrb[0].mxu0
      %433 = vmatprep.mubr.f32.mxu0 0.0
      %434 = vmatmul.mubr.f32.gmra.mrb[0].mxu0 %v250
      %v435 = vpop.f32.mrb[0].mxu0
      %v436 = vadd.f32 %v211, %v435
      %v437 = vpop.f32.mrb[0].mxu0
      %438 = vmatprep.mubr.f32.mxu0 0.0
      %439 = vmatmul.mubr.f32.gmra.mrb[0].mxu0 %v253
      %v440 = vpop.f32.mrb[0].mxu0
      %v441 = vadd.f32 %v211, %v440
      %v442 = vpop.f32.mrb[0].mxu0
      %443 = vmatprep.mubr.f32.mxu0 0.0
      %444 = vmatmul.mubr.f32.gmra.mrb[0].mxu0 %v256
      %v445 = vpop.f32.mrb[0].mxu0
      %v446 = vadd.f32 %v211, %v445
      %v447 = vpop.f32.mrb[0].mxu0
      %448 = vmatprep.mubr.f32.mxu0 0.0
      %449 = vmatmul.mubr.f32.gmra.mrb[0].mxu0 %v259
      %v450 = vpop.f32.mrb[0].mxu0
      %v451 = vadd.f32 %v211, %v450
      %v452 = vpop.f32.mrb[0].mxu0
      %453 = vmatprep.mubr.f32.mxu0 0.0
      %454 = vmatmul.mubr.f32.gmra.mrb[0].mxu0 %v262
      %v455 = vpop.f32.mrb[0].mxu0
      %v456 = vadd.f32 %v211, %v455
      %v457 = vpop.f32.mrb[0].mxu0
      %458 = vmatprep.mubr.f32.mxu0 0.0
      %459 = vmatmul.mubr.f32.gmra.mrb[0].mxu0 %v265
      %v460 = vpop.f32.mrb[0].mxu0
      %v461 = vadd.f32 %v211, %v460
      %v462 = vpop.f32.mrb[0].mxu0
      %463 = vmatprep.mubr.f32.mxu0 0.0
      %464 = vmatmul.mubr.f32.gmra.mrb[0].mxu0 %v268
      %v465 = vpop.f32.mrb[0].mxu0
      %v466 = vadd.f32 %v211, %v465
      %v467 = vpop.f32.mrb[0].mxu0
      %468 = vmatprep.mubr.f32.mxu0 0.0
      %469 = vmatmul.mubr.f32.gmra.mrb[0].mxu0 %v271
      %v470 = vpop.f32.mrb[0].mxu0
      %v471 = vadd.f32 %v211, %v470
      %v472 = vpop.f32.mrb[0].mxu0
      %473 = vmatprep.mubr.f32.mxu0 0.0
      %474 = vmatmul.mubr.f32.gmra.mrb[0].mxu0 %v274
      %v475 = vpop.f32.mrb[0].mxu0
      %v476 = vadd.f32 %v211, %v475
      %v477 = vpop.f32.mrb[0].mxu0
      %478 = vmatprep.mubr.f32.mxu0 0.0
      %479 = vmatmul.mubr.f32.gmra.mrb[0].mxu0 %v277
      %v480 = vpop.f32.mrb[0].mxu0
      %v481 = vadd.f32 %v211, %v480
      %v482 = vpop.f32.mrb[0].mxu0
      %483 = vmatprep.mubr.f32.mxu0 0.0
      %484 = vmatmul.mubr.f32.gmra.mrb[0].mxu0 %v280
      %v485 = vpop.f32.mrb[0].mxu0
      %v486 = vadd.f32 %v211, %v485
      %v487 = vpop.f32.mrb[0].mxu0
      %488 = vmatprep.mubr.f32.mxu0 0.0
      %489 = vmatmul.mubr.f32.gmra.mrb[0].mxu0 %v283
      %v490 = vpop.f32.mrb[0].mxu0
      %v491 = vadd.f32 %v211, %v490
      %v492 = vpop.f32.mrb[0].mxu0
      %493 = vmatprep.mubr.f32.mxu0 0.0
      %494 = vmatmul.mubr.f32.gmra.mrb[0].mxu0 %v286
      %v495 = vpop.f32.mrb[0].mxu0
      %v496 = vadd.f32 %v211, %v495
      %v497 = vpop.f32.mrb[0].mxu0
      %498 = vmatprep.mubr.f32.mxu0 0.0
      %499 = vmatmul.mubr.f32.gmra.mrb[0].mxu0 %v289
      %v500 = vpop.f32.mrb[0].mxu0
      %v501 = vadd.f32 %v211, %v500
      %v502 = vpop.f32.mrb[0].mxu0
      %503 = vmatprep.mubr.f32.mxu0 0.0
      %504 = vmatmul.mubr.f32.gmra.mrb[0].mxu0 %v292
      %v505 = vpop.f32.mrb[0].mxu0
      %v506 = vadd.f32 %v211, %v505
      %v507 = vpop.f32.mrb[0].mxu0
      %508 = vmatprep.mubr.f32.mxu0 0.0
      %509 = vmatmul.mubr.f32.gmra.mrb[0].mxu0 %v295
      %v510 = vpop.f32.mrb[0].mxu0
      %v511 = vadd.f32 %v211, %v510
      %v512 = vpop.f32.mrb[0].mxu0
      %513 = vmatprep.mubr.f32.mxu0 0.0
      %514 = vmatmul.mubr.f32.gmra.mrb[0].mxu0 %v298
      %v515 = vpop.f32.mrb[0].mxu0
      %v516 = vadd.f32 %v211, %v515
      %v517 = vpop.f32.mrb[0].mxu0
      %518 = vmatprep.mubr.f32.mxu0 0.0
      %519 = vmatmul.mubr.f32.gmra.mrb[0].mxu0 %v301
      %v520 = vpop.f32.mrb[0].mxu0
      %v521 = vadd.f32 %v211, %v520
      %v522 = vpop.f32.mrb[0].mxu0
      %523 = vmatprep.mubr.f32.mxu0 0.0
      %524 = vmatmul.mubr.f32.gmra.mrb[0].mxu0 %v304
      %v525 = vpop.f32.mrb[0].mxu0
      %v526 = vadd.f32 %v211, %v525
      %v527 = vpop.f32.mrb[0].mxu0
      %528 = vmatprep.mubr.f32.mxu0 0.0
      %529 = vmatmul.mubr.f32.gmra.mrb[0].mxu0 %v307
      %v530 = vpop.f32.mrb[0].mxu0
      %v531 = vadd.f32 %v211, %v530
      %v532 = vpop.f32.mrb[0].mxu0
      %533 = vdwg.mxu0
      %v534 = vmax.f32 %v376, 0.0
      %v535 = vmax.f32 %v381, 0.0
      %v536 = vmax.f32 %v386, 0.0
      %v537 = vmax.f32 %v391, 0.0
      %v538 = vmax.f32 %v396, 0.0
      %v539 = vmax.f32 %v401, 0.0
      %v540 = vmax.f32 %v406, 0.0
      %v541 = vmax.f32 %v411, 0.0
      %v542 = vmax.f32 %v416, 0.0
      %v543 = vmax.f32 %v421, 0.0
      %v544 = vmax.f32 %v426, 0.0
      %v545 = vmax.f32 %v431, 0.0
      %v546 = vmax.f32 %v436, 0.0
      %v547 = vmax.f32 %v441, 0.0
      %v548 = vmax.f32 %v446, 0.0
      %v549 = vmax.f32 %v451, 0.0
      %v550 = vmax.f32 %v456, 0.0
      %v551 = vmax.f32 %v461, 0.0
      %v552 = vmax.f32 %v466, 0.0
      %v553 = vmax.f32 %v471, 0.0
      %v554 = vmax.f32 %v476, 0.0
      %v555 = vmax.f32 %v481, 0.0
      %v556 = vmax.f32 %v486, 0.0
      %v557 = vmax.f32 %v491, 0.0
      %v558 = vmax.f32 %v496, 0.0
      %v559 = vmax.f32 %v501, 0.0
      %v560 = vmax.f32 %v506, 0.0
      %v561 = vmax.f32 %v511, 0.0
      %v562 = vmax.f32 %v516, 0.0
      %v563 = vmax.f32 %v521, 0.0
      %v564 = vmax.f32 %v526, 0.0
      %v565 = vmax.f32 %v531, 0.0
      %v566 = vld [vmem:[%s1 + $0x8] sm:$0xff]
      %v567 = vld [vmem:[%s1 + $0x10] sm:$0xff]
      %v568 = vld [vmem:[%s1 + $0x18] sm:$0xff]
      %v569 = vld [vmem:[%s1 + $0x20] sm:$0xff]
      %v570 = vld [vmem:[%s2 + $0x1] sm:$0x1]
      %v571 = vlaneseq
      %v572 = vshrl.u32 %v571, 7
      %v573 = vsub.s32 0, %v572
      %v574 = vrot.slane %v570, %v573
      %vm575 = vcmask 261120
      %v577 = vsel %vm575, %v534, 0
      %v580 = vsel %vm575, %v535, 0
      %v583 = vsel %vm575, %v536, 0
      %v586 = vsel %vm575, %v537, 0
      %v589 = vsel %vm575, %v538, 0
      %v592 = vsel %vm575, %v539, 0
      %v595 = vsel %vm575, %v540, 0
      %v598 = vsel %vm575, %v541, 0
      %v601 = vsel %vm575, %v542, 0
      %v604 = vsel %vm575, %v543, 0
      %v607 = vsel %vm575, %v544, 0
      %v610 = vsel %vm575, %v545, 0
      %v613 = vsel %vm575, %v546, 0
      %v616 = vsel %vm575, %v547, 0
      %v619 = vsel %vm575, %v548, 0
      %v622 = vsel %vm575, %v549, 0
      %v625 = vsel %vm575, %v550, 0
      %v628 = vsel %vm575, %v551, 0
      %v631 = vsel %vm575, %v552, 0
      %v634 = vsel %vm575, %v553, 0
      %v637 = vsel %vm575, %v554, 0
      %v640 = vsel %vm575, %v555, 0
      %v643 = vsel %vm575, %v556, 0
      %v646 = vsel %vm575, %v557, 0
      %v649 = vsel %vm575, %v558, 0
      %v652 = vsel %vm575, %v559, 0
      %v655 = vsel %vm575, %v560, 0
      %v658 = vsel %vm575, %v561, 0
      %v661 = vsel %vm575, %v562, 0
      %v664 = vsel %vm575, %v563, 0
      %v667 = vsel %vm575, %v564, 0
      %v670 = vsel %vm575, %v565, 0
      %672 = vmatprep.subr.mxu0 0.0
      %673 = vmatpush1.msra.mxu0 %v566
      %674 = vmatprep.subr.mxu0 0.0
      %675 = vmatpush1.msra.mxu0 %v567
      %676 = vmatprep.subr.mxu0 0.0
      %677 = vmatpush1.msra.mxu0 %v568
      %678 = vmatprep.subr.mxu0 0.0
      %679 = vmatpush1.msra.mxu0 %v569
      %680 = vmatprep.subr.mxu0 0.0
      %681 = vmatpush1.msra.mxu0 0.0
      %682 = vmatprep.subr.mxu0 0.0
      %683 = vmatpush1.msra.mxu0 0.0
      %684 = vmatprep.subr.mxu0 0.0
      %685 = vmatpush1.msra.mxu0 0.0
      %686 = vmatprep.subr.mxu0 0.0
      %687 = vmatpush1.msra.mxu0 0.0
      %688 = vmatprep.subr.mxu0 0.0
      %689 = vmatpush1.msra.mxu0 0.0
      %690 = vmatprep.subr.mxu0 0.0
      %691 = vmatpush1.msra.mxu0 0.0
      %692 = vmatprep.subr.mxu0 0.0
      %693 = vmatpush1.msra.mxu0 0.0
      %694 = vmatprep.subr.mxu0 0.0
      %695 = vmatpush1.msra.mxu0 0.0
      %696 = vmatprep.subr.mxu0 0.0
      %697 = vmatpush1.msra.mxu0 0.0
      %698 = vmatprep.subr.mxu0 0.0
      %699 = vmatpush1.msra.mxu0 0.0
      %700 = vmatprep.subr.mxu0 0.0
      %701 = vmatpush1.msra.mxu0 0.0
      %702 = vmatprep.subr.mxu0 0.0
      %703 = vmatpush1.msra.mxu0 0.0
      %704 = vmatprep.subr.mxu0 0.0
      %705 = vmatpush1.msra.mxu0 0.0
      %706 = vmatprep.subr.mxu0 0.0
      %707 = vmatpush1.msra.mxu0 0.0
      %708 = vmatprep.subr.mxu0 0.0
      %709 = vmatpush1.msra.mxu0 0.0
      %710 = vmatprep.subr.mxu0 0.0
      %711 = vmatpush1.msra.mxu0 0.0
      %712 = vmatprep.subr.mxu0 0.0
      %713 = vmatpush1.msra.mxu0 0.0
      %714 = vmatprep.subr.mxu0 0.0
      %715 = vmatpush1.msra.mxu0 0.0
      %716 = vmatprep.subr.mxu0 0.0
      %717 = vmatpush1.msra.mxu0 0.0
      %718 = vmatprep.subr.mxu0 0.0
      %719 = vmatpush1.msra.mxu0 0.0
      %720 = vmatprep.subr.mxu0 0.0
      %721 = vmatpush1.msra.mxu0 0.0
      %722 = vmatprep.subr.mxu0 0.0
      %723 = vmatpush1.msra.mxu0 0.0
      %724 = vmatprep.subr.mxu0 0.0
      %725 = vmatpush1.msra.mxu0 0.0
      %726 = vmatprep.subr.mxu0 0.0
      %727 = vmatpush1.msra.mxu0 0.0
      %728 = vmatprep.subr.mxu0 0.0
      %729 = vmatpush1.msra.mxu0 0.0
      %730 = vmatprep.subr.mxu0 0.0
      %731 = vmatpush1.msra.mxu0 0.0
      %732 = vmatprep.subr.mxu0 0.0
      %733 = vmatpush1.msra.mxu0 0.0
      %734 = vmatprep.subr.mxu0 0.0
      %735 = vmatpush1.msra.mxu0 0.0
      %736 = vmatprep.mubr.f32.mxu0 0.0
      %737 = vmatmul.mubr.f32.gmra.mrb[0].mxu0 %v577
      %v738 = vpop.f32.mrb[0].mxu0
      %v739 = vadd.f32 %v574, %v738
      %v740 = vpop.f32.mrb[0].mxu0
      %741 = vmatprep.mubr.f32.mxu0 0.0
      %742 = vmatmul.mubr.f32.gmra.mrb[0].mxu0 %v580
      %v743 = vpop.f32.mrb[0].mxu0
      %v744 = vadd.f32 %v574, %v743
      %v745 = vpop.f32.mrb[0].mxu0
      %746 = vmatprep.mubr.f32.mxu0 0.0
      %747 = vmatmul.mubr.f32.gmra.mrb[0].mxu0 %v583
      %v748 = vpop.f32.mrb[0].mxu0
      %v749 = vadd.f32 %v574, %v748
      %v750 = vpop.f32.mrb[0].mxu0
      %751 = vmatprep.mubr.f32.mxu0 0.0
      %752 = vmatmul.mubr.f32.gmra.mrb[0].mxu0 %v586
      %v753 = vpop.f32.mrb[0].mxu0
      %v754 = vadd.f32 %v574, %v753
      %v755 = vpop.f32.mrb[0].mxu0
      %756 = vmatprep.mubr.f32.mxu0 0.0
      %757 = vmatmul.mubr.f32.gmra.mrb[0].mxu0 %v589
      %v758 = vpop.f32.mrb[0].mxu0
      %v759 = vadd.f32 %v574, %v758
      %v760 = vpop.f32.mrb[0].mxu0
      %761 = vmatprep.mubr.f32.mxu0 0.0
      %762 = vmatmul.mubr.f32.gmra.mrb[0].mxu0 %v592
      %v763 = vpop.f32.mrb[0].mxu0
      %v764 = vadd.f32 %v574, %v763
      %v765 = vpop.f32.mrb[0].mxu0
      %766 = vmatprep.mubr.f32.mxu0 0.0
      %767 = vmatmul.mubr.f32.gmra.mrb[0].mxu0 %v595
      %v768 = vpop.f32.mrb[0].mxu0
      %v769 = vadd.f32 %v574, %v768
      %v770 = vpop.f32.mrb[0].mxu0
      %771 = vmatprep.mubr.f32.mxu0 0.0
      %772 = vmatmul.mubr.f32.gmra.mrb[0].mxu0 %v598
      %v773 = vpop.f32.mrb[0].mxu0
      %v774 = vadd.f32 %v574, %v773
      %v775 = vpop.f32.mrb[0].mxu0
      %776 = vmatprep.mubr.f32.mxu0 0.0
      %777 = vmatmul.mubr.f32.gmra.mrb[0].mxu0 %v601
      %v778 = vpop.f32.mrb[0].mxu0
      %v779 = vadd.f32 %v574, %v778
      %v780 = vpop.f32.mrb[0].mxu0
      %781 = vmatprep.mubr.f32.mxu0 0.0
      %782 = vmatmul.mubr.f32.gmra.mrb[0].mxu0 %v604
      %v783 = vpop.f32.mrb[0].mxu0
      %v784 = vadd.f32 %v574, %v783
      %v785 = vpop.f32.mrb[0].mxu0
      %786 = vmatprep.mubr.f32.mxu0 0.0
      %787 = vmatmul.mubr.f32.gmra.mrb[0].mxu0 %v607
      %v788 = vpop.f32.mrb[0].mxu0
      %v789 = vadd.f32 %v574, %v788
      %v790 = vpop.f32.mrb[0].mxu0
      %791 = vmatprep.mubr.f32.mxu0 0.0
      %792 = vmatmul.mubr.f32.gmra.mrb[0].mxu0 %v610
      %v793 = vpop.f32.mrb[0].mxu0
      %v794 = vadd.f32 %v574, %v793
      %v795 = vpop.f32.mrb[0].mxu0
      %796 = vmatprep.mubr.f32.mxu0 0.0
      %797 = vmatmul.mubr.f32.gmra.mrb[0].mxu0 %v613
      %v798 = vpop.f32.mrb[0].mxu0
      %v799 = vadd.f32 %v574, %v798
      %v800 = vpop.f32.mrb[0].mxu0
      %801 = vmatprep.mubr.f32.mxu0 0.0
      %802 = vmatmul.mubr.f32.gmra.mrb[0].mxu0 %v616
      %v803 = vpop.f32.mrb[0].mxu0
      %v804 = vadd.f32 %v574, %v803
      %v805 = vpop.f32.mrb[0].mxu0
      %806 = vmatprep.mubr.f32.mxu0 0.0
      %807 = vmatmul.mubr.f32.gmra.mrb[0].mxu0 %v619
      %v808 = vpop.f32.mrb[0].mxu0
      %v809 = vadd.f32 %v574, %v808
      %v810 = vpop.f32.mrb[0].mxu0
      %811 = vmatprep.mubr.f32.mxu0 0.0
      %812 = vmatmul.mubr.f32.gmra.mrb[0].mxu0 %v622
      %v813 = vpop.f32.mrb[0].mxu0
      %v814 = vadd.f32 %v574, %v813
      %v815 = vpop.f32.mrb[0].mxu0
      %816 = vmatprep.mubr.f32.mxu0 0.0
      %817 = vmatmul.mubr.f32.gmra.mrb[0].mxu0 %v625
      %v818 = vpop.f32.mrb[0].mxu0
      %v819 = vadd.f32 %v574, %v818
      %v820 = vpop.f32.mrb[0].mxu0
      %821 = vmatprep.mubr.f32.mxu0 0.0
      %822 = vmatmul.mubr.f32.gmra.mrb[0].mxu0 %v628
      %v823 = vpop.f32.mrb[0].mxu0
      %v824 = vadd.f32 %v574, %v823
      %v825 = vpop.f32.mrb[0].mxu0
      %826 = vmatprep.mubr.f32.mxu0 0.0
      %827 = vmatmul.mubr.f32.gmra.mrb[0].mxu0 %v631
      %v828 = vpop.f32.mrb[0].mxu0
      %v829 = vadd.f32 %v574, %v828
      %v830 = vpop.f32.mrb[0].mxu0
      %831 = vmatprep.mubr.f32.mxu0 0.0
      %832 = vmatmul.mubr.f32.gmra.mrb[0].mxu0 %v634
      %v833 = vpop.f32.mrb[0].mxu0
      %v834 = vadd.f32 %v574, %v833
      %v835 = vpop.f32.mrb[0].mxu0
      %836 = vmatprep.mubr.f32.mxu0 0.0
      %837 = vmatmul.mubr.f32.gmra.mrb[0].mxu0 %v637
      %v838 = vpop.f32.mrb[0].mxu0
      %v839 = vadd.f32 %v574, %v838
      %v840 = vpop.f32.mrb[0].mxu0
      %841 = vmatprep.mubr.f32.mxu0 0.0
      %842 = vmatmul.mubr.f32.gmra.mrb[0].mxu0 %v640
      %v843 = vpop.f32.mrb[0].mxu0
      %v844 = vadd.f32 %v574, %v843
      %v845 = vpop.f32.mrb[0].mxu0
      %846 = vmatprep.mubr.f32.mxu0 0.0
      %847 = vmatmul.mubr.f32.gmra.mrb[0].mxu0 %v643
      %v848 = vpop.f32.mrb[0].mxu0
      %v849 = vadd.f32 %v574, %v848
      %v850 = vpop.f32.mrb[0].mxu0
      %851 = vmatprep.mubr.f32.mxu0 0.0
      %852 = vmatmul.mubr.f32.gmra.mrb[0].mxu0 %v646
      %v853 = vpop.f32.mrb[0].mxu0
      %v854 = vadd.f32 %v574, %v853
      %v855 = vpop.f32.mrb[0].mxu0
      %856 = vmatprep.mubr.f32.mxu0 0.0
      %857 = vmatmul.mubr.f32.gmra.mrb[0].mxu0 %v649
      %v858 = vpop.f32.mrb[0].mxu0
      %v859 = vadd.f32 %v574, %v858
      %v860 = vpop.f32.mrb[0].mxu0
      %861 = vmatprep.mubr.f32.mxu0 0.0
      %862 = vmatmul.mubr.f32.gmra.mrb[0].mxu0 %v652
      %v863 = vpop.f32.mrb[0].mxu0
      %v864 = vadd.f32 %v574, %v863
      %v865 = vpop.f32.mrb[0].mxu0
      %866 = vmatprep.mubr.f32.mxu0 0.0
      %867 = vmatmul.mubr.f32.gmra.mrb[0].mxu0 %v655
      %v868 = vpop.f32.mrb[0].mxu0
      %v869 = vadd.f32 %v574, %v868
      %v870 = vpop.f32.mrb[0].mxu0
      %871 = vmatprep.mubr.f32.mxu0 0.0
      %872 = vmatmul.mubr.f32.gmra.mrb[0].mxu0 %v658
      %v873 = vpop.f32.mrb[0].mxu0
      %v874 = vadd.f32 %v574, %v873
      %v875 = vpop.f32.mrb[0].mxu0
      %876 = vmatprep.mubr.f32.mxu0 0.0
      %877 = vmatmul.mubr.f32.gmra.mrb[0].mxu0 %v661
      %v878 = vpop.f32.mrb[0].mxu0
      %v879 = vadd.f32 %v574, %v878
      %v880 = vpop.f32.mrb[0].mxu0
      %881 = vmatprep.mubr.f32.mxu0 0.0
      %882 = vmatmul.mubr.f32.gmra.mrb[0].mxu0 %v664
      %v883 = vpop.f32.mrb[0].mxu0
      %v884 = vadd.f32 %v574, %v883
      %v885 = vpop.f32.mrb[0].mxu0
      %886 = vmatprep.mubr.f32.mxu0 0.0
      %887 = vmatmul.mubr.f32.gmra.mrb[0].mxu0 %v667
      %v888 = vpop.f32.mrb[0].mxu0
      %v889 = vadd.f32 %v574, %v888
      %v890 = vpop.f32.mrb[0].mxu0
      %891 = vmatprep.mubr.f32.mxu0 0.0
      %892 = vmatmul.mubr.f32.gmra.mrb[0].mxu0 %v670
      %v893 = vpop.f32.mrb[0].mxu0
      %v894 = vadd.f32 %v574, %v893
      %v895 = vpop.f32.mrb[0].mxu0
      %896 = vdwg.mxu0
      %v897 = vmax.f32 %v739, 0.0
      %v898 = vmax.f32 %v744, 0.0
      %v899 = vmax.f32 %v749, 0.0
      %v900 = vmax.f32 %v754, 0.0
      %v901 = vmax.f32 %v759, 0.0
      %v902 = vmax.f32 %v764, 0.0
      %v903 = vmax.f32 %v769, 0.0
      %v904 = vmax.f32 %v774, 0.0
      %v905 = vmax.f32 %v779, 0.0
      %v906 = vmax.f32 %v784, 0.0
      %v907 = vmax.f32 %v789, 0.0
      %v908 = vmax.f32 %v794, 0.0
      %v909 = vmax.f32 %v799, 0.0
      %v910 = vmax.f32 %v804, 0.0
      %v911 = vmax.f32 %v809, 0.0
      %v912 = vmax.f32 %v814, 0.0
      %v913 = vmax.f32 %v819, 0.0
      %v914 = vmax.f32 %v824, 0.0
      %v915 = vmax.f32 %v829, 0.0
      %v916 = vmax.f32 %v834, 0.0
      %v917 = vmax.f32 %v839, 0.0
      %v918 = vmax.f32 %v844, 0.0
      %v919 = vmax.f32 %v849, 0.0
      %v920 = vmax.f32 %v854, 0.0
      %v921 = vmax.f32 %v859, 0.0
      %v922 = vmax.f32 %v864, 0.0
      %v923 = vmax.f32 %v869, 0.0
      %v924 = vmax.f32 %v874, 0.0
      %v925 = vmax.f32 %v879, 0.0
      %v926 = vmax.f32 %v884, 0.0
      %v927 = vmax.f32 %v889, 0.0
      %v928 = vmax.f32 %v894, 0.0
      %v929 = vld [vmem:[%s1 + $0x28] sm:$0xff]
      %v930 = vld [vmem:[%s1 + $0x30] sm:$0xff]
      %v931 = vld [vmem:[%s1 + $0x38] sm:$0xff]
      %v932 = vld [vmem:[%s1 + $0x40] sm:$0xff]
      %v933 = vld [vmem:[%s2 + $0x2] sm:$0x1]
      %v934 = vlaneseq
      %v935 = vshrl.u32 %v934, 7
      %v936 = vsub.s32 0, %v935
      %v937 = vrot.slane %v933, %v936
      %v939 = vsel %vm575, %v897, 0
      %v942 = vsel %vm575, %v898, 0
      %v945 = vsel %vm575, %v899, 0
      %v948 = vsel %vm575, %v900, 0
      %v951 = vsel %vm575, %v901, 0
      %v954 = vsel %vm575, %v902, 0
      %v957 = vsel %vm575, %v903, 0
      %v960 = vsel %vm575, %v904, 0
      %v963 = vsel %vm575, %v905, 0
      %v966 = vsel %vm575, %v906, 0
      %v969 = vsel %vm575, %v907, 0
      %v972 = vsel %vm575, %v908, 0
      %v975 = vsel %vm575, %v909, 0
      %v978 = vsel %vm575, %v910, 0
      %v981 = vsel %vm575, %v911, 0
      %v984 = vsel %vm575, %v912, 0
      %v987 = vsel %vm575, %v913, 0
      %v990 = vsel %vm575, %v914, 0
      %v993 = vsel %vm575, %v915, 0
      %v996 = vsel %vm575, %v916, 0
      %v999 = vsel %vm575, %v917, 0
      %v1002 = vsel %vm575, %v918, 0
      %v1005 = vsel %vm575, %v919, 0
      %v1008 = vsel %vm575, %v920, 0
      %v1011 = vsel %vm575, %v921, 0
      %v1014 = vsel %vm575, %v922, 0
      %v1017 = vsel %vm575, %v923, 0
      %v1020 = vsel %vm575, %v924, 0
      %v1023 = vsel %vm575, %v925, 0
      %v1026 = vsel %vm575, %v926, 0
      %v1029 = vsel %vm575, %v927, 0
      %v1032 = vsel %vm575, %v928, 0
      %1034 = vmatprep.subr.mxu0 0.0
      %1035 = vmatpush1.msra.mxu0 %v929
      %1036 = vmatprep.subr.mxu0 0.0
      %1037 = vmatpush1.msra.mxu0 %v930
      %1038 = vmatprep.subr.mxu0 0.0
      %1039 = vmatpush1.msra.mxu0 %v931
      %1040 = vmatprep.subr.mxu0 0.0
      %1041 = vmatpush1.msra.mxu0 %v932
      %1042 = vmatprep.subr.mxu0 0.0
      %1043 = vmatpush1.msra.mxu0 0.0
      %1044 = vmatprep.subr.mxu0 0.0
      %1045 = vmatpush1.msra.mxu0 0.0
      %1046 = vmatprep.subr.mxu0 0.0
      %1047 = vmatpush1.msra.mxu0 0.0
      %1048 = vmatprep.subr.mxu0 0.0
      %1049 = vmatpush1.msra.mxu0 0.0
      %1050 = vmatprep.subr.mxu0 0.0
      %1051 = vmatpush1.msra.mxu0 0.0
      %1052 = vmatprep.subr.mxu0 0.0
      %1053 = vmatpush1.msra.mxu0 0.0
      %1054 = vmatprep.subr.mxu0 0.0
      %1055 = vmatpush1.msra.mxu0 0.0
      %1056 = vmatprep.subr.mxu0 0.0
      %1057 = vmatpush1.msra.mxu0 0.0
      %1058 = vmatprep.subr.mxu0 0.0
      %1059 = vmatpush1.msra.mxu0 0.0
      %1060 = vmatprep.subr.mxu0 0.0
      %1061 = vmatpush1.msra.mxu0 0.0
      %1062 = vmatprep.subr.mxu0 0.0
      %1063 = vmatpush1.msra.mxu0 0.0
      %1064 = vmatprep.subr.mxu0 0.0
      %1065 = vmatpush1.msra.mxu0 0.0
      %1066 = vmatprep.subr.mxu0 0.0
      %1067 = vmatpush1.msra.mxu0 0.0
      %1068 = vmatprep.subr.mxu0 0.0
      %1069 = vmatpush1.msra.mxu0 0.0
      %1070 = vmatprep.subr.mxu0 0.0
      %1071 = vmatpush1.msra.mxu0 0.0
      %1072 = vmatprep.subr.mxu0 0.0
      %1073 = vmatpush1.msra.mxu0 0.0
      %1074 = vmatprep.subr.mxu0 0.0
      %1075 = vmatpush1.msra.mxu0 0.0
      %1076 = vmatprep.subr.mxu0 0.0
      %1077 = vmatpush1.msra.mxu0 0.0
      %1078 = vmatprep.subr.mxu0 0.0
      %1079 = vmatpush1.msra.mxu0 0.0
      %1080 = vmatprep.subr.mxu0 0.0
      %1081 = vmatpush1.msra.mxu0 0.0
      %1082 = vmatprep.subr.mxu0 0.0
      %1083 = vmatpush1.msra.mxu0 0.0
      %1084 = vmatprep.subr.mxu0 0.0
      %1085 = vmatpush1.msra.mxu0 0.0
      %1086 = vmatprep.subr.mxu0 0.0
      %1087 = vmatpush1.msra.mxu0 0.0
      %1088 = vmatprep.subr.mxu0 0.0
      %1089 = vmatpush1.msra.mxu0 0.0
      %1090 = vmatprep.subr.mxu0 0.0
      %1091 = vmatpush1.msra.mxu0 0.0
      %1092 = vmatprep.subr.mxu0 0.0
      %1093 = vmatpush1.msra.mxu0 0.0
      %1094 = vmatprep.subr.mxu0 0.0
      %1095 = vmatpush1.msra.mxu0 0.0
      %1096 = vmatprep.subr.mxu0 0.0
      %1097 = vmatpush1.msra.mxu0 0.0
      %1098 = vmatprep.mubr.f32.mxu0 0.0
      %1099 = vmatmul.mubr.f32.gmra.mrb[0].mxu0 %v939
      %v1100 = vpop.f32.mrb[0].mxu0
      %v1101 = vadd.f32 %v937, %v1100
      %v1102 = vpop.f32.mrb[0].mxu0
      %1103 = vmatprep.mubr.f32.mxu0 0.0
      %1104 = vmatmul.mubr.f32.gmra.mrb[0].mxu0 %v942
      %v1105 = vpop.f32.mrb[0].mxu0
      %v1106 = vadd.f32 %v937, %v1105
      %v1107 = vpop.f32.mrb[0].mxu0
      %1108 = vmatprep.mubr.f32.mxu0 0.0
      %1109 = vmatmul.mubr.f32.gmra.mrb[0].mxu0 %v945
      %v1110 = vpop.f32.mrb[0].mxu0
      %v1111 = vadd.f32 %v937, %v1110
      %v1112 = vpop.f32.mrb[0].mxu0
      %1113 = vmatprep.mubr.f32.mxu0 0.0
      %1114 = vmatmul.mubr.f32.gmra.mrb[0].mxu0 %v948
      %v1115 = vpop.f32.mrb[0].mxu0
      %v1116 = vadd.f32 %v937, %v1115
      %v1117 = vpop.f32.mrb[0].mxu0
      %1118 = vmatprep.mubr.f32.mxu0 0.0
      %1119 = vmatmul.mubr.f32.gmra.mrb[0].mxu0 %v951
      %v1120 = vpop.f32.mrb[0].mxu0
      %v1121 = vadd.f32 %v937, %v1120
      %v1122 = vpop.f32.mrb[0].mxu0
      %1123 = vmatprep.mubr.f32.mxu0 0.0
      %1124 = vmatmul.mubr.f32.gmra.mrb[0].mxu0 %v954
      %v1125 = vpop.f32.mrb[0].mxu0
      %v1126 = vadd.f32 %v937, %v1125
      %v1127 = vpop.f32.mrb[0].mxu0
      %1128 = vmatprep.mubr.f32.mxu0 0.0
      %1129 = vmatmul.mubr.f32.gmra.mrb[0].mxu0 %v957
      %v1130 = vpop.f32.mrb[0].mxu0
      %v1131 = vadd.f32 %v937, %v1130
      %v1132 = vpop.f32.mrb[0].mxu0
      %1133 = vmatprep.mubr.f32.mxu0 0.0
      %1134 = vmatmul.mubr.f32.gmra.mrb[0].mxu0 %v960
      %v1135 = vpop.f32.mrb[0].mxu0
      %v1136 = vadd.f32 %v937, %v1135
      %v1137 = vpop.f32.mrb[0].mxu0
      %1138 = vmatprep.mubr.f32.mxu0 0.0
      %1139 = vmatmul.mubr.f32.gmra.mrb[0].mxu0 %v963
      %v1140 = vpop.f32.mrb[0].mxu0
      %v1141 = vadd.f32 %v937, %v1140
      %v1142 = vpop.f32.mrb[0].mxu0
      %1143 = vmatprep.mubr.f32.mxu0 0.0
      %1144 = vmatmul.mubr.f32.gmra.mrb[0].mxu0 %v966
      %v1145 = vpop.f32.mrb[0].mxu0
      %v1146 = vadd.f32 %v937, %v1145
      %v1147 = vpop.f32.mrb[0].mxu0
      %1148 = vmatprep.mubr.f32.mxu0 0.0
      %1149 = vmatmul.mubr.f32.gmra.mrb[0].mxu0 %v969
      %v1150 = vpop.f32.mrb[0].mxu0
      %v1151 = vadd.f32 %v937, %v1150
      %v1152 = vpop.f32.mrb[0].mxu0
      %1153 = vmatprep.mubr.f32.mxu0 0.0
      %1154 = vmatmul.mubr.f32.gmra.mrb[0].mxu0 %v972
      %v1155 = vpop.f32.mrb[0].mxu0
      %v1156 = vadd.f32 %v937, %v1155
      %v1157 = vpop.f32.mrb[0].mxu0
      %1158 = vmatprep.mubr.f32.mxu0 0.0
      %1159 = vmatmul.mubr.f32.gmra.mrb[0].mxu0 %v975
      %v1160 = vpop.f32.mrb[0].mxu0
      %v1161 = vadd.f32 %v937, %v1160
      %v1162 = vpop.f32.mrb[0].mxu0
      %1163 = vmatprep.mubr.f32.mxu0 0.0
      %1164 = vmatmul.mubr.f32.gmra.mrb[0].mxu0 %v978
      %v1165 = vpop.f32.mrb[0].mxu0
      %v1166 = vadd.f32 %v937, %v1165
      %v1167 = vpop.f32.mrb[0].mxu0
      %1168 = vmatprep.mubr.f32.mxu0 0.0
      %1169 = vmatmul.mubr.f32.gmra.mrb[0].mxu0 %v981
      %v1170 = vpop.f32.mrb[0].mxu0
      %v1171 = vadd.f32 %v937, %v1170
      %v1172 = vpop.f32.mrb[0].mxu0
      %1173 = vmatprep.mubr.f32.mxu0 0.0
      %1174 = vmatmul.mubr.f32.gmra.mrb[0].mxu0 %v984
      %v1175 = vpop.f32.mrb[0].mxu0
      %v1176 = vadd.f32 %v937, %v1175
      %v1177 = vpop.f32.mrb[0].mxu0
      %1178 = vmatprep.mubr.f32.mxu0 0.0
      %1179 = vmatmul.mubr.f32.gmra.mrb[0].mxu0 %v987
      %v1180 = vpop.f32.mrb[0].mxu0
      %v1181 = vadd.f32 %v937, %v1180
      %v1182 = vpop.f32.mrb[0].mxu0
      %1183 = vmatprep.mubr.f32.mxu0 0.0
      %1184 = vmatmul.mubr.f32.gmra.mrb[0].mxu0 %v990
      %v1185 = vpop.f32.mrb[0].mxu0
      %v1186 = vadd.f32 %v937, %v1185
      %v1187 = vpop.f32.mrb[0].mxu0
      %1188 = vmatprep.mubr.f32.mxu0 0.0
      %1189 = vmatmul.mubr.f32.gmra.mrb[0].mxu0 %v993
      %v1190 = vpop.f32.mrb[0].mxu0
      %v1191 = vadd.f32 %v937, %v1190
      %v1192 = vpop.f32.mrb[0].mxu0
      %1193 = vmatprep.mubr.f32.mxu0 0.0
      %1194 = vmatmul.mubr.f32.gmra.mrb[0].mxu0 %v996
      %v1195 = vpop.f32.mrb[0].mxu0
      %v1196 = vadd.f32 %v937, %v1195
      %v1197 = vpop.f32.mrb[0].mxu0
      %1198 = vmatprep.mubr.f32.mxu0 0.0
      %1199 = vmatmul.mubr.f32.gmra.mrb[0].mxu0 %v999
      %v1200 = vpop.f32.mrb[0].mxu0
      %v1201 = vadd.f32 %v937, %v1200
      %v1202 = vpop.f32.mrb[0].mxu0
      %1203 = vmatprep.mubr.f32.mxu0 0.0
      %1204 = vmatmul.mubr.f32.gmra.mrb[0].mxu0 %v1002
      %v1205 = vpop.f32.mrb[0].mxu0
      %v1206 = vadd.f32 %v937, %v1205
      %v1207 = vpop.f32.mrb[0].mxu0
      %1208 = vmatprep.mubr.f32.mxu0 0.0
      %1209 = vmatmul.mubr.f32.gmra.mrb[0].mxu0 %v1005
      %v1210 = vpop.f32.mrb[0].mxu0
      %v1211 = vadd.f32 %v937, %v1210
      %v1212 = vpop.f32.mrb[0].mxu0
      %1213 = vmatprep.mubr.f32.mxu0 0.0
      %1214 = vmatmul.mubr.f32.gmra.mrb[0].mxu0 %v1008
      %v1215 = vpop.f32.mrb[0].mxu0
      %v1216 = vadd.f32 %v937, %v1215
      %v1217 = vpop.f32.mrb[0].mxu0
      %1218 = vmatprep.mubr.f32.mxu0 0.0
      %1219 = vmatmul.mubr.f32.gmra.mrb[0].mxu0 %v1011
      %v1220 = vpop.f32.mrb[0].mxu0
      %v1221 = vadd.f32 %v937, %v1220
      %v1222 = vpop.f32.mrb[0].mxu0
      %1223 = vmatprep.mubr.f32.mxu0 0.0
      %1224 = vmatmul.mubr.f32.gmra.mrb[0].mxu0 %v1014
      %v1225 = vpop.f32.mrb[0].mxu0
      %v1226 = vadd.f32 %v937, %v1225
      %v1227 = vpop.f32.mrb[0].mxu0
      %1228 = vmatprep.mubr.f32.mxu0 0.0
      %1229 = vmatmul.mubr.f32.gmra.mrb[0].mxu0 %v1017
      %v1230 = vpop.f32.mrb[0].mxu0
      %v1231 = vadd.f32 %v937, %v1230
      %v1232 = vpop.f32.mrb[0].mxu0
      %1233 = vmatprep.mubr.f32.mxu0 0.0
      %1234 = vmatmul.mubr.f32.gmra.mrb[0].mxu0 %v1020
      %v1235 = vpop.f32.mrb[0].mxu0
      %v1236 = vadd.f32 %v937, %v1235
      %v1237 = vpop.f32.mrb[0].mxu0
      %1238 = vmatprep.mubr.f32.mxu0 0.0
      %1239 = vmatmul.mubr.f32.gmra.mrb[0].mxu0 %v1023
      %v1240 = vpop.f32.mrb[0].mxu0
      %v1241 = vadd.f32 %v937, %v1240
      %v1242 = vpop.f32.mrb[0].mxu0
      %1243 = vmatprep.mubr.f32.mxu0 0.0
      %1244 = vmatmul.mubr.f32.gmra.mrb[0].mxu0 %v1026
      %v1245 = vpop.f32.mrb[0].mxu0
      %v1246 = vadd.f32 %v937, %v1245
      %v1247 = vpop.f32.mrb[0].mxu0
      %1248 = vmatprep.mubr.f32.mxu0 0.0
      %1249 = vmatmul.mubr.f32.gmra.mrb[0].mxu0 %v1029
      %v1250 = vpop.f32.mrb[0].mxu0
      %v1251 = vadd.f32 %v937, %v1250
      %v1252 = vpop.f32.mrb[0].mxu0
      %1253 = vmatprep.mubr.f32.mxu0 0.0
      %1254 = vmatmul.mubr.f32.gmra.mrb[0].mxu0 %v1032
      %v1255 = vpop.f32.mrb[0].mxu0
      %v1256 = vadd.f32 %v937, %v1255
      %v1257 = vpop.f32.mrb[0].mxu0
      %1258 = vdwg.mxu0
      %v1259 = vmax.f32 %v1101, 0.0
      %v1260 = vmax.f32 %v1106, 0.0
      %v1261 = vmax.f32 %v1111, 0.0
      %v1262 = vmax.f32 %v1116, 0.0
      %v1263 = vmax.f32 %v1121, 0.0
      %v1264 = vmax.f32 %v1126, 0.0
      %v1265 = vmax.f32 %v1131, 0.0
      %v1266 = vmax.f32 %v1136, 0.0
      %v1267 = vmax.f32 %v1141, 0.0
      %v1268 = vmax.f32 %v1146, 0.0
      %v1269 = vmax.f32 %v1151, 0.0
      %v1270 = vmax.f32 %v1156, 0.0
      %v1271 = vmax.f32 %v1161, 0.0
      %v1272 = vmax.f32 %v1166, 0.0
      %v1273 = vmax.f32 %v1171, 0.0
      %v1274 = vmax.f32 %v1176, 0.0
      %v1275 = vmax.f32 %v1181, 0.0
      %v1276 = vmax.f32 %v1186, 0.0
      %v1277 = vmax.f32 %v1191, 0.0
      %v1278 = vmax.f32 %v1196, 0.0
      %v1279 = vmax.f32 %v1201, 0.0
      %v1280 = vmax.f32 %v1206, 0.0
      %v1281 = vmax.f32 %v1211, 0.0
      %v1282 = vmax.f32 %v1216, 0.0
      %v1283 = vmax.f32 %v1221, 0.0
      %v1284 = vmax.f32 %v1226, 0.0
      %v1285 = vmax.f32 %v1231, 0.0
      %v1286 = vmax.f32 %v1236, 0.0
      %v1287 = vmax.f32 %v1241, 0.0
      %v1288 = vmax.f32 %v1246, 0.0
      %v1289 = vmax.f32 %v1251, 0.0
      %v1290 = vmax.f32 %v1256, 0.0
      %v1291 = vld [vmem:[%s1 + $0x48] sm:$0xff]
      %v1292 = vld [vmem:[%s1 + $0x50] sm:$0xff]
      %v1293 = vld [vmem:[%s1 + $0x58] sm:$0xff]
      %v1294 = vld [vmem:[%s1 + $0x60] sm:$0xff]
      %v1295 = vld [vmem:[%s2 + $0x3] sm:$0x1]
      %v1296 = vlaneseq
      %v1297 = vshrl.u32 %v1296, 7
      %v1298 = vsub.s32 0, %v1297
      %v1299 = vrot.slane %v1295, %v1298
      %v1301 = vsel %vm575, %v1259, 0
      %v1304 = vsel %vm575, %v1260, 0
      %v1307 = vsel %vm575, %v1261, 0
      %v1310 = vsel %vm575, %v1262, 0
      %v1313 = vsel %vm575, %v1263, 0
      %v1316 = vsel %vm575, %v1264, 0
      %v1319 = vsel %vm575, %v1265, 0
      %v1322 = vsel %vm575, %v1266, 0
      %v1325 = vsel %vm575, %v1267, 0
      %v1328 = vsel %vm575, %v1268, 0
      %v1331 = vsel %vm575, %v1269, 0
      %v1334 = vsel %vm575, %v1270, 0
      %v1337 = vsel %vm575, %v1271, 0
      %v1340 = vsel %vm575, %v1272, 0
      %v1343 = vsel %vm575, %v1273, 0
      %v1346 = vsel %vm575, %v1274, 0
      %v1349 = vsel %vm575, %v1275, 0
      %v1352 = vsel %vm575, %v1276, 0
      %v1355 = vsel %vm575, %v1277, 0
      %v1358 = vsel %vm575, %v1278, 0
      %v1361 = vsel %vm575, %v1279, 0
      %v1364 = vsel %vm575, %v1280, 0
      %v1367 = vsel %vm575, %v1281, 0
      %v1370 = vsel %vm575, %v1282, 0
      %v1373 = vsel %vm575, %v1283, 0
      %v1376 = vsel %vm575, %v1284, 0
      %v1379 = vsel %vm575, %v1285, 0
      %v1382 = vsel %vm575, %v1286, 0
      %v1385 = vsel %vm575, %v1287, 0
      %v1388 = vsel %vm575, %v1288, 0
      %v1391 = vsel %vm575, %v1289, 0
      %v1394 = vsel %vm575, %v1290, 0
      %1396 = vmatprep.subr.mxu0 0.0
      %1397 = vmatpush1.msra.mxu0 %v1291
      %1398 = vmatprep.subr.mxu0 0.0
      %1399 = vmatpush1.msra.mxu0 %v1292
      %1400 = vmatprep.subr.mxu0 0.0
      %1401 = vmatpush1.msra.mxu0 %v1293
      %1402 = vmatprep.subr.mxu0 0.0
      %1403 = vmatpush1.msra.mxu0 %v1294
      %1404 = vmatprep.subr.mxu0 0.0
      %1405 = vmatpush1.msra.mxu0 0.0
      %1406 = vmatprep.subr.mxu0 0.0
      %1407 = vmatpush1.msra.mxu0 0.0
      %1408 = vmatprep.subr.mxu0 0.0
      %1409 = vmatpush1.msra.mxu0 0.0
      %1410 = vmatprep.subr.mxu0 0.0
      %1411 = vmatpush1.msra.mxu0 0.0
      %1412 = vmatprep.subr.mxu0 0.0
      %1413 = vmatpush1.msra.mxu0 0.0
      %1414 = vmatprep.subr.mxu0 0.0
      %1415 = vmatpush1.msra.mxu0 0.0
      %1416 = vmatprep.subr.mxu0 0.0
      %1417 = vmatpush1.msra.mxu0 0.0
      %1418 = vmatprep.subr.mxu0 0.0
      %1419 = vmatpush1.msra.mxu0 0.0
      %1420 = vmatprep.subr.mxu0 0.0
      %1421 = vmatpush1.msra.mxu0 0.0
      %1422 = vmatprep.subr.mxu0 0.0
      %1423 = vmatpush1.msra.mxu0 0.0
      %1424 = vmatprep.subr.mxu0 0.0
      %1425 = vmatpush1.msra.mxu0 0.0
      %1426 = vmatprep.subr.mxu0 0.0
      %1427 = vmatpush1.msra.mxu0 0.0
      %1428 = vmatprep.subr.mxu0 0.0
      %1429 = vmatpush1.msra.mxu0 0.0
      %1430 = vmatprep.subr.mxu0 0.0
      %1431 = vmatpush1.msra.mxu0 0.0
      %1432 = vmatprep.subr.mxu0 0.0
      %1433 = vmatpush1.msra.mxu0 0.0
      %1434 = vmatprep.subr.mxu0 0.0
      %1435 = vmatpush1.msra.mxu0 0.0
      %1436 = vmatprep.subr.mxu0 0.0
      %1437 = vmatpush1.msra.mxu0 0.0
      %1438 = vmatprep.subr.mxu0 0.0
      %1439 = vmatpush1.msra.mxu0 0.0
      %1440 = vmatprep.subr.mxu0 0.0
      %1441 = vmatpush1.msra.mxu0 0.0
      %1442 = vmatprep.subr.mxu0 0.0
      %1443 = vmatpush1.msra.mxu0 0.0
      %1444 = vmatprep.subr.mxu0 0.0
      %1445 = vmatpush1.msra.mxu0 0.0
      %1446 = vmatprep.subr.mxu0 0.0
      %1447 = vmatpush1.msra.mxu0 0.0
      %1448 = vmatprep.subr.mxu0 0.0
      %1449 = vmatpush1.msra.mxu0 0.0
      %1450 = vmatprep.subr.mxu0 0.0
      %1451 = vmatpush1.msra.mxu0 0.0
      %1452 = vmatprep.subr.mxu0 0.0
      %1453 = vmatpush1.msra.mxu0 0.0
      %1454 = vmatprep.subr.mxu0 0.0
      %1455 = vmatpush1.msra.mxu0 0.0
      %1456 = vmatprep.subr.mxu0 0.0
      %1457 = vmatpush1.msra.mxu0 0.0
      %1458 = vmatprep.subr.mxu0 0.0
      %1459 = vmatpush1.msra.mxu0 0.0
      %1460 = vmatprep.mubr.f32.mxu0 0.0
      %1461 = vmatmul.mubr.f32.gmra.mrb[0].mxu0 %v1301
      %v1462 = vpop.f32.mrb[0].mxu0
      %v1463 = vadd.f32 %v1299, %v1462
      %v1464 = vpop.f32.mrb[0].mxu0
      %1465 = vmatprep.mubr.f32.mxu0 0.0
      %1466 = vmatmul.mubr.f32.gmra.mrb[0].mxu0 %v1304
      %v1467 = vpop.f32.mrb[0].mxu0
      %v1468 = vadd.f32 %v1299, %v1467
      %v1469 = vpop.f32.mrb[0].mxu0
      %1470 = vmatprep.mubr.f32.mxu0 0.0
      %1471 = vmatmul.mubr.f32.gmra.mrb[0].mxu0 %v1307
      %v1472 = vpop.f32.mrb[0].mxu0
      %v1473 = vadd.f32 %v1299, %v1472
      %v1474 = vpop.f32.mrb[0].mxu0
      %1475 = vmatprep.mubr.f32.mxu0 0.0
      %1476 = vmatmul.mubr.f32.gmra.mrb[0].mxu0 %v1310
      %v1477 = vpop.f32.mrb[0].mxu0
      %v1478 = vadd.f32 %v1299, %v1477
      %v1479 = vpop.f32.mrb[0].mxu0
      %1480 = vmatprep.mubr.f32.mxu0 0.0
      %1481 = vmatmul.mubr.f32.gmra.mrb[0].mxu0 %v1313
      %v1482 = vpop.f32.mrb[0].mxu0
      %v1483 = vadd.f32 %v1299, %v1482
      %v1484 = vpop.f32.mrb[0].mxu0
      %1485 = vmatprep.mubr.f32.mxu0 0.0
      %1486 = vmatmul.mubr.f32.gmra.mrb[0].mxu0 %v1316
      %v1487 = vpop.f32.mrb[0].mxu0
      %v1488 = vadd.f32 %v1299, %v1487
      %v1489 = vpop.f32.mrb[0].mxu0
      %1490 = vmatprep.mubr.f32.mxu0 0.0
      %1491 = vmatmul.mubr.f32.gmra.mrb[0].mxu0 %v1319
      %v1492 = vpop.f32.mrb[0].mxu0
      %v1493 = vadd.f32 %v1299, %v1492
      %v1494 = vpop.f32.mrb[0].mxu0
      %1495 = vmatprep.mubr.f32.mxu0 0.0
      %1496 = vmatmul.mubr.f32.gmra.mrb[0].mxu0 %v1322
      %v1497 = vpop.f32.mrb[0].mxu0
      %v1498 = vadd.f32 %v1299, %v1497
      %v1499 = vpop.f32.mrb[0].mxu0
      %1500 = vmatprep.mubr.f32.mxu0 0.0
      %1501 = vmatmul.mubr.f32.gmra.mrb[0].mxu0 %v1325
      %v1502 = vpop.f32.mrb[0].mxu0
      %v1503 = vadd.f32 %v1299, %v1502
      %v1504 = vpop.f32.mrb[0].mxu0
      %1505 = vmatprep.mubr.f32.mxu0 0.0
      %1506 = vmatmul.mubr.f32.gmra.mrb[0].mxu0 %v1328
      %v1507 = vpop.f32.mrb[0].mxu0
      %v1508 = vadd.f32 %v1299, %v1507
      %v1509 = vpop.f32.mrb[0].mxu0
      %1510 = vmatprep.mubr.f32.mxu0 0.0
      %1511 = vmatmul.mubr.f32.gmra.mrb[0].mxu0 %v1331
      %v1512 = vpop.f32.mrb[0].mxu0
      %v1513 = vadd.f32 %v1299, %v1512
      %v1514 = vpop.f32.mrb[0].mxu0
      %1515 = vmatprep.mubr.f32.mxu0 0.0
      %1516 = vmatmul.mubr.f32.gmra.mrb[0].mxu0 %v1334
      %v1517 = vpop.f32.mrb[0].mxu0
      %v1518 = vadd.f32 %v1299, %v1517
      %v1519 = vpop.f32.mrb[0].mxu0
      %1520 = vmatprep.mubr.f32.mxu0 0.0
      %1521 = vmatmul.mubr.f32.gmra.mrb[0].mxu0 %v1337
      %v1522 = vpop.f32.mrb[0].mxu0
      %v1523 = vadd.f32 %v1299, %v1522
      %v1524 = vpop.f32.mrb[0].mxu0
      %1525 = vmatprep.mubr.f32.mxu0 0.0
      %1526 = vmatmul.mubr.f32.gmra.mrb[0].mxu0 %v1340
      %v1527 = vpop.f32.mrb[0].mxu0
      %v1528 = vadd.f32 %v1299, %v1527
      %v1529 = vpop.f32.mrb[0].mxu0
      %1530 = vmatprep.mubr.f32.mxu0 0.0
      %1531 = vmatmul.mubr.f32.gmra.mrb[0].mxu0 %v1343
      %v1532 = vpop.f32.mrb[0].mxu0
      %v1533 = vadd.f32 %v1299, %v1532
      %v1534 = vpop.f32.mrb[0].mxu0
      %1535 = vmatprep.mubr.f32.mxu0 0.0
      %1536 = vmatmul.mubr.f32.gmra.mrb[0].mxu0 %v1346
      %v1537 = vpop.f32.mrb[0].mxu0
      %v1538 = vadd.f32 %v1299, %v1537
      %v1539 = vpop.f32.mrb[0].mxu0
      %1540 = vmatprep.mubr.f32.mxu0 0.0
      %1541 = vmatmul.mubr.f32.gmra.mrb[0].mxu0 %v1349
      %v1542 = vpop.f32.mrb[0].mxu0
      %v1543 = vadd.f32 %v1299, %v1542
      %v1544 = vpop.f32.mrb[0].mxu0
      %1545 = vmatprep.mubr.f32.mxu0 0.0
      %1546 = vmatmul.mubr.f32.gmra.mrb[0].mxu0 %v1352
      %v1547 = vpop.f32.mrb[0].mxu0
      %v1548 = vadd.f32 %v1299, %v1547
      %v1549 = vpop.f32.mrb[0].mxu0
      %1550 = vmatprep.mubr.f32.mxu0 0.0
      %1551 = vmatmul.mubr.f32.gmra.mrb[0].mxu0 %v1355
      %v1552 = vpop.f32.mrb[0].mxu0
      %v1553 = vadd.f32 %v1299, %v1552
      %v1554 = vpop.f32.mrb[0].mxu0
      %1555 = vmatprep.mubr.f32.mxu0 0.0
      %1556 = vmatmul.mubr.f32.gmra.mrb[0].mxu0 %v1358
      %v1557 = vpop.f32.mrb[0].mxu0
      %v1558 = vadd.f32 %v1299, %v1557
      %v1559 = vpop.f32.mrb[0].mxu0
      %1560 = vmatprep.mubr.f32.mxu0 0.0
      %1561 = vmatmul.mubr.f32.gmra.mrb[0].mxu0 %v1361
      %v1562 = vpop.f32.mrb[0].mxu0
      %v1563 = vadd.f32 %v1299, %v1562
      %v1564 = vpop.f32.mrb[0].mxu0
      %1565 = vmatprep.mubr.f32.mxu0 0.0
      %1566 = vmatmul.mubr.f32.gmra.mrb[0].mxu0 %v1364
      %v1567 = vpop.f32.mrb[0].mxu0
      %v1568 = vadd.f32 %v1299, %v1567
      %v1569 = vpop.f32.mrb[0].mxu0
      %1570 = vmatprep.mubr.f32.mxu0 0.0
      %1571 = vmatmul.mubr.f32.gmra.mrb[0].mxu0 %v1367
      %v1572 = vpop.f32.mrb[0].mxu0
      %v1573 = vadd.f32 %v1299, %v1572
      %v1574 = vpop.f32.mrb[0].mxu0
      %1575 = vmatprep.mubr.f32.mxu0 0.0
      %1576 = vmatmul.mubr.f32.gmra.mrb[0].mxu0 %v1370
      %v1577 = vpop.f32.mrb[0].mxu0
      %v1578 = vadd.f32 %v1299, %v1577
      %v1579 = vpop.f32.mrb[0].mxu0
      %1580 = vmatprep.mubr.f32.mxu0 0.0
      %1581 = vmatmul.mubr.f32.gmra.mrb[0].mxu0 %v1373
      %v1582 = vpop.f32.mrb[0].mxu0
      %v1583 = vadd.f32 %v1299, %v1582
      %v1584 = vpop.f32.mrb[0].mxu0
      %1585 = vmatprep.mubr.f32.mxu0 0.0
      %1586 = vmatmul.mubr.f32.gmra.mrb[0].mxu0 %v1376
      %v1587 = vpop.f32.mrb[0].mxu0
      %v1588 = vadd.f32 %v1299, %v1587
      %v1589 = vpop.f32.mrb[0].mxu0
      %1590 = vmatprep.mubr.f32.mxu0 0.0
      %1591 = vmatmul.mubr.f32.gmra.mrb[0].mxu0 %v1379
      %v1592 = vpop.f32.mrb[0].mxu0
      %v1593 = vadd.f32 %v1299, %v1592
      %v1594 = vpop.f32.mrb[0].mxu0
      %1595 = vmatprep.mubr.f32.mxu0 0.0
      %1596 = vmatmul.mubr.f32.gmra.mrb[0].mxu0 %v1382
      %v1597 = vpop.f32.mrb[0].mxu0
      %v1598 = vadd.f32 %v1299, %v1597
      %v1599 = vpop.f32.mrb[0].mxu0
      %1600 = vmatprep.mubr.f32.mxu0 0.0
      %1601 = vmatmul.mubr.f32.gmra.mrb[0].mxu0 %v1385
      %v1602 = vpop.f32.mrb[0].mxu0
      %v1603 = vadd.f32 %v1299, %v1602
      %v1604 = vpop.f32.mrb[0].mxu0
      %1605 = vmatprep.mubr.f32.mxu0 0.0
      %1606 = vmatmul.mubr.f32.gmra.mrb[0].mxu0 %v1388
      %v1607 = vpop.f32.mrb[0].mxu0
      %v1608 = vadd.f32 %v1299, %v1607
      %v1609 = vpop.f32.mrb[0].mxu0
      %1610 = vmatprep.mubr.f32.mxu0 0.0
      %1611 = vmatmul.mubr.f32.gmra.mrb[0].mxu0 %v1391
      %v1612 = vpop.f32.mrb[0].mxu0
      %v1613 = vadd.f32 %v1299, %v1612
      %v1614 = vpop.f32.mrb[0].mxu0
      %1615 = vmatprep.mubr.f32.mxu0 0.0
      %1616 = vmatmul.mubr.f32.gmra.mrb[0].mxu0 %v1394
      %v1617 = vpop.f32.mrb[0].mxu0
      %v1618 = vadd.f32 %v1299, %v1617
      %v1619 = vpop.f32.mrb[0].mxu0
      %1620 = vdwg.mxu0
      %v1621 = vmax.f32 %v1463, 0.0
      %v1622 = vmax.f32 %v1468, 0.0
      %v1623 = vmax.f32 %v1473, 0.0
      %v1624 = vmax.f32 %v1478, 0.0
      %v1625 = vmax.f32 %v1483, 0.0
      %v1626 = vmax.f32 %v1488, 0.0
      %v1627 = vmax.f32 %v1493, 0.0
      %v1628 = vmax.f32 %v1498, 0.0
      %v1629 = vmax.f32 %v1503, 0.0
      %v1630 = vmax.f32 %v1508, 0.0
      %v1631 = vmax.f32 %v1513, 0.0
      %v1632 = vmax.f32 %v1518, 0.0
      %v1633 = vmax.f32 %v1523, 0.0
      %v1634 = vmax.f32 %v1528, 0.0
      %v1635 = vmax.f32 %v1533, 0.0
      %v1636 = vmax.f32 %v1538, 0.0
      %v1637 = vmax.f32 %v1543, 0.0
      %v1638 = vmax.f32 %v1548, 0.0
      %v1639 = vmax.f32 %v1553, 0.0
      %v1640 = vmax.f32 %v1558, 0.0
      %v1641 = vmax.f32 %v1563, 0.0
      %v1642 = vmax.f32 %v1568, 0.0
      %v1643 = vmax.f32 %v1573, 0.0
      %v1644 = vmax.f32 %v1578, 0.0
      %v1645 = vmax.f32 %v1583, 0.0
      %v1646 = vmax.f32 %v1588, 0.0
      %v1647 = vmax.f32 %v1593, 0.0
      %v1648 = vmax.f32 %v1598, 0.0
      %v1649 = vmax.f32 %v1603, 0.0
      %v1650 = vmax.f32 %v1608, 0.0
      %v1651 = vmax.f32 %v1613, 0.0
      %v1652 = vmax.f32 %v1618, 0.0
      %v1653 = vld [vmem:[%s1 + $0x68] sm:$0xff]
      %v1654 = vld [vmem:[%s1 + $0x70] sm:$0xff]
      %v1655 = vld [vmem:[%s1 + $0x78] sm:$0xff]
      %v1656 = vld [vmem:[%s1 + $0x80] sm:$0xff]
      %v1657 = vld [vmem:[%s2 + $0x4] sm:$0x1]
      %v1658 = vlaneseq
      %v1659 = vshrl.u32 %v1658, 7
      %v1660 = vsub.s32 0, %v1659
      %v1661 = vrot.slane %v1657, %v1660
      %v1663 = vsel %vm575, %v1621, 0
      %v1666 = vsel %vm575, %v1622, 0
      %v1669 = vsel %vm575, %v1623, 0
      %v1672 = vsel %vm575, %v1624, 0
      %v1675 = vsel %vm575, %v1625, 0
      %v1678 = vsel %vm575, %v1626, 0
      %v1681 = vsel %vm575, %v1627, 0
      %v1684 = vsel %vm575, %v1628, 0
      %v1687 = vsel %vm575, %v1629, 0
      %v1690 = vsel %vm575, %v1630, 0
      %v1693 = vsel %vm575, %v1631, 0
      %v1696 = vsel %vm575, %v1632, 0
      %v1699 = vsel %vm575, %v1633, 0
      %v1702 = vsel %vm575, %v1634, 0
      %v1705 = vsel %vm575, %v1635, 0
      %v1708 = vsel %vm575, %v1636, 0
      %v1711 = vsel %vm575, %v1637, 0
      %v1714 = vsel %vm575, %v1638, 0
      %v1717 = vsel %vm575, %v1639, 0
      %v1720 = vsel %vm575, %v1640, 0
      %v1723 = vsel %vm575, %v1641, 0
      %v1726 = vsel %vm575, %v1642, 0
      %v1729 = vsel %vm575, %v1643, 0
      %v1732 = vsel %vm575, %v1644, 0
      %v1735 = vsel %vm575, %v1645, 0
      %v1738 = vsel %vm575, %v1646, 0
      %v1741 = vsel %vm575, %v1647, 0
      %v1744 = vsel %vm575, %v1648, 0
      %v1747 = vsel %vm575, %v1649, 0
      %v1750 = vsel %vm575, %v1650, 0
      %v1753 = vsel %vm575, %v1651, 0
      %v1756 = vsel %vm575, %v1652, 0
      %1758 = vmatprep.subr.mxu0 0.0
      %1759 = vmatpush1.msra.mxu0 %v1653
      %1760 = vmatprep.subr.mxu0 0.0
      %1761 = vmatpush1.msra.mxu0 %v1654
      %1762 = vmatprep.subr.mxu0 0.0
      %1763 = vmatpush1.msra.mxu0 %v1655
      %1764 = vmatprep.subr.mxu0 0.0
      %1765 = vmatpush1.msra.mxu0 %v1656
      %1766 = vmatprep.subr.mxu0 0.0
      %1767 = vmatpush1.msra.mxu0 0.0
      %1768 = vmatprep.subr.mxu0 0.0
      %1769 = vmatpush1.msra.mxu0 0.0
      %1770 = vmatprep.subr.mxu0 0.0
      %1771 = vmatpush1.msra.mxu0 0.0
      %1772 = vmatprep.subr.mxu0 0.0
      %1773 = vmatpush1.msra.mxu0 0.0
      %1774 = vmatprep.subr.mxu0 0.0
      %1775 = vmatpush1.msra.mxu0 0.0
      %1776 = vmatprep.subr.mxu0 0.0
      %1777 = vmatpush1.msra.mxu0 0.0
      %1778 = vmatprep.subr.mxu0 0.0
      %1779 = vmatpush1.msra.mxu0 0.0
      %1780 = vmatprep.subr.mxu0 0.0
      %1781 = vmatpush1.msra.mxu0 0.0
      %1782 = vmatprep.subr.mxu0 0.0
      %1783 = vmatpush1.msra.mxu0 0.0
      %1784 = vmatprep.subr.mxu0 0.0
      %1785 = vmatpush1.msra.mxu0 0.0
      %1786 = vmatprep.subr.mxu0 0.0
      %1787 = vmatpush1.msra.mxu0 0.0
      %1788 = vmatprep.subr.mxu0 0.0
      %1789 = vmatpush1.msra.mxu0 0.0
      %1790 = vmatprep.subr.mxu0 0.0
      %1791 = vmatpush1.msra.mxu0 0.0
      %1792 = vmatprep.subr.mxu0 0.0
      %1793 = vmatpush1.msra.mxu0 0.0
      %1794 = vmatprep.subr.mxu0 0.0
      %1795 = vmatpush1.msra.mxu0 0.0
      %1796 = vmatprep.subr.mxu0 0.0
      %1797 = vmatpush1.msra.mxu0 0.0
      %1798 = vmatprep.subr.mxu0 0.0
      %1799 = vmatpush1.msra.mxu0 0.0
      %1800 = vmatprep.subr.mxu0 0.0
      %1801 = vmatpush1.msra.mxu0 0.0
      %1802 = vmatprep.subr.mxu0 0.0
      %1803 = vmatpush1.msra.mxu0 0.0
      %1804 = vmatprep.subr.mxu0 0.0
      %1805 = vmatpush1.msra.mxu0 0.0
      %1806 = vmatprep.subr.mxu0 0.0
      %1807 = vmatpush1.msra.mxu0 0.0
      %1808 = vmatprep.subr.mxu0 0.0
      %1809 = vmatpush1.msra.mxu0 0.0
      %1810 = vmatprep.subr.mxu0 0.0
      %1811 = vmatpush1.msra.mxu0 0.0
      %1812 = vmatprep.subr.mxu0 0.0
      %1813 = vmatpush1.msra.mxu0 0.0
      %1814 = vmatprep.subr.mxu0 0.0
      %1815 = vmatpush1.msra.mxu0 0.0
      %1816 = vmatprep.subr.mxu0 0.0
      %1817 = vmatpush1.msra.mxu0 0.0
      %1818 = vmatprep.subr.mxu0 0.0
      %1819 = vmatpush1.msra.mxu0 0.0
      %1820 = vmatprep.subr.mxu0 0.0
      %1821 = vmatpush1.msra.mxu0 0.0
      %1822 = vmatprep.mubr.f32.mxu0 0.0
      %1823 = vmatmul.mubr.f32.gmra.mrb[0].mxu0 %v1663
      %v1824 = vpop.f32.mrb[0].mxu0
      %v1825 = vadd.f32 %v1661, %v1824
      %v1826 = vpop.f32.mrb[0].mxu0
      %1827 = vmatprep.mubr.f32.mxu0 0.0
      %1828 = vmatmul.mubr.f32.gmra.mrb[0].mxu0 %v1666
      %v1829 = vpop.f32.mrb[0].mxu0
      %v1830 = vadd.f32 %v1661, %v1829
      %v1831 = vpop.f32.mrb[0].mxu0
      %1832 = vmatprep.mubr.f32.mxu0 0.0
      %1833 = vmatmul.mubr.f32.gmra.mrb[0].mxu0 %v1669
      %v1834 = vpop.f32.mrb[0].mxu0
      %v1835 = vadd.f32 %v1661, %v1834
      %v1836 = vpop.f32.mrb[0].mxu0
      %1837 = vmatprep.mubr.f32.mxu0 0.0
      %1838 = vmatmul.mubr.f32.gmra.mrb[0].mxu0 %v1672
      %v1839 = vpop.f32.mrb[0].mxu0
      %v1840 = vadd.f32 %v1661, %v1839
      %v1841 = vpop.f32.mrb[0].mxu0
      %1842 = vmatprep.mubr.f32.mxu0 0.0
      %1843 = vmatmul.mubr.f32.gmra.mrb[0].mxu0 %v1675
      %v1844 = vpop.f32.mrb[0].mxu0
      %v1845 = vadd.f32 %v1661, %v1844
      %v1846 = vpop.f32.mrb[0].mxu0
      %1847 = vmatprep.mubr.f32.mxu0 0.0
      %1848 = vmatmul.mubr.f32.gmra.mrb[0].mxu0 %v1678
      %v1849 = vpop.f32.mrb[0].mxu0
      %v1850 = vadd.f32 %v1661, %v1849
      %v1851 = vpop.f32.mrb[0].mxu0
      %1852 = vmatprep.mubr.f32.mxu0 0.0
      %1853 = vmatmul.mubr.f32.gmra.mrb[0].mxu0 %v1681
      %v1854 = vpop.f32.mrb[0].mxu0
      %v1855 = vadd.f32 %v1661, %v1854
      %v1856 = vpop.f32.mrb[0].mxu0
      %1857 = vmatprep.mubr.f32.mxu0 0.0
      %1858 = vmatmul.mubr.f32.gmra.mrb[0].mxu0 %v1684
      %v1859 = vpop.f32.mrb[0].mxu0
      %v1860 = vadd.f32 %v1661, %v1859
      %v1861 = vpop.f32.mrb[0].mxu0
      %1862 = vmatprep.mubr.f32.mxu0 0.0
      %1863 = vmatmul.mubr.f32.gmra.mrb[0].mxu0 %v1687
      %v1864 = vpop.f32.mrb[0].mxu0
      %v1865 = vadd.f32 %v1661, %v1864
      %v1866 = vpop.f32.mrb[0].mxu0
      %1867 = vmatprep.mubr.f32.mxu0 0.0
      %1868 = vmatmul.mubr.f32.gmra.mrb[0].mxu0 %v1690
      %v1869 = vpop.f32.mrb[0].mxu0
      %v1870 = vadd.f32 %v1661, %v1869
      %v1871 = vpop.f32.mrb[0].mxu0
      %1872 = vmatprep.mubr.f32.mxu0 0.0
      %1873 = vmatmul.mubr.f32.gmra.mrb[0].mxu0 %v1693
      %v1874 = vpop.f32.mrb[0].mxu0
      %v1875 = vadd.f32 %v1661, %v1874
      %v1876 = vpop.f32.mrb[0].mxu0
      %1877 = vmatprep.mubr.f32.mxu0 0.0
      %1878 = vmatmul.mubr.f32.gmra.mrb[0].mxu0 %v1696
      %v1879 = vpop.f32.mrb[0].mxu0
      %v1880 = vadd.f32 %v1661, %v1879
      %v1881 = vpop.f32.mrb[0].mxu0
      %1882 = vmatprep.mubr.f32.mxu0 0.0
      %1883 = vmatmul.mubr.f32.gmra.mrb[0].mxu0 %v1699
      %v1884 = vpop.f32.mrb[0].mxu0
      %v1885 = vadd.f32 %v1661, %v1884
      %v1886 = vpop.f32.mrb[0].mxu0
      %1887 = vmatprep.mubr.f32.mxu0 0.0
      %1888 = vmatmul.mubr.f32.gmra.mrb[0].mxu0 %v1702
      %v1889 = vpop.f32.mrb[0].mxu0
      %v1890 = vadd.f32 %v1661, %v1889
      %v1891 = vpop.f32.mrb[0].mxu0
      %1892 = vmatprep.mubr.f32.mxu0 0.0
      %1893 = vmatmul.mubr.f32.gmra.mrb[0].mxu0 %v1705
      %v1894 = vpop.f32.mrb[0].mxu0
      %v1895 = vadd.f32 %v1661, %v1894
      %v1896 = vpop.f32.mrb[0].mxu0
      %1897 = vmatprep.mubr.f32.mxu0 0.0
      %1898 = vmatmul.mubr.f32.gmra.mrb[0].mxu0 %v1708
      %v1899 = vpop.f32.mrb[0].mxu0
      %v1900 = vadd.f32 %v1661, %v1899
      %v1901 = vpop.f32.mrb[0].mxu0
      %1902 = vmatprep.mubr.f32.mxu0 0.0
      %1903 = vmatmul.mubr.f32.gmra.mrb[0].mxu0 %v1711
      %v1904 = vpop.f32.mrb[0].mxu0
      %v1905 = vadd.f32 %v1661, %v1904
      %v1906 = vpop.f32.mrb[0].mxu0
      %1907 = vmatprep.mubr.f32.mxu0 0.0
      %1908 = vmatmul.mubr.f32.gmra.mrb[0].mxu0 %v1714
      %v1909 = vpop.f32.mrb[0].mxu0
      %v1910 = vadd.f32 %v1661, %v1909
      %v1911 = vpop.f32.mrb[0].mxu0
      %1912 = vmatprep.mubr.f32.mxu0 0.0
      %1913 = vmatmul.mubr.f32.gmra.mrb[0].mxu0 %v1717
      %v1914 = vpop.f32.mrb[0].mxu0
      %v1915 = vadd.f32 %v1661, %v1914
      %v1916 = vpop.f32.mrb[0].mxu0
      %1917 = vmatprep.mubr.f32.mxu0 0.0
      %1918 = vmatmul.mubr.f32.gmra.mrb[0].mxu0 %v1720
      %v1919 = vpop.f32.mrb[0].mxu0
      %v1920 = vadd.f32 %v1661, %v1919
      %v1921 = vpop.f32.mrb[0].mxu0
      %1922 = vmatprep.mubr.f32.mxu0 0.0
      %1923 = vmatmul.mubr.f32.gmra.mrb[0].mxu0 %v1723
      %v1924 = vpop.f32.mrb[0].mxu0
      %v1925 = vadd.f32 %v1661, %v1924
      %v1926 = vpop.f32.mrb[0].mxu0
      %1927 = vmatprep.mubr.f32.mxu0 0.0
      %1928 = vmatmul.mubr.f32.gmra.mrb[0].mxu0 %v1726
      %v1929 = vpop.f32.mrb[0].mxu0
      %v1930 = vadd.f32 %v1661, %v1929
      %v1931 = vpop.f32.mrb[0].mxu0
      %1932 = vmatprep.mubr.f32.mxu0 0.0
      %1933 = vmatmul.mubr.f32.gmra.mrb[0].mxu0 %v1729
      %v1934 = vpop.f32.mrb[0].mxu0
      %v1935 = vadd.f32 %v1661, %v1934
      %v1936 = vpop.f32.mrb[0].mxu0
      %1937 = vmatprep.mubr.f32.mxu0 0.0
      %1938 = vmatmul.mubr.f32.gmra.mrb[0].mxu0 %v1732
      %v1939 = vpop.f32.mrb[0].mxu0
      %v1940 = vadd.f32 %v1661, %v1939
      %v1941 = vpop.f32.mrb[0].mxu0
      %1942 = vmatprep.mubr.f32.mxu0 0.0
      %1943 = vmatmul.mubr.f32.gmra.mrb[0].mxu0 %v1735
      %v1944 = vpop.f32.mrb[0].mxu0
      %v1945 = vadd.f32 %v1661, %v1944
      %v1946 = vpop.f32.mrb[0].mxu0
      %1947 = vmatprep.mubr.f32.mxu0 0.0
      %1948 = vmatmul.mubr.f32.gmra.mrb[0].mxu0 %v1738
      %v1949 = vpop.f32.mrb[0].mxu0
      %v1950 = vadd.f32 %v1661, %v1949
      %v1951 = vpop.f32.mrb[0].mxu0
      %1952 = vmatprep.mubr.f32.mxu0 0.0
      %1953 = vmatmul.mubr.f32.gmra.mrb[0].mxu0 %v1741
      %v1954 = vpop.f32.mrb[0].mxu0
      %v1955 = vadd.f32 %v1661, %v1954
      %v1956 = vpop.f32.mrb[0].mxu0
      %1957 = vmatprep.mubr.f32.mxu0 0.0
      %1958 = vmatmul.mubr.f32.gmra.mrb[0].mxu0 %v1744
      %v1959 = vpop.f32.mrb[0].mxu0
      %v1960 = vadd.f32 %v1661, %v1959
      %v1961 = vpop.f32.mrb[0].mxu0
      %1962 = vmatprep.mubr.f32.mxu0 0.0
      %1963 = vmatmul.mubr.f32.gmra.mrb[0].mxu0 %v1747
      %v1964 = vpop.f32.mrb[0].mxu0
      %v1965 = vadd.f32 %v1661, %v1964
      %v1966 = vpop.f32.mrb[0].mxu0
      %1967 = vmatprep.mubr.f32.mxu0 0.0
      %1968 = vmatmul.mubr.f32.gmra.mrb[0].mxu0 %v1750
      %v1969 = vpop.f32.mrb[0].mxu0
      %v1970 = vadd.f32 %v1661, %v1969
      %v1971 = vpop.f32.mrb[0].mxu0
      %1972 = vmatprep.mubr.f32.mxu0 0.0
      %1973 = vmatmul.mubr.f32.gmra.mrb[0].mxu0 %v1753
      %v1974 = vpop.f32.mrb[0].mxu0
      %v1975 = vadd.f32 %v1661, %v1974
      %v1976 = vpop.f32.mrb[0].mxu0
      %1977 = vmatprep.mubr.f32.mxu0 0.0
      %1978 = vmatmul.mubr.f32.gmra.mrb[0].mxu0 %v1756
      %v1979 = vpop.f32.mrb[0].mxu0
      %v1980 = vadd.f32 %v1661, %v1979
      %v1981 = vpop.f32.mrb[0].mxu0
      %1982 = vdwg.mxu0
      %v1983 = vsub.f32 %v174, %v1825
      %v1984 = vsub.f32 %v175, %v1830
      %v1985 = vsub.f32 %v176, %v1835
      %v1986 = vsub.f32 %v177, %v1840
      %v1987 = vsub.f32 %v178, %v1845
      %v1988 = vsub.f32 %v179, %v1850
      %v1989 = vsub.f32 %v180, %v1855
      %v1990 = vsub.f32 %v181, %v1860
      %v1991 = vsub.f32 %v182, %v1865
      %v1992 = vsub.f32 %v183, %v1870
      %v1993 = vsub.f32 %v184, %v1875
      %v1994 = vsub.f32 %v185, %v1880
      %v1995 = vsub.f32 %v186, %v1885
      %v1996 = vsub.f32 %v187, %v1890
      %v1997 = vsub.f32 %v188, %v1895
      %v1998 = vsub.f32 %v189, %v1900
      %v1999 = vsub.f32 %v190, %v1905
      %v2000 = vsub.f32 %v191, %v1910
      %v2001 = vsub.f32 %v192, %v1915
      %v2002 = vsub.f32 %v193, %v1920
      %v2003 = vsub.f32 %v194, %v1925
      %v2004 = vsub.f32 %v195, %v1930
      %v2005 = vsub.f32 %v196, %v1935
      %v2006 = vsub.f32 %v197, %v1940
      %v2007 = vsub.f32 %v198, %v1945
      %v2008 = vsub.f32 %v199, %v1950
      %v2009 = vsub.f32 %v200, %v1955
      %v2010 = vsub.f32 %v201, %v1960
      %v2011 = vsub.f32 %v202, %v1965
      %v2012 = vsub.f32 %v203, %v1970
      %v2013 = vsub.f32 %v204, %v1975
      %v2014 = vsub.f32 %v205, %v1980
      %v2015 = vadd.f32 %v1825, 0.0
      %v2016 = vadd.f32 %v1830, 0.0
      %v2017 = vadd.f32 %v1835, 0.0
      %v2018 = vadd.f32 %v1840, 0.0
      %v2019 = vadd.f32 %v1845, 0.0
      %v2020 = vadd.f32 %v1850, 0.0
      %v2021 = vadd.f32 %v1855, 0.0
      %v2022 = vadd.f32 %v1860, 0.0
      %v2023 = vadd.f32 %v1865, 0.0
      %v2024 = vadd.f32 %v1870, 0.0
      %v2025 = vadd.f32 %v1875, 0.0
      %v2026 = vadd.f32 %v1880, 0.0
      %v2027 = vadd.f32 %v1885, 0.0
      %v2028 = vadd.f32 %v1890, 0.0
      %v2029 = vadd.f32 %v1895, 0.0
      %v2030 = vadd.f32 %v1900, 0.0
      %v2031 = vadd.f32 %v1905, 0.0
      %v2032 = vadd.f32 %v1910, 0.0
      %v2033 = vadd.f32 %v1915, 0.0
      %v2034 = vadd.f32 %v1920, 0.0
      %v2035 = vadd.f32 %v1925, 0.0
      %v2036 = vadd.f32 %v1930, 0.0
      %v2037 = vadd.f32 %v1935, 0.0
      %v2038 = vadd.f32 %v1940, 0.0
      %v2039 = vadd.f32 %v1945, 0.0
      %v2040 = vadd.f32 %v1950, 0.0
      %v2041 = vadd.f32 %v1955, 0.0
      %v2042 = vadd.f32 %v1960, 0.0
      %v2043 = vadd.f32 %v1965, 0.0
      %v2044 = vadd.f32 %v1970, 0.0
      %v2045 = vadd.f32 %v1975, 0.0
      %v2046 = vadd.f32 %v1980, 0.0
      %v2047 = vld [vmem:[%s1 + $0x88] sm:$0xff]
      %v2048 = vld [vmem:[%s2 + $0x8] sm:$0x1]
      %v2049 = vlaneseq
      %v2050 = vshrl.u32 %v2049, 7
      %v2051 = vsub.s32 0, %v2050
      %v2052 = vrot.slane %v2048, %v2051
      %v2054 = vsel %vm212, %v1983, 0
      %v2057 = vsel %vm212, %v1984, 0
      %v2060 = vsel %vm212, %v1985, 0
      %v2063 = vsel %vm212, %v1986, 0
      %v2066 = vsel %vm212, %v1987, 0
      %v2069 = vsel %vm212, %v1988, 0
      %v2072 = vsel %vm212, %v1989, 0
      %v2075 = vsel %vm212, %v1990, 0
      %v2078 = vsel %vm212, %v1991, 0
      %v2081 = vsel %vm212, %v1992, 0
      %v2084 = vsel %vm212, %v1993, 0
      %v2087 = vsel %vm212, %v1994, 0
      %v2090 = vsel %vm212, %v1995, 0
      %v2093 = vsel %vm212, %v1996, 0
      %v2096 = vsel %vm212, %v1997, 0
      %v2099 = vsel %vm212, %v1998, 0
      %v2102 = vsel %vm212, %v1999, 0
      %v2105 = vsel %vm212, %v2000, 0
      %v2108 = vsel %vm212, %v2001, 0
      %v2111 = vsel %vm212, %v2002, 0
      %v2114 = vsel %vm212, %v2003, 0
      %v2117 = vsel %vm212, %v2004, 0
      %v2120 = vsel %vm212, %v2005, 0
      %v2123 = vsel %vm212, %v2006, 0
      %v2126 = vsel %vm212, %v2007, 0
      %v2129 = vsel %vm212, %v2008, 0
      %v2132 = vsel %vm212, %v2009, 0
      %v2135 = vsel %vm212, %v2010, 0
      %v2138 = vsel %vm212, %v2011, 0
      %v2141 = vsel %vm212, %v2012, 0
      %v2144 = vsel %vm212, %v2013, 0
      %v2147 = vsel %vm212, %v2014, 0
      %2149 = vmatprep.subr.mxu0 0.0
      %2150 = vmatpush1.msra.mxu0 %v2047
      %2151 = vmatprep.subr.mxu0 0.0
      %2152 = vmatpush1.msra.mxu0 0.0
      %2153 = vmatprep.subr.mxu0 0.0
      %2154 = vmatpush1.msra.mxu0 0.0
      %2155 = vmatprep.subr.mxu0 0.0
      %2156 = vmatpush1.msra.mxu0 0.0
      %2157 = vmatprep.subr.mxu0 0.0
      %2158 = vmatpush1.msra.mxu0 0.0
      %2159 = vmatprep.subr.mxu0 0.0
      %2160 = vmatpush1.msra.mxu0 0.0
      %2161 = vmatprep.subr.mxu0 0.0
      %2162 = vmatpush1.msra.mxu0 0.0
      %2163 = vmatprep.subr.mxu0 0.0
      %2164 = vmatpush1.msra.mxu0 0.0
      %2165 = vmatprep.subr.mxu0 0.0
      %2166 = vmatpush1.msra.mxu0 0.0
      %2167 = vmatprep.subr.mxu0 0.0
      %2168 = vmatpush1.msra.mxu0 0.0
      %2169 = vmatprep.subr.mxu0 0.0
      %2170 = vmatpush1.msra.mxu0 0.0
      %2171 = vmatprep.subr.mxu0 0.0
      %2172 = vmatpush1.msra.mxu0 0.0
      %2173 = vmatprep.subr.mxu0 0.0
      %2174 = vmatpush1.msra.mxu0 0.0
      %2175 = vmatprep.subr.mxu0 0.0
      %2176 = vmatpush1.msra.mxu0 0.0
      %2177 = vmatprep.subr.mxu0 0.0
      %2178 = vmatpush1.msra.mxu0 0.0
      %2179 = vmatprep.subr.mxu0 0.0
      %2180 = vmatpush1.msra.mxu0 0.0
      %2181 = vmatprep.subr.mxu0 0.0
      %2182 = vmatpush1.msra.mxu0 0.0
      %2183 = vmatprep.subr.mxu0 0.0
      %2184 = vmatpush1.msra.mxu0 0.0
      %2185 = vmatprep.subr.mxu0 0.0
      %2186 = vmatpush1.msra.mxu0 0.0
      %2187 = vmatprep.subr.mxu0 0.0
      %2188 = vmatpush1.msra.mxu0 0.0
      %2189 = vmatprep.subr.mxu0 0.0
      %2190 = vmatpush1.msra.mxu0 0.0
      %2191 = vmatprep.subr.mxu0 0.0
      %2192 = vmatpush1.msra.mxu0 0.0
      %2193 = vmatprep.subr.mxu0 0.0
      %2194 = vmatpush1.msra.mxu0 0.0
      %2195 = vmatprep.subr.mxu0 0.0
      %2196 = vmatpush1.msra.mxu0 0.0
      %2197 = vmatprep.subr.mxu0 0.0
      %2198 = vmatpush1.msra.mxu0 0.0
      %2199 = vmatprep.subr.mxu0 0.0
      %2200 = vmatpush1.msra.mxu0 0.0
      %2201 = vmatprep.subr.mxu0 0.0
      %2202 = vmatpush1.msra.mxu0 0.0
      %2203 = vmatprep.subr.mxu0 0.0
      %2204 = vmatpush1.msra.mxu0 0.0
      %2205 = vmatprep.subr.mxu0 0.0
      %2206 = vmatpush1.msra.mxu0 0.0
      %2207 = vmatprep.subr.mxu0 0.0
      %2208 = vmatpush1.msra.mxu0 0.0
      %2209 = vmatprep.subr.mxu0 0.0
      %2210 = vmatpush1.msra.mxu0 0.0
      %2211 = vmatprep.subr.mxu0 0.0
      %2212 = vmatpush1.msra.mxu0 0.0
      %2213 = vmatprep.mubr.f32.mxu0 0.0
      %2214 = vmatmul.mubr.f32.gmra.mrb[0].mxu0 %v2054
      %v2215 = vpop.f32.mrb[0].mxu0
      %v2216 = vadd.f32 %v2052, %v2215
      %v2217 = vpop.f32.mrb[0].mxu0
      %2218 = vmatprep.mubr.f32.mxu0 0.0
      %2219 = vmatmul.mubr.f32.gmra.mrb[0].mxu0 %v2057
      %v2220 = vpop.f32.mrb[0].mxu0
      %v2221 = vadd.f32 %v2052, %v2220
      %v2222 = vpop.f32.mrb[0].mxu0
      %2223 = vmatprep.mubr.f32.mxu0 0.0
      %2224 = vmatmul.mubr.f32.gmra.mrb[0].mxu0 %v2060
      %v2225 = vpop.f32.mrb[0].mxu0
      %v2226 = vadd.f32 %v2052, %v2225
      %v2227 = vpop.f32.mrb[0].mxu0
      %2228 = vmatprep.mubr.f32.mxu0 0.0
      %2229 = vmatmul.mubr.f32.gmra.mrb[0].mxu0 %v2063
      %v2230 = vpop.f32.mrb[0].mxu0
      %v2231 = vadd.f32 %v2052, %v2230
      %v2232 = vpop.f32.mrb[0].mxu0
      %2233 = vmatprep.mubr.f32.mxu0 0.0
      %2234 = vmatmul.mubr.f32.gmra.mrb[0].mxu0 %v2066
      %v2235 = vpop.f32.mrb[0].mxu0
      %v2236 = vadd.f32 %v2052, %v2235
      %v2237 = vpop.f32.mrb[0].mxu0
      %2238 = vmatprep.mubr.f32.mxu0 0.0
      %2239 = vmatmul.mubr.f32.gmra.mrb[0].mxu0 %v2069
      %v2240 = vpop.f32.mrb[0].mxu0
      %v2241 = vadd.f32 %v2052, %v2240
      %v2242 = vpop.f32.mrb[0].mxu0
      %2243 = vmatprep.mubr.f32.mxu0 0.0
      %2244 = vmatmul.mubr.f32.gmra.mrb[0].mxu0 %v2072
      %v2245 = vpop.f32.mrb[0].mxu0
      %v2246 = vadd.f32 %v2052, %v2245
      %v2247 = vpop.f32.mrb[0].mxu0
      %2248 = vmatprep.mubr.f32.mxu0 0.0
      %2249 = vmatmul.mubr.f32.gmra.mrb[0].mxu0 %v2075
      %v2250 = vpop.f32.mrb[0].mxu0
      %v2251 = vadd.f32 %v2052, %v2250
      %v2252 = vpop.f32.mrb[0].mxu0
      %2253 = vmatprep.mubr.f32.mxu0 0.0
      %2254 = vmatmul.mubr.f32.gmra.mrb[0].mxu0 %v2078
      %v2255 = vpop.f32.mrb[0].mxu0
      %v2256 = vadd.f32 %v2052, %v2255
      %v2257 = vpop.f32.mrb[0].mxu0
      %2258 = vmatprep.mubr.f32.mxu0 0.0
      %2259 = vmatmul.mubr.f32.gmra.mrb[0].mxu0 %v2081
      %v2260 = vpop.f32.mrb[0].mxu0
      %v2261 = vadd.f32 %v2052, %v2260
      %v2262 = vpop.f32.mrb[0].mxu0
      %2263 = vmatprep.mubr.f32.mxu0 0.0
      %2264 = vmatmul.mubr.f32.gmra.mrb[0].mxu0 %v2084
      %v2265 = vpop.f32.mrb[0].mxu0
      %v2266 = vadd.f32 %v2052, %v2265
      %v2267 = vpop.f32.mrb[0].mxu0
      %2268 = vmatprep.mubr.f32.mxu0 0.0
      %2269 = vmatmul.mubr.f32.gmra.mrb[0].mxu0 %v2087
      %v2270 = vpop.f32.mrb[0].mxu0
      %v2271 = vadd.f32 %v2052, %v2270
      %v2272 = vpop.f32.mrb[0].mxu0
      %2273 = vmatprep.mubr.f32.mxu0 0.0
      %2274 = vmatmul.mubr.f32.gmra.mrb[0].mxu0 %v2090
      %v2275 = vpop.f32.mrb[0].mxu0
      %v2276 = vadd.f32 %v2052, %v2275
      %v2277 = vpop.f32.mrb[0].mxu0
      %2278 = vmatprep.mubr.f32.mxu0 0.0
      %2279 = vmatmul.mubr.f32.gmra.mrb[0].mxu0 %v2093
      %v2280 = vpop.f32.mrb[0].mxu0
      %v2281 = vadd.f32 %v2052, %v2280
      %v2282 = vpop.f32.mrb[0].mxu0
      %2283 = vmatprep.mubr.f32.mxu0 0.0
      %2284 = vmatmul.mubr.f32.gmra.mrb[0].mxu0 %v2096
      %v2285 = vpop.f32.mrb[0].mxu0
      %v2286 = vadd.f32 %v2052, %v2285
      %v2287 = vpop.f32.mrb[0].mxu0
      %2288 = vmatprep.mubr.f32.mxu0 0.0
      %2289 = vmatmul.mubr.f32.gmra.mrb[0].mxu0 %v2099
      %v2290 = vpop.f32.mrb[0].mxu0
      %v2291 = vadd.f32 %v2052, %v2290
      %v2292 = vpop.f32.mrb[0].mxu0
      %2293 = vmatprep.mubr.f32.mxu0 0.0
      %2294 = vmatmul.mubr.f32.gmra.mrb[0].mxu0 %v2102
      %v2295 = vpop.f32.mrb[0].mxu0
      %v2296 = vadd.f32 %v2052, %v2295
      %v2297 = vpop.f32.mrb[0].mxu0
      %2298 = vmatprep.mubr.f32.mxu0 0.0
      %2299 = vmatmul.mubr.f32.gmra.mrb[0].mxu0 %v2105
      %v2300 = vpop.f32.mrb[0].mxu0
      %v2301 = vadd.f32 %v2052, %v2300
      %v2302 = vpop.f32.mrb[0].mxu0
      %2303 = vmatprep.mubr.f32.mxu0 0.0
      %2304 = vmatmul.mubr.f32.gmra.mrb[0].mxu0 %v2108
      %v2305 = vpop.f32.mrb[0].mxu0
      %v2306 = vadd.f32 %v2052, %v2305
      %v2307 = vpop.f32.mrb[0].mxu0
      %2308 = vmatprep.mubr.f32.mxu0 0.0
      %2309 = vmatmul.mubr.f32.gmra.mrb[0].mxu0 %v2111
      %v2310 = vpop.f32.mrb[0].mxu0
      %v2311 = vadd.f32 %v2052, %v2310
      %v2312 = vpop.f32.mrb[0].mxu0
      %2313 = vmatprep.mubr.f32.mxu0 0.0
      %2314 = vmatmul.mubr.f32.gmra.mrb[0].mxu0 %v2114
      %v2315 = vpop.f32.mrb[0].mxu0
      %v2316 = vadd.f32 %v2052, %v2315
      %v2317 = vpop.f32.mrb[0].mxu0
      %2318 = vmatprep.mubr.f32.mxu0 0.0
      %2319 = vmatmul.mubr.f32.gmra.mrb[0].mxu0 %v2117
      %v2320 = vpop.f32.mrb[0].mxu0
      %v2321 = vadd.f32 %v2052, %v2320
      %v2322 = vpop.f32.mrb[0].mxu0
      %2323 = vmatprep.mubr.f32.mxu0 0.0
      %2324 = vmatmul.mubr.f32.gmra.mrb[0].mxu0 %v2120
      %v2325 = vpop.f32.mrb[0].mxu0
      %v2326 = vadd.f32 %v2052, %v2325
      %v2327 = vpop.f32.mrb[0].mxu0
      %2328 = vmatprep.mubr.f32.mxu0 0.0
      %2329 = vmatmul.mubr.f32.gmra.mrb[0].mxu0 %v2123
      %v2330 = vpop.f32.mrb[0].mxu0
      %v2331 = vadd.f32 %v2052, %v2330
      %v2332 = vpop.f32.mrb[0].mxu0
      %2333 = vmatprep.mubr.f32.mxu0 0.0
      %2334 = vmatmul.mubr.f32.gmra.mrb[0].mxu0 %v2126
      %v2335 = vpop.f32.mrb[0].mxu0
      %v2336 = vadd.f32 %v2052, %v2335
      %v2337 = vpop.f32.mrb[0].mxu0
      %2338 = vmatprep.mubr.f32.mxu0 0.0
      %2339 = vmatmul.mubr.f32.gmra.mrb[0].mxu0 %v2129
      %v2340 = vpop.f32.mrb[0].mxu0
      %v2341 = vadd.f32 %v2052, %v2340
      %v2342 = vpop.f32.mrb[0].mxu0
      %2343 = vmatprep.mubr.f32.mxu0 0.0
      %2344 = vmatmul.mubr.f32.gmra.mrb[0].mxu0 %v2132
      %v2345 = vpop.f32.mrb[0].mxu0
      %v2346 = vadd.f32 %v2052, %v2345
      %v2347 = vpop.f32.mrb[0].mxu0
      %2348 = vmatprep.mubr.f32.mxu0 0.0
      %2349 = vmatmul.mubr.f32.gmra.mrb[0].mxu0 %v2135
      %v2350 = vpop.f32.mrb[0].mxu0
      %v2351 = vadd.f32 %v2052, %v2350
      %v2352 = vpop.f32.mrb[0].mxu0
      %2353 = vmatprep.mubr.f32.mxu0 0.0
      %2354 = vmatmul.mubr.f32.gmra.mrb[0].mxu0 %v2138
      %v2355 = vpop.f32.mrb[0].mxu0
      %v2356 = vadd.f32 %v2052, %v2355
      %v2357 = vpop.f32.mrb[0].mxu0
      %2358 = vmatprep.mubr.f32.mxu0 0.0
      %2359 = vmatmul.mubr.f32.gmra.mrb[0].mxu0 %v2141
      %v2360 = vpop.f32.mrb[0].mxu0
      %v2361 = vadd.f32 %v2052, %v2360
      %v2362 = vpop.f32.mrb[0].mxu0
      %2363 = vmatprep.mubr.f32.mxu0 0.0
      %2364 = vmatmul.mubr.f32.gmra.mrb[0].mxu0 %v2144
      %v2365 = vpop.f32.mrb[0].mxu0
      %v2366 = vadd.f32 %v2052, %v2365
      %v2367 = vpop.f32.mrb[0].mxu0
      %2368 = vmatprep.mubr.f32.mxu0 0.0
      %2369 = vmatmul.mubr.f32.gmra.mrb[0].mxu0 %v2147
      %v2370 = vpop.f32.mrb[0].mxu0
      %v2371 = vadd.f32 %v2052, %v2370
      %v2372 = vpop.f32.mrb[0].mxu0
      %2373 = vdwg.mxu0
      %v2374 = vmax.f32 %v2216, 0.0
      %v2375 = vmax.f32 %v2221, 0.0
      %v2376 = vmax.f32 %v2226, 0.0
      %v2377 = vmax.f32 %v2231, 0.0
      %v2378 = vmax.f32 %v2236, 0.0
      %v2379 = vmax.f32 %v2241, 0.0
      %v2380 = vmax.f32 %v2246, 0.0
      %v2381 = vmax.f32 %v2251, 0.0
      %v2382 = vmax.f32 %v2256, 0.0
      %v2383 = vmax.f32 %v2261, 0.0
      %v2384 = vmax.f32 %v2266, 0.0
      %v2385 = vmax.f32 %v2271, 0.0
      %v2386 = vmax.f32 %v2276, 0.0
      %v2387 = vmax.f32 %v2281, 0.0
      %v2388 = vmax.f32 %v2286, 0.0
      %v2389 = vmax.f32 %v2291, 0.0
      %v2390 = vmax.f32 %v2296, 0.0
      %v2391 = vmax.f32 %v2301, 0.0
      %v2392 = vmax.f32 %v2306, 0.0
      %v2393 = vmax.f32 %v2311, 0.0
      %v2394 = vmax.f32 %v2316, 0.0
      %v2395 = vmax.f32 %v2321, 0.0
      %v2396 = vmax.f32 %v2326, 0.0
      %v2397 = vmax.f32 %v2331, 0.0
      %v2398 = vmax.f32 %v2336, 0.0
      %v2399 = vmax.f32 %v2341, 0.0
      %v2400 = vmax.f32 %v2346, 0.0
      %v2401 = vmax.f32 %v2351, 0.0
      %v2402 = vmax.f32 %v2356, 0.0
      %v2403 = vmax.f32 %v2361, 0.0
      %v2404 = vmax.f32 %v2366, 0.0
      %v2405 = vmax.f32 %v2371, 0.0
      %v2406 = vld [vmem:[%s1 + $0x90] sm:$0xff]
      %v2407 = vld [vmem:[%s1 + $0x98] sm:$0xff]
      %v2408 = vld [vmem:[%s1 + $0xa0] sm:$0xff]
      %v2409 = vld [vmem:[%s1 + $0xa8] sm:$0xff]
      %v2410 = vld [vmem:[%s2 + $0x9] sm:$0x1]
      %v2411 = vlaneseq
      %v2412 = vshrl.u32 %v2411, 7
      %v2413 = vsub.s32 0, %v2412
      %v2414 = vrot.slane %v2410, %v2413
      %v2416 = vsel %vm575, %v2374, 0
      %v2419 = vsel %vm575, %v2375, 0
      %v2422 = vsel %vm575, %v2376, 0
      %v2425 = vsel %vm575, %v2377, 0
      %v2428 = vsel %vm575, %v2378, 0
      %v2431 = vsel %vm575, %v2379, 0
      %v2434 = vsel %vm575, %v2380, 0
      %v2437 = vsel %vm575, %v2381, 0
      %v2440 = vsel %vm575, %v2382, 0
      %v2443 = vsel %vm575, %v2383, 0
      %v2446 = vsel %vm575, %v2384, 0
      %v2449 = vsel %vm575, %v2385, 0
      %v2452 = vsel %vm575, %v2386, 0
      %v2455 = vsel %vm575, %v2387, 0
      %v2458 = vsel %vm575, %v2388, 0
      %v2461 = vsel %vm575, %v2389, 0
      %v2464 = vsel %vm575, %v2390, 0
      %v2467 = vsel %vm575, %v2391, 0
      %v2470 = vsel %vm575, %v2392, 0
      %v2473 = vsel %vm575, %v2393, 0
      %v2476 = vsel %vm575, %v2394, 0
      %v2479 = vsel %vm575, %v2395, 0
      %v2482 = vsel %vm575, %v2396, 0
      %v2485 = vsel %vm575, %v2397, 0
      %v2488 = vsel %vm575, %v2398, 0
      %v2491 = vsel %vm575, %v2399, 0
      %v2494 = vsel %vm575, %v2400, 0
      %v2497 = vsel %vm575, %v2401, 0
      %v2500 = vsel %vm575, %v2402, 0
      %v2503 = vsel %vm575, %v2403, 0
      %v2506 = vsel %vm575, %v2404, 0
      %v2509 = vsel %vm575, %v2405, 0
      %2511 = vmatprep.subr.mxu0 0.0
      %2512 = vmatpush1.msra.mxu0 %v2406
      %2513 = vmatprep.subr.mxu0 0.0
      %2514 = vmatpush1.msra.mxu0 %v2407
      %2515 = vmatprep.subr.mxu0 0.0
      %2516 = vmatpush1.msra.mxu0 %v2408
      %2517 = vmatprep.subr.mxu0 0.0
      %2518 = vmatpush1.msra.mxu0 %v2409
      %2519 = vmatprep.subr.mxu0 0.0
      %2520 = vmatpush1.msra.mxu0 0.0
      %2521 = vmatprep.subr.mxu0 0.0
      %2522 = vmatpush1.msra.mxu0 0.0
      %2523 = vmatprep.subr.mxu0 0.0
      %2524 = vmatpush1.msra.mxu0 0.0
      %2525 = vmatprep.subr.mxu0 0.0
      %2526 = vmatpush1.msra.mxu0 0.0
      %2527 = vmatprep.subr.mxu0 0.0
      %2528 = vmatpush1.msra.mxu0 0.0
      %2529 = vmatprep.subr.mxu0 0.0
      %2530 = vmatpush1.msra.mxu0 0.0
      %2531 = vmatprep.subr.mxu0 0.0
      %2532 = vmatpush1.msra.mxu0 0.0
      %2533 = vmatprep.subr.mxu0 0.0
      %2534 = vmatpush1.msra.mxu0 0.0
      %2535 = vmatprep.subr.mxu0 0.0
      %2536 = vmatpush1.msra.mxu0 0.0
      %2537 = vmatprep.subr.mxu0 0.0
      %2538 = vmatpush1.msra.mxu0 0.0
      %2539 = vmatprep.subr.mxu0 0.0
      %2540 = vmatpush1.msra.mxu0 0.0
      %2541 = vmatprep.subr.mxu0 0.0
      %2542 = vmatpush1.msra.mxu0 0.0
      %2543 = vmatprep.subr.mxu0 0.0
      %2544 = vmatpush1.msra.mxu0 0.0
      %2545 = vmatprep.subr.mxu0 0.0
      %2546 = vmatpush1.msra.mxu0 0.0
      %2547 = vmatprep.subr.mxu0 0.0
      %2548 = vmatpush1.msra.mxu0 0.0
      %2549 = vmatprep.subr.mxu0 0.0
      %2550 = vmatpush1.msra.mxu0 0.0
      %2551 = vmatprep.subr.mxu0 0.0
      %2552 = vmatpush1.msra.mxu0 0.0
      %2553 = vmatprep.subr.mxu0 0.0
      %2554 = vmatpush1.msra.mxu0 0.0
      %2555 = vmatprep.subr.mxu0 0.0
      %2556 = vmatpush1.msra.mxu0 0.0
      %2557 = vmatprep.subr.mxu0 0.0
      %2558 = vmatpush1.msra.mxu0 0.0
      %2559 = vmatprep.subr.mxu0 0.0
      %2560 = vmatpush1.msra.mxu0 0.0
      %2561 = vmatprep.subr.mxu0 0.0
      %2562 = vmatpush1.msra.mxu0 0.0
      %2563 = vmatprep.subr.mxu0 0.0
      %2564 = vmatpush1.msra.mxu0 0.0
      %2565 = vmatprep.subr.mxu0 0.0
      %2566 = vmatpush1.msra.mxu0 0.0
      %2567 = vmatprep.subr.mxu0 0.0
      %2568 = vmatpush1.msra.mxu0 0.0
      %2569 = vmatprep.subr.mxu0 0.0
      %2570 = vmatpush1.msra.mxu0 0.0
      %2571 = vmatprep.subr.mxu0 0.0
      %2572 = vmatpush1.msra.mxu0 0.0
      %2573 = vmatprep.subr.mxu0 0.0
      %2574 = vmatpush1.msra.mxu0 0.0
      %2575 = vmatprep.mubr.f32.mxu0 0.0
      %2576 = vmatmul.mubr.f32.gmra.mrb[0].mxu0 %v2416
      %v2577 = vpop.f32.mrb[0].mxu0
      %v2578 = vadd.f32 %v2414, %v2577
      %v2579 = vpop.f32.mrb[0].mxu0
      %2580 = vmatprep.mubr.f32.mxu0 0.0
      %2581 = vmatmul.mubr.f32.gmra.mrb[0].mxu0 %v2419
      %v2582 = vpop.f32.mrb[0].mxu0
      %v2583 = vadd.f32 %v2414, %v2582
      %v2584 = vpop.f32.mrb[0].mxu0
      %2585 = vmatprep.mubr.f32.mxu0 0.0
      %2586 = vmatmul.mubr.f32.gmra.mrb[0].mxu0 %v2422
      %v2587 = vpop.f32.mrb[0].mxu0
      %v2588 = vadd.f32 %v2414, %v2587
      %v2589 = vpop.f32.mrb[0].mxu0
      %2590 = vmatprep.mubr.f32.mxu0 0.0
      %2591 = vmatmul.mubr.f32.gmra.mrb[0].mxu0 %v2425
      %v2592 = vpop.f32.mrb[0].mxu0
      %v2593 = vadd.f32 %v2414, %v2592
      %v2594 = vpop.f32.mrb[0].mxu0
      %2595 = vmatprep.mubr.f32.mxu0 0.0
      %2596 = vmatmul.mubr.f32.gmra.mrb[0].mxu0 %v2428
      %v2597 = vpop.f32.mrb[0].mxu0
      %v2598 = vadd.f32 %v2414, %v2597
      %v2599 = vpop.f32.mrb[0].mxu0
      %2600 = vmatprep.mubr.f32.mxu0 0.0
      %2601 = vmatmul.mubr.f32.gmra.mrb[0].mxu0 %v2431
      %v2602 = vpop.f32.mrb[0].mxu0
      %v2603 = vadd.f32 %v2414, %v2602
      %v2604 = vpop.f32.mrb[0].mxu0
      %2605 = vmatprep.mubr.f32.mxu0 0.0
      %2606 = vmatmul.mubr.f32.gmra.mrb[0].mxu0 %v2434
      %v2607 = vpop.f32.mrb[0].mxu0
      %v2608 = vadd.f32 %v2414, %v2607
      %v2609 = vpop.f32.mrb[0].mxu0
      %2610 = vmatprep.mubr.f32.mxu0 0.0
      %2611 = vmatmul.mubr.f32.gmra.mrb[0].mxu0 %v2437
      %v2612 = vpop.f32.mrb[0].mxu0
      %v2613 = vadd.f32 %v2414, %v2612
      %v2614 = vpop.f32.mrb[0].mxu0
      %2615 = vmatprep.mubr.f32.mxu0 0.0
      %2616 = vmatmul.mubr.f32.gmra.mrb[0].mxu0 %v2440
      %v2617 = vpop.f32.mrb[0].mxu0
      %v2618 = vadd.f32 %v2414, %v2617
      %v2619 = vpop.f32.mrb[0].mxu0
      %2620 = vmatprep.mubr.f32.mxu0 0.0
      %2621 = vmatmul.mubr.f32.gmra.mrb[0].mxu0 %v2443
      %v2622 = vpop.f32.mrb[0].mxu0
      %v2623 = vadd.f32 %v2414, %v2622
      %v2624 = vpop.f32.mrb[0].mxu0
      %2625 = vmatprep.mubr.f32.mxu0 0.0
      %2626 = vmatmul.mubr.f32.gmra.mrb[0].mxu0 %v2446
      %v2627 = vpop.f32.mrb[0].mxu0
      %v2628 = vadd.f32 %v2414, %v2627
      %v2629 = vpop.f32.mrb[0].mxu0
      %2630 = vmatprep.mubr.f32.mxu0 0.0
      %2631 = vmatmul.mubr.f32.gmra.mrb[0].mxu0 %v2449
      %v2632 = vpop.f32.mrb[0].mxu0
      %v2633 = vadd.f32 %v2414, %v2632
      %v2634 = vpop.f32.mrb[0].mxu0
      %2635 = vmatprep.mubr.f32.mxu0 0.0
      %2636 = vmatmul.mubr.f32.gmra.mrb[0].mxu0 %v2452
      %v2637 = vpop.f32.mrb[0].mxu0
      %v2638 = vadd.f32 %v2414, %v2637
      %v2639 = vpop.f32.mrb[0].mxu0
      %2640 = vmatprep.mubr.f32.mxu0 0.0
      %2641 = vmatmul.mubr.f32.gmra.mrb[0].mxu0 %v2455
      %v2642 = vpop.f32.mrb[0].mxu0
      %v2643 = vadd.f32 %v2414, %v2642
      %v2644 = vpop.f32.mrb[0].mxu0
      %2645 = vmatprep.mubr.f32.mxu0 0.0
      %2646 = vmatmul.mubr.f32.gmra.mrb[0].mxu0 %v2458
      %v2647 = vpop.f32.mrb[0].mxu0
      %v2648 = vadd.f32 %v2414, %v2647
      %v2649 = vpop.f32.mrb[0].mxu0
      %2650 = vmatprep.mubr.f32.mxu0 0.0
      %2651 = vmatmul.mubr.f32.gmra.mrb[0].mxu0 %v2461
      %v2652 = vpop.f32.mrb[0].mxu0
      %v2653 = vadd.f32 %v2414, %v2652
      %v2654 = vpop.f32.mrb[0].mxu0
      %2655 = vmatprep.mubr.f32.mxu0 0.0
      %2656 = vmatmul.mubr.f32.gmra.mrb[0].mxu0 %v2464
      %v2657 = vpop.f32.mrb[0].mxu0
      %v2658 = vadd.f32 %v2414, %v2657
      %v2659 = vpop.f32.mrb[0].mxu0
      %2660 = vmatprep.mubr.f32.mxu0 0.0
      %2661 = vmatmul.mubr.f32.gmra.mrb[0].mxu0 %v2467
      %v2662 = vpop.f32.mrb[0].mxu0
      %v2663 = vadd.f32 %v2414, %v2662
      %v2664 = vpop.f32.mrb[0].mxu0
      %2665 = vmatprep.mubr.f32.mxu0 0.0
      %2666 = vmatmul.mubr.f32.gmra.mrb[0].mxu0 %v2470
      %v2667 = vpop.f32.mrb[0].mxu0
      %v2668 = vadd.f32 %v2414, %v2667
      %v2669 = vpop.f32.mrb[0].mxu0
      %2670 = vmatprep.mubr.f32.mxu0 0.0
      %2671 = vmatmul.mubr.f32.gmra.mrb[0].mxu0 %v2473
      %v2672 = vpop.f32.mrb[0].mxu0
      %v2673 = vadd.f32 %v2414, %v2672
      %v2674 = vpop.f32.mrb[0].mxu0
      %2675 = vmatprep.mubr.f32.mxu0 0.0
      %2676 = vmatmul.mubr.f32.gmra.mrb[0].mxu0 %v2476
      %v2677 = vpop.f32.mrb[0].mxu0
      %v2678 = vadd.f32 %v2414, %v2677
      %v2679 = vpop.f32.mrb[0].mxu0
      %2680 = vmatprep.mubr.f32.mxu0 0.0
      %2681 = vmatmul.mubr.f32.gmra.mrb[0].mxu0 %v2479
      %v2682 = vpop.f32.mrb[0].mxu0
      %v2683 = vadd.f32 %v2414, %v2682
      %v2684 = vpop.f32.mrb[0].mxu0
      %2685 = vmatprep.mubr.f32.mxu0 0.0
      %2686 = vmatmul.mubr.f32.gmra.mrb[0].mxu0 %v2482
      %v2687 = vpop.f32.mrb[0].mxu0
      %v2688 = vadd.f32 %v2414, %v2687
      %v2689 = vpop.f32.mrb[0].mxu0
      %2690 = vmatprep.mubr.f32.mxu0 0.0
      %2691 = vmatmul.mubr.f32.gmra.mrb[0].mxu0 %v2485
      %v2692 = vpop.f32.mrb[0].mxu0
      %v2693 = vadd.f32 %v2414, %v2692
      %v2694 = vpop.f32.mrb[0].mxu0
      %2695 = vmatprep.mubr.f32.mxu0 0.0
      %2696 = vmatmul.mubr.f32.gmra.mrb[0].mxu0 %v2488
      %v2697 = vpop.f32.mrb[0].mxu0
      %v2698 = vadd.f32 %v2414, %v2697
      %v2699 = vpop.f32.mrb[0].mxu0
      %2700 = vmatprep.mubr.f32.mxu0 0.0
      %2701 = vmatmul.mubr.f32.gmra.mrb[0].mxu0 %v2491
      %v2702 = vpop.f32.mrb[0].mxu0
      %v2703 = vadd.f32 %v2414, %v2702
      %v2704 = vpop.f32.mrb[0].mxu0
      %2705 = vmatprep.mubr.f32.mxu0 0.0
      %2706 = vmatmul.mubr.f32.gmra.mrb[0].mxu0 %v2494
      %v2707 = vpop.f32.mrb[0].mxu0
      %v2708 = vadd.f32 %v2414, %v2707
      %v2709 = vpop.f32.mrb[0].mxu0
      %2710 = vmatprep.mubr.f32.mxu0 0.0
      %2711 = vmatmul.mubr.f32.gmra.mrb[0].mxu0 %v2497
      %v2712 = vpop.f32.mrb[0].mxu0
      %v2713 = vadd.f32 %v2414, %v2712
      %v2714 = vpop.f32.mrb[0].mxu0
      %2715 = vmatprep.mubr.f32.mxu0 0.0
      %2716 = vmatmul.mubr.f32.gmra.mrb[0].mxu0 %v2500
      %v2717 = vpop.f32.mrb[0].mxu0
      %v2718 = vadd.f32 %v2414, %v2717
      %v2719 = vpop.f32.mrb[0].mxu0
      %2720 = vmatprep.mubr.f32.mxu0 0.0
      %2721 = vmatmul.mubr.f32.gmra.mrb[0].mxu0 %v2503
      %v2722 = vpop.f32.mrb[0].mxu0
      %v2723 = vadd.f32 %v2414, %v2722
      %v2724 = vpop.f32.mrb[0].mxu0
      %2725 = vmatprep.mubr.f32.mxu0 0.0
      %2726 = vmatmul.mubr.f32.gmra.mrb[0].mxu0 %v2506
      %v2727 = vpop.f32.mrb[0].mxu0
      %v2728 = vadd.f32 %v2414, %v2727
      %v2729 = vpop.f32.mrb[0].mxu0
      %2730 = vmatprep.mubr.f32.mxu0 0.0
      %2731 = vmatmul.mubr.f32.gmra.mrb[0].mxu0 %v2509
      %v2732 = vpop.f32.mrb[0].mxu0
      %v2733 = vadd.f32 %v2414, %v2732
      %v2734 = vpop.f32.mrb[0].mxu0
      %2735 = vdwg.mxu0
      %v2736 = vmax.f32 %v2578, 0.0
      %v2737 = vmax.f32 %v2583, 0.0
      %v2738 = vmax.f32 %v2588, 0.0
      %v2739 = vmax.f32 %v2593, 0.0
      %v2740 = vmax.f32 %v2598, 0.0
      %v2741 = vmax.f32 %v2603, 0.0
      %v2742 = vmax.f32 %v2608, 0.0
      %v2743 = vmax.f32 %v2613, 0.0
      %v2744 = vmax.f32 %v2618, 0.0
      %v2745 = vmax.f32 %v2623, 0.0
      %v2746 = vmax.f32 %v2628, 0.0
      %v2747 = vmax.f32 %v2633, 0.0
      %v2748 = vmax.f32 %v2638, 0.0
      %v2749 = vmax.f32 %v2643, 0.0
      %v2750 = vmax.f32 %v2648, 0.0
      %v2751 = vmax.f32 %v2653, 0.0
      %v2752 = vmax.f32 %v2658, 0.0
      %v2753 = vmax.f32 %v2663, 0.0
      %v2754 = vmax.f32 %v2668, 0.0
      %v2755 = vmax.f32 %v2673, 0.0
      %v2756 = vmax.f32 %v2678, 0.0
      %v2757 = vmax.f32 %v2683, 0.0
      %v2758 = vmax.f32 %v2688, 0.0
      %v2759 = vmax.f32 %v2693, 0.0
      %v2760 = vmax.f32 %v2698, 0.0
      %v2761 = vmax.f32 %v2703, 0.0
      %v2762 = vmax.f32 %v2708, 0.0
      %v2763 = vmax.f32 %v2713, 0.0
      %v2764 = vmax.f32 %v2718, 0.0
      %v2765 = vmax.f32 %v2723, 0.0
      %v2766 = vmax.f32 %v2728, 0.0
      %v2767 = vmax.f32 %v2733, 0.0
      %v2768 = vld [vmem:[%s1 + $0xb0] sm:$0xff]
      %v2769 = vld [vmem:[%s1 + $0xb8] sm:$0xff]
      %v2770 = vld [vmem:[%s1 + $0xc0] sm:$0xff]
      %v2771 = vld [vmem:[%s1 + $0xc8] sm:$0xff]
      %v2772 = vld [vmem:[%s2 + $0xa] sm:$0x1]
      %v2773 = vlaneseq
      %v2774 = vshrl.u32 %v2773, 7
      %v2775 = vsub.s32 0, %v2774
      %v2776 = vrot.slane %v2772, %v2775
      %v2778 = vsel %vm575, %v2736, 0
      %v2781 = vsel %vm575, %v2737, 0
      %v2784 = vsel %vm575, %v2738, 0
      %v2787 = vsel %vm575, %v2739, 0
      %v2790 = vsel %vm575, %v2740, 0
      %v2793 = vsel %vm575, %v2741, 0
      %v2796 = vsel %vm575, %v2742, 0
      %v2799 = vsel %vm575, %v2743, 0
      %v2802 = vsel %vm575, %v2744, 0
      %v2805 = vsel %vm575, %v2745, 0
      %v2808 = vsel %vm575, %v2746, 0
      %v2811 = vsel %vm575, %v2747, 0
      %v2814 = vsel %vm575, %v2748, 0
      %v2817 = vsel %vm575, %v2749, 0
      %v2820 = vsel %vm575, %v2750, 0
      %v2823 = vsel %vm575, %v2751, 0
      %v2826 = vsel %vm575, %v2752, 0
      %v2829 = vsel %vm575, %v2753, 0
      %v2832 = vsel %vm575, %v2754, 0
      %v2835 = vsel %vm575, %v2755, 0
      %v2838 = vsel %vm575, %v2756, 0
      %v2841 = vsel %vm575, %v2757, 0
      %v2844 = vsel %vm575, %v2758, 0
      %v2847 = vsel %vm575, %v2759, 0
      %v2850 = vsel %vm575, %v2760, 0
      %v2853 = vsel %vm575, %v2761, 0
      %v2856 = vsel %vm575, %v2762, 0
      %v2859 = vsel %vm575, %v2763, 0
      %v2862 = vsel %vm575, %v2764, 0
      %v2865 = vsel %vm575, %v2765, 0
      %v2868 = vsel %vm575, %v2766, 0
      %v2871 = vsel %vm575, %v2767, 0
      %2873 = vmatprep.subr.mxu0 0.0
      %2874 = vmatpush1.msra.mxu0 %v2768
      %2875 = vmatprep.subr.mxu0 0.0
      %2876 = vmatpush1.msra.mxu0 %v2769
      %2877 = vmatprep.subr.mxu0 0.0
      %2878 = vmatpush1.msra.mxu0 %v2770
      %2879 = vmatprep.subr.mxu0 0.0
      %2880 = vmatpush1.msra.mxu0 %v2771
      %2881 = vmatprep.subr.mxu0 0.0
      %2882 = vmatpush1.msra.mxu0 0.0
      %2883 = vmatprep.subr.mxu0 0.0
      %2884 = vmatpush1.msra.mxu0 0.0
      %2885 = vmatprep.subr.mxu0 0.0
      %2886 = vmatpush1.msra.mxu0 0.0
      %2887 = vmatprep.subr.mxu0 0.0
      %2888 = vmatpush1.msra.mxu0 0.0
      %2889 = vmatprep.subr.mxu0 0.0
      %2890 = vmatpush1.msra.mxu0 0.0
      %2891 = vmatprep.subr.mxu0 0.0
      %2892 = vmatpush1.msra.mxu0 0.0
      %2893 = vmatprep.subr.mxu0 0.0
      %2894 = vmatpush1.msra.mxu0 0.0
      %2895 = vmatprep.subr.mxu0 0.0
      %2896 = vmatpush1.msra.mxu0 0.0
      %2897 = vmatprep.subr.mxu0 0.0
      %2898 = vmatpush1.msra.mxu0 0.0
      %2899 = vmatprep.subr.mxu0 0.0
      %2900 = vmatpush1.msra.mxu0 0.0
      %2901 = vmatprep.subr.mxu0 0.0
      %2902 = vmatpush1.msra.mxu0 0.0
      %2903 = vmatprep.subr.mxu0 0.0
      %2904 = vmatpush1.msra.mxu0 0.0
      %2905 = vmatprep.subr.mxu0 0.0
      %2906 = vmatpush1.msra.mxu0 0.0
      %2907 = vmatprep.subr.mxu0 0.0
      %2908 = vmatpush1.msra.mxu0 0.0
      %2909 = vmatprep.subr.mxu0 0.0
      %2910 = vmatpush1.msra.mxu0 0.0
      %2911 = vmatprep.subr.mxu0 0.0
      %2912 = vmatpush1.msra.mxu0 0.0
      %2913 = vmatprep.subr.mxu0 0.0
      %2914 = vmatpush1.msra.mxu0 0.0
      %2915 = vmatprep.subr.mxu0 0.0
      %2916 = vmatpush1.msra.mxu0 0.0
      %2917 = vmatprep.subr.mxu0 0.0
      %2918 = vmatpush1.msra.mxu0 0.0
      %2919 = vmatprep.subr.mxu0 0.0
      %2920 = vmatpush1.msra.mxu0 0.0
      %2921 = vmatprep.subr.mxu0 0.0
      %2922 = vmatpush1.msra.mxu0 0.0
      %2923 = vmatprep.subr.mxu0 0.0
      %2924 = vmatpush1.msra.mxu0 0.0
      %2925 = vmatprep.subr.mxu0 0.0
      %2926 = vmatpush1.msra.mxu0 0.0
      %2927 = vmatprep.subr.mxu0 0.0
      %2928 = vmatpush1.msra.mxu0 0.0
      %2929 = vmatprep.subr.mxu0 0.0
      %2930 = vmatpush1.msra.mxu0 0.0
      %2931 = vmatprep.subr.mxu0 0.0
      %2932 = vmatpush1.msra.mxu0 0.0
      %2933 = vmatprep.subr.mxu0 0.0
      %2934 = vmatpush1.msra.mxu0 0.0
      %2935 = vmatprep.subr.mxu0 0.0
      %2936 = vmatpush1.msra.mxu0 0.0
      %2937 = vmatprep.mubr.f32.mxu0 0.0
      %2938 = vmatmul.mubr.f32.gmra.mrb[0].mxu0 %v2778
      %v2939 = vpop.f32.mrb[0].mxu0
      %v2940 = vadd.f32 %v2776, %v2939
      %v2941 = vpop.f32.mrb[0].mxu0
      %2942 = vmatprep.mubr.f32.mxu0 0.0
      %2943 = vmatmul.mubr.f32.gmra.mrb[0].mxu0 %v2781
      %v2944 = vpop.f32.mrb[0].mxu0
      %v2945 = vadd.f32 %v2776, %v2944
      %v2946 = vpop.f32.mrb[0].mxu0
      %2947 = vmatprep.mubr.f32.mxu0 0.0
      %2948 = vmatmul.mubr.f32.gmra.mrb[0].mxu0 %v2784
      %v2949 = vpop.f32.mrb[0].mxu0
      %v2950 = vadd.f32 %v2776, %v2949
      %v2951 = vpop.f32.mrb[0].mxu0
      %2952 = vmatprep.mubr.f32.mxu0 0.0
      %2953 = vmatmul.mubr.f32.gmra.mrb[0].mxu0 %v2787
      %v2954 = vpop.f32.mrb[0].mxu0
      %v2955 = vadd.f32 %v2776, %v2954
      %v2956 = vpop.f32.mrb[0].mxu0
      %2957 = vmatprep.mubr.f32.mxu0 0.0
      %2958 = vmatmul.mubr.f32.gmra.mrb[0].mxu0 %v2790
      %v2959 = vpop.f32.mrb[0].mxu0
      %v2960 = vadd.f32 %v2776, %v2959
      %v2961 = vpop.f32.mrb[0].mxu0
      %2962 = vmatprep.mubr.f32.mxu0 0.0
      %2963 = vmatmul.mubr.f32.gmra.mrb[0].mxu0 %v2793
      %v2964 = vpop.f32.mrb[0].mxu0
      %v2965 = vadd.f32 %v2776, %v2964
      %v2966 = vpop.f32.mrb[0].mxu0
      %2967 = vmatprep.mubr.f32.mxu0 0.0
      %2968 = vmatmul.mubr.f32.gmra.mrb[0].mxu0 %v2796
      %v2969 = vpop.f32.mrb[0].mxu0
      %v2970 = vadd.f32 %v2776, %v2969
      %v2971 = vpop.f32.mrb[0].mxu0
      %2972 = vmatprep.mubr.f32.mxu0 0.0
      %2973 = vmatmul.mubr.f32.gmra.mrb[0].mxu0 %v2799
      %v2974 = vpop.f32.mrb[0].mxu0
      %v2975 = vadd.f32 %v2776, %v2974
      %v2976 = vpop.f32.mrb[0].mxu0
      %2977 = vmatprep.mubr.f32.mxu0 0.0
      %2978 = vmatmul.mubr.f32.gmra.mrb[0].mxu0 %v2802
      %v2979 = vpop.f32.mrb[0].mxu0
      %v2980 = vadd.f32 %v2776, %v2979
      %v2981 = vpop.f32.mrb[0].mxu0
      %2982 = vmatprep.mubr.f32.mxu0 0.0
      %2983 = vmatmul.mubr.f32.gmra.mrb[0].mxu0 %v2805
      %v2984 = vpop.f32.mrb[0].mxu0
      %v2985 = vadd.f32 %v2776, %v2984
      %v2986 = vpop.f32.mrb[0].mxu0
      %2987 = vmatprep.mubr.f32.mxu0 0.0
      %2988 = vmatmul.mubr.f32.gmra.mrb[0].mxu0 %v2808
      %v2989 = vpop.f32.mrb[0].mxu0
      %v2990 = vadd.f32 %v2776, %v2989
      %v2991 = vpop.f32.mrb[0].mxu0
      %2992 = vmatprep.mubr.f32.mxu0 0.0
      %2993 = vmatmul.mubr.f32.gmra.mrb[0].mxu0 %v2811
      %v2994 = vpop.f32.mrb[0].mxu0
      %v2995 = vadd.f32 %v2776, %v2994
      %v2996 = vpop.f32.mrb[0].mxu0
      %2997 = vmatprep.mubr.f32.mxu0 0.0
      %2998 = vmatmul.mubr.f32.gmra.mrb[0].mxu0 %v2814
      %v2999 = vpop.f32.mrb[0].mxu0
      %v3000 = vadd.f32 %v2776, %v2999
      %v3001 = vpop.f32.mrb[0].mxu0
      %3002 = vmatprep.mubr.f32.mxu0 0.0
      %3003 = vmatmul.mubr.f32.gmra.mrb[0].mxu0 %v2817
      %v3004 = vpop.f32.mrb[0].mxu0
      %v3005 = vadd.f32 %v2776, %v3004
      %v3006 = vpop.f32.mrb[0].mxu0
      %3007 = vmatprep.mubr.f32.mxu0 0.0
      %3008 = vmatmul.mubr.f32.gmra.mrb[0].mxu0 %v2820
      %v3009 = vpop.f32.mrb[0].mxu0
      %v3010 = vadd.f32 %v2776, %v3009
      %v3011 = vpop.f32.mrb[0].mxu0
      %3012 = vmatprep.mubr.f32.mxu0 0.0
      %3013 = vmatmul.mubr.f32.gmra.mrb[0].mxu0 %v2823
      %v3014 = vpop.f32.mrb[0].mxu0
      %v3015 = vadd.f32 %v2776, %v3014
      %v3016 = vpop.f32.mrb[0].mxu0
      %3017 = vmatprep.mubr.f32.mxu0 0.0
      %3018 = vmatmul.mubr.f32.gmra.mrb[0].mxu0 %v2826
      %v3019 = vpop.f32.mrb[0].mxu0
      %v3020 = vadd.f32 %v2776, %v3019
      %v3021 = vpop.f32.mrb[0].mxu0
      %3022 = vmatprep.mubr.f32.mxu0 0.0
      %3023 = vmatmul.mubr.f32.gmra.mrb[0].mxu0 %v2829
      %v3024 = vpop.f32.mrb[0].mxu0
      %v3025 = vadd.f32 %v2776, %v3024
      %v3026 = vpop.f32.mrb[0].mxu0
      %3027 = vmatprep.mubr.f32.mxu0 0.0
      %3028 = vmatmul.mubr.f32.gmra.mrb[0].mxu0 %v2832
      %v3029 = vpop.f32.mrb[0].mxu0
      %v3030 = vadd.f32 %v2776, %v3029
      %v3031 = vpop.f32.mrb[0].mxu0
      %3032 = vmatprep.mubr.f32.mxu0 0.0
      %3033 = vmatmul.mubr.f32.gmra.mrb[0].mxu0 %v2835
      %v3034 = vpop.f32.mrb[0].mxu0
      %v3035 = vadd.f32 %v2776, %v3034
      %v3036 = vpop.f32.mrb[0].mxu0
      %3037 = vmatprep.mubr.f32.mxu0 0.0
      %3038 = vmatmul.mubr.f32.gmra.mrb[0].mxu0 %v2838
      %v3039 = vpop.f32.mrb[0].mxu0
      %v3040 = vadd.f32 %v2776, %v3039
      %v3041 = vpop.f32.mrb[0].mxu0
      %3042 = vmatprep.mubr.f32.mxu0 0.0
      %3043 = vmatmul.mubr.f32.gmra.mrb[0].mxu0 %v2841
      %v3044 = vpop.f32.mrb[0].mxu0
      %v3045 = vadd.f32 %v2776, %v3044
      %v3046 = vpop.f32.mrb[0].mxu0
      %3047 = vmatprep.mubr.f32.mxu0 0.0
      %3048 = vmatmul.mubr.f32.gmra.mrb[0].mxu0 %v2844
      %v3049 = vpop.f32.mrb[0].mxu0
      %v3050 = vadd.f32 %v2776, %v3049
      %v3051 = vpop.f32.mrb[0].mxu0
      %3052 = vmatprep.mubr.f32.mxu0 0.0
      %3053 = vmatmul.mubr.f32.gmra.mrb[0].mxu0 %v2847
      %v3054 = vpop.f32.mrb[0].mxu0
      %v3055 = vadd.f32 %v2776, %v3054
      %v3056 = vpop.f32.mrb[0].mxu0
      %3057 = vmatprep.mubr.f32.mxu0 0.0
      %3058 = vmatmul.mubr.f32.gmra.mrb[0].mxu0 %v2850
      %v3059 = vpop.f32.mrb[0].mxu0
      %v3060 = vadd.f32 %v2776, %v3059
      %v3061 = vpop.f32.mrb[0].mxu0
      %3062 = vmatprep.mubr.f32.mxu0 0.0
      %3063 = vmatmul.mubr.f32.gmra.mrb[0].mxu0 %v2853
      %v3064 = vpop.f32.mrb[0].mxu0
      %v3065 = vadd.f32 %v2776, %v3064
      %v3066 = vpop.f32.mrb[0].mxu0
      %3067 = vmatprep.mubr.f32.mxu0 0.0
      %3068 = vmatmul.mubr.f32.gmra.mrb[0].mxu0 %v2856
      %v3069 = vpop.f32.mrb[0].mxu0
      %v3070 = vadd.f32 %v2776, %v3069
      %v3071 = vpop.f32.mrb[0].mxu0
      %3072 = vmatprep.mubr.f32.mxu0 0.0
      %3073 = vmatmul.mubr.f32.gmra.mrb[0].mxu0 %v2859
      %v3074 = vpop.f32.mrb[0].mxu0
      %v3075 = vadd.f32 %v2776, %v3074
      %v3076 = vpop.f32.mrb[0].mxu0
      %3077 = vmatprep.mubr.f32.mxu0 0.0
      %3078 = vmatmul.mubr.f32.gmra.mrb[0].mxu0 %v2862
      %v3079 = vpop.f32.mrb[0].mxu0
      %v3080 = vadd.f32 %v2776, %v3079
      %v3081 = vpop.f32.mrb[0].mxu0
      %3082 = vmatprep.mubr.f32.mxu0 0.0
      %3083 = vmatmul.mubr.f32.gmra.mrb[0].mxu0 %v2865
      %v3084 = vpop.f32.mrb[0].mxu0
      %v3085 = vadd.f32 %v2776, %v3084
      %v3086 = vpop.f32.mrb[0].mxu0
      %3087 = vmatprep.mubr.f32.mxu0 0.0
      %3088 = vmatmul.mubr.f32.gmra.mrb[0].mxu0 %v2868
      %v3089 = vpop.f32.mrb[0].mxu0
      %v3090 = vadd.f32 %v2776, %v3089
      %v3091 = vpop.f32.mrb[0].mxu0
      %3092 = vmatprep.mubr.f32.mxu0 0.0
      %3093 = vmatmul.mubr.f32.gmra.mrb[0].mxu0 %v2871
      %v3094 = vpop.f32.mrb[0].mxu0
      %v3095 = vadd.f32 %v2776, %v3094
      %v3096 = vpop.f32.mrb[0].mxu0
      %3097 = vdwg.mxu0
      %v3098 = vmax.f32 %v2940, 0.0
      %v3099 = vmax.f32 %v2945, 0.0
      %v3100 = vmax.f32 %v2950, 0.0
      %v3101 = vmax.f32 %v2955, 0.0
      %v3102 = vmax.f32 %v2960, 0.0
      %v3103 = vmax.f32 %v2965, 0.0
      %v3104 = vmax.f32 %v2970, 0.0
      %v3105 = vmax.f32 %v2975, 0.0
      %v3106 = vmax.f32 %v2980, 0.0
      %v3107 = vmax.f32 %v2985, 0.0
      %v3108 = vmax.f32 %v2990, 0.0
      %v3109 = vmax.f32 %v2995, 0.0
      %v3110 = vmax.f32 %v3000, 0.0
      %v3111 = vmax.f32 %v3005, 0.0
      %v3112 = vmax.f32 %v3010, 0.0
      %v3113 = vmax.f32 %v3015, 0.0
      %v3114 = vmax.f32 %v3020, 0.0
      %v3115 = vmax.f32 %v3025, 0.0
      %v3116 = vmax.f32 %v3030, 0.0
      %v3117 = vmax.f32 %v3035, 0.0
      %v3118 = vmax.f32 %v3040, 0.0
      %v3119 = vmax.f32 %v3045, 0.0
      %v3120 = vmax.f32 %v3050, 0.0
      %v3121 = vmax.f32 %v3055, 0.0
      %v3122 = vmax.f32 %v3060, 0.0
      %v3123 = vmax.f32 %v3065, 0.0
      %v3124 = vmax.f32 %v3070, 0.0
      %v3125 = vmax.f32 %v3075, 0.0
      %v3126 = vmax.f32 %v3080, 0.0
      %v3127 = vmax.f32 %v3085, 0.0
      %v3128 = vmax.f32 %v3090, 0.0
      %v3129 = vmax.f32 %v3095, 0.0
      %v3130 = vld [vmem:[%s1 + $0xd0] sm:$0xff]
      %v3131 = vld [vmem:[%s1 + $0xd8] sm:$0xff]
      %v3132 = vld [vmem:[%s1 + $0xe0] sm:$0xff]
      %v3133 = vld [vmem:[%s1 + $0xe8] sm:$0xff]
      %v3134 = vld [vmem:[%s2 + $0xb] sm:$0x1]
      %v3135 = vlaneseq
      %v3136 = vshrl.u32 %v3135, 7
      %v3137 = vsub.s32 0, %v3136
      %v3138 = vrot.slane %v3134, %v3137
      %v3140 = vsel %vm575, %v3098, 0
      %v3143 = vsel %vm575, %v3099, 0
      %v3146 = vsel %vm575, %v3100, 0
      %v3149 = vsel %vm575, %v3101, 0
      %v3152 = vsel %vm575, %v3102, 0
      %v3155 = vsel %vm575, %v3103, 0
      %v3158 = vsel %vm575, %v3104, 0
      %v3161 = vsel %vm575, %v3105, 0
      %v3164 = vsel %vm575, %v3106, 0
      %v3167 = vsel %vm575, %v3107, 0
      %v3170 = vsel %vm575, %v3108, 0
      %v3173 = vsel %vm575, %v3109, 0
      %v3176 = vsel %vm575, %v3110, 0
      %v3179 = vsel %vm575, %v3111, 0
      %v3182 = vsel %vm575, %v3112, 0
      %v3185 = vsel %vm575, %v3113, 0
      %v3188 = vsel %vm575, %v3114, 0
      %v3191 = vsel %vm575, %v3115, 0
      %v3194 = vsel %vm575, %v3116, 0
      %v3197 = vsel %vm575, %v3117, 0
      %v3200 = vsel %vm575, %v3118, 0
      %v3203 = vsel %vm575, %v3119, 0
      %v3206 = vsel %vm575, %v3120, 0
      %v3209 = vsel %vm575, %v3121, 0
      %v3212 = vsel %vm575, %v3122, 0
      %v3215 = vsel %vm575, %v3123, 0
      %v3218 = vsel %vm575, %v3124, 0
      %v3221 = vsel %vm575, %v3125, 0
      %v3224 = vsel %vm575, %v3126, 0
      %v3227 = vsel %vm575, %v3127, 0
      %v3230 = vsel %vm575, %v3128, 0
      %v3233 = vsel %vm575, %v3129, 0
      %3235 = vmatprep.subr.mxu0 0.0
      %3236 = vmatpush1.msra.mxu0 %v3130
      %3237 = vmatprep.subr.mxu0 0.0
      %3238 = vmatpush1.msra.mxu0 %v3131
      %3239 = vmatprep.subr.mxu0 0.0
      %3240 = vmatpush1.msra.mxu0 %v3132
      %3241 = vmatprep.subr.mxu0 0.0
      %3242 = vmatpush1.msra.mxu0 %v3133
      %3243 = vmatprep.subr.mxu0 0.0
      %3244 = vmatpush1.msra.mxu0 0.0
      %3245 = vmatprep.subr.mxu0 0.0
      %3246 = vmatpush1.msra.mxu0 0.0
      %3247 = vmatprep.subr.mxu0 0.0
      %3248 = vmatpush1.msra.mxu0 0.0
      %3249 = vmatprep.subr.mxu0 0.0
      %3250 = vmatpush1.msra.mxu0 0.0
      %3251 = vmatprep.subr.mxu0 0.0
      %3252 = vmatpush1.msra.mxu0 0.0
      %3253 = vmatprep.subr.mxu0 0.0
      %3254 = vmatpush1.msra.mxu0 0.0
      %3255 = vmatprep.subr.mxu0 0.0
      %3256 = vmatpush1.msra.mxu0 0.0
      %3257 = vmatprep.subr.mxu0 0.0
      %3258 = vmatpush1.msra.mxu0 0.0
      %3259 = vmatprep.subr.mxu0 0.0
      %3260 = vmatpush1.msra.mxu0 0.0
      %3261 = vmatprep.subr.mxu0 0.0
      %3262 = vmatpush1.msra.mxu0 0.0
      %3263 = vmatprep.subr.mxu0 0.0
      %3264 = vmatpush1.msra.mxu0 0.0
      %3265 = vmatprep.subr.mxu0 0.0
      %3266 = vmatpush1.msra.mxu0 0.0
      %3267 = vmatprep.subr.mxu0 0.0
      %3268 = vmatpush1.msra.mxu0 0.0
      %3269 = vmatprep.subr.mxu0 0.0
      %3270 = vmatpush1.msra.mxu0 0.0
      %3271 = vmatprep.subr.mxu0 0.0
      %3272 = vmatpush1.msra.mxu0 0.0
      %3273 = vmatprep.subr.mxu0 0.0
      %3274 = vmatpush1.msra.mxu0 0.0
      %3275 = vmatprep.subr.mxu0 0.0
      %3276 = vmatpush1.msra.mxu0 0.0
      %3277 = vmatprep.subr.mxu0 0.0
      %3278 = vmatpush1.msra.mxu0 0.0
      %3279 = vmatprep.subr.mxu0 0.0
      %3280 = vmatpush1.msra.mxu0 0.0
      %3281 = vmatprep.subr.mxu0 0.0
      %3282 = vmatpush1.msra.mxu0 0.0
      %3283 = vmatprep.subr.mxu0 0.0
      %3284 = vmatpush1.msra.mxu0 0.0
      %3285 = vmatprep.subr.mxu0 0.0
      %3286 = vmatpush1.msra.mxu0 0.0
      %3287 = vmatprep.subr.mxu0 0.0
      %3288 = vmatpush1.msra.mxu0 0.0
      %3289 = vmatprep.subr.mxu0 0.0
      %3290 = vmatpush1.msra.mxu0 0.0
      %3291 = vmatprep.subr.mxu0 0.0
      %3292 = vmatpush1.msra.mxu0 0.0
      %3293 = vmatprep.subr.mxu0 0.0
      %3294 = vmatpush1.msra.mxu0 0.0
      %3295 = vmatprep.subr.mxu0 0.0
      %3296 = vmatpush1.msra.mxu0 0.0
      %3297 = vmatprep.subr.mxu0 0.0
      %3298 = vmatpush1.msra.mxu0 0.0
      %3299 = vmatprep.mubr.f32.mxu0 0.0
      %3300 = vmatmul.mubr.f32.gmra.mrb[0].mxu0 %v3140
      %v3301 = vpop.f32.mrb[0].mxu0
      %v3302 = vadd.f32 %v3138, %v3301
      %v3303 = vpop.f32.mrb[0].mxu0
      %3304 = vmatprep.mubr.f32.mxu0 0.0
      %3305 = vmatmul.mubr.f32.gmra.mrb[0].mxu0 %v3143
      %v3306 = vpop.f32.mrb[0].mxu0
      %v3307 = vadd.f32 %v3138, %v3306
      %v3308 = vpop.f32.mrb[0].mxu0
      %3309 = vmatprep.mubr.f32.mxu0 0.0
      %3310 = vmatmul.mubr.f32.gmra.mrb[0].mxu0 %v3146
      %v3311 = vpop.f32.mrb[0].mxu0
      %v3312 = vadd.f32 %v3138, %v3311
      %v3313 = vpop.f32.mrb[0].mxu0
      %3314 = vmatprep.mubr.f32.mxu0 0.0
      %3315 = vmatmul.mubr.f32.gmra.mrb[0].mxu0 %v3149
      %v3316 = vpop.f32.mrb[0].mxu0
      %v3317 = vadd.f32 %v3138, %v3316
      %v3318 = vpop.f32.mrb[0].mxu0
      %3319 = vmatprep.mubr.f32.mxu0 0.0
      %3320 = vmatmul.mubr.f32.gmra.mrb[0].mxu0 %v3152
      %v3321 = vpop.f32.mrb[0].mxu0
      %v3322 = vadd.f32 %v3138, %v3321
      %v3323 = vpop.f32.mrb[0].mxu0
      %3324 = vmatprep.mubr.f32.mxu0 0.0
      %3325 = vmatmul.mubr.f32.gmra.mrb[0].mxu0 %v3155
      %v3326 = vpop.f32.mrb[0].mxu0
      %v3327 = vadd.f32 %v3138, %v3326
      %v3328 = vpop.f32.mrb[0].mxu0
      %3329 = vmatprep.mubr.f32.mxu0 0.0
      %3330 = vmatmul.mubr.f32.gmra.mrb[0].mxu0 %v3158
      %v3331 = vpop.f32.mrb[0].mxu0
      %v3332 = vadd.f32 %v3138, %v3331
      %v3333 = vpop.f32.mrb[0].mxu0
      %3334 = vmatprep.mubr.f32.mxu0 0.0
      %3335 = vmatmul.mubr.f32.gmra.mrb[0].mxu0 %v3161
      %v3336 = vpop.f32.mrb[0].mxu0
      %v3337 = vadd.f32 %v3138, %v3336
      %v3338 = vpop.f32.mrb[0].mxu0
      %3339 = vmatprep.mubr.f32.mxu0 0.0
      %3340 = vmatmul.mubr.f32.gmra.mrb[0].mxu0 %v3164
      %v3341 = vpop.f32.mrb[0].mxu0
      %v3342 = vadd.f32 %v3138, %v3341
      %v3343 = vpop.f32.mrb[0].mxu0
      %3344 = vmatprep.mubr.f32.mxu0 0.0
      %3345 = vmatmul.mubr.f32.gmra.mrb[0].mxu0 %v3167
      %v3346 = vpop.f32.mrb[0].mxu0
      %v3347 = vadd.f32 %v3138, %v3346
      %v3348 = vpop.f32.mrb[0].mxu0
      %3349 = vmatprep.mubr.f32.mxu0 0.0
      %3350 = vmatmul.mubr.f32.gmra.mrb[0].mxu0 %v3170
      %v3351 = vpop.f32.mrb[0].mxu0
      %v3352 = vadd.f32 %v3138, %v3351
      %v3353 = vpop.f32.mrb[0].mxu0
      %3354 = vmatprep.mubr.f32.mxu0 0.0
      %3355 = vmatmul.mubr.f32.gmra.mrb[0].mxu0 %v3173
      %v3356 = vpop.f32.mrb[0].mxu0
      %v3357 = vadd.f32 %v3138, %v3356
      %v3358 = vpop.f32.mrb[0].mxu0
      %3359 = vmatprep.mubr.f32.mxu0 0.0
      %3360 = vmatmul.mubr.f32.gmra.mrb[0].mxu0 %v3176
      %v3361 = vpop.f32.mrb[0].mxu0
      %v3362 = vadd.f32 %v3138, %v3361
      %v3363 = vpop.f32.mrb[0].mxu0
      %3364 = vmatprep.mubr.f32.mxu0 0.0
      %3365 = vmatmul.mubr.f32.gmra.mrb[0].mxu0 %v3179
      %v3366 = vpop.f32.mrb[0].mxu0
      %v3367 = vadd.f32 %v3138, %v3366
      %v3368 = vpop.f32.mrb[0].mxu0
      %3369 = vmatprep.mubr.f32.mxu0 0.0
      %3370 = vmatmul.mubr.f32.gmra.mrb[0].mxu0 %v3182
      %v3371 = vpop.f32.mrb[0].mxu0
      %v3372 = vadd.f32 %v3138, %v3371
      %v3373 = vpop.f32.mrb[0].mxu0
      %3374 = vmatprep.mubr.f32.mxu0 0.0
      %3375 = vmatmul.mubr.f32.gmra.mrb[0].mxu0 %v3185
      %v3376 = vpop.f32.mrb[0].mxu0
      %v3377 = vadd.f32 %v3138, %v3376
      %v3378 = vpop.f32.mrb[0].mxu0
      %3379 = vmatprep.mubr.f32.mxu0 0.0
      %3380 = vmatmul.mubr.f32.gmra.mrb[0].mxu0 %v3188
      %v3381 = vpop.f32.mrb[0].mxu0
      %v3382 = vadd.f32 %v3138, %v3381
      %v3383 = vpop.f32.mrb[0].mxu0
      %3384 = vmatprep.mubr.f32.mxu0 0.0
      %3385 = vmatmul.mubr.f32.gmra.mrb[0].mxu0 %v3191
      %v3386 = vpop.f32.mrb[0].mxu0
      %v3387 = vadd.f32 %v3138, %v3386
      %v3388 = vpop.f32.mrb[0].mxu0
      %3389 = vmatprep.mubr.f32.mxu0 0.0
      %3390 = vmatmul.mubr.f32.gmra.mrb[0].mxu0 %v3194
      %v3391 = vpop.f32.mrb[0].mxu0
      %v3392 = vadd.f32 %v3138, %v3391
      %v3393 = vpop.f32.mrb[0].mxu0
      %3394 = vmatprep.mubr.f32.mxu0 0.0
      %3395 = vmatmul.mubr.f32.gmra.mrb[0].mxu0 %v3197
      %v3396 = vpop.f32.mrb[0].mxu0
      %v3397 = vadd.f32 %v3138, %v3396
      %v3398 = vpop.f32.mrb[0].mxu0
      %3399 = vmatprep.mubr.f32.mxu0 0.0
      %3400 = vmatmul.mubr.f32.gmra.mrb[0].mxu0 %v3200
      %v3401 = vpop.f32.mrb[0].mxu0
      %v3402 = vadd.f32 %v3138, %v3401
      %v3403 = vpop.f32.mrb[0].mxu0
      %3404 = vmatprep.mubr.f32.mxu0 0.0
      %3405 = vmatmul.mubr.f32.gmra.mrb[0].mxu0 %v3203
      %v3406 = vpop.f32.mrb[0].mxu0
      %v3407 = vadd.f32 %v3138, %v3406
      %v3408 = vpop.f32.mrb[0].mxu0
      %3409 = vmatprep.mubr.f32.mxu0 0.0
      %3410 = vmatmul.mubr.f32.gmra.mrb[0].mxu0 %v3206
      %v3411 = vpop.f32.mrb[0].mxu0
      %v3412 = vadd.f32 %v3138, %v3411
      %v3413 = vpop.f32.mrb[0].mxu0
      %3414 = vmatprep.mubr.f32.mxu0 0.0
      %3415 = vmatmul.mubr.f32.gmra.mrb[0].mxu0 %v3209
      %v3416 = vpop.f32.mrb[0].mxu0
      %v3417 = vadd.f32 %v3138, %v3416
      %v3418 = vpop.f32.mrb[0].mxu0
      %3419 = vmatprep.mubr.f32.mxu0 0.0
      %3420 = vmatmul.mubr.f32.gmra.mrb[0].mxu0 %v3212
      %v3421 = vpop.f32.mrb[0].mxu0
      %v3422 = vadd.f32 %v3138, %v3421
      %v3423 = vpop.f32.mrb[0].mxu0
      %3424 = vmatprep.mubr.f32.mxu0 0.0
      %3425 = vmatmul.mubr.f32.gmra.mrb[0].mxu0 %v3215
      %v3426 = vpop.f32.mrb[0].mxu0
      %v3427 = vadd.f32 %v3138, %v3426
      %v3428 = vpop.f32.mrb[0].mxu0
      %3429 = vmatprep.mubr.f32.mxu0 0.0
      %3430 = vmatmul.mubr.f32.gmra.mrb[0].mxu0 %v3218
      %v3431 = vpop.f32.mrb[0].mxu0
      %v3432 = vadd.f32 %v3138, %v3431
      %v3433 = vpop.f32.mrb[0].mxu0
      %3434 = vmatprep.mubr.f32.mxu0 0.0
      %3435 = vmatmul.mubr.f32.gmra.mrb[0].mxu0 %v3221
      %v3436 = vpop.f32.mrb[0].mxu0
      %v3437 = vadd.f32 %v3138, %v3436
      %v3438 = vpop.f32.mrb[0].mxu0
      %3439 = vmatprep.mubr.f32.mxu0 0.0
      %3440 = vmatmul.mubr.f32.gmra.mrb[0].mxu0 %v3224
      %v3441 = vpop.f32.mrb[0].mxu0
      %v3442 = vadd.f32 %v3138, %v3441
      %v3443 = vpop.f32.mrb[0].mxu0
      %3444 = vmatprep.mubr.f32.mxu0 0.0
      %3445 = vmatmul.mubr.f32.gmra.mrb[0].mxu0 %v3227
      %v3446 = vpop.f32.mrb[0].mxu0
      %v3447 = vadd.f32 %v3138, %v3446
      %v3448 = vpop.f32.mrb[0].mxu0
      %3449 = vmatprep.mubr.f32.mxu0 0.0
      %3450 = vmatmul.mubr.f32.gmra.mrb[0].mxu0 %v3230
      %v3451 = vpop.f32.mrb[0].mxu0
      %v3452 = vadd.f32 %v3138, %v3451
      %v3453 = vpop.f32.mrb[0].mxu0
      %3454 = vmatprep.mubr.f32.mxu0 0.0
      %3455 = vmatmul.mubr.f32.gmra.mrb[0].mxu0 %v3233
      %v3456 = vpop.f32.mrb[0].mxu0
      %v3457 = vadd.f32 %v3138, %v3456
      %v3458 = vpop.f32.mrb[0].mxu0
      %3459 = vdwg.mxu0
      %v3460 = vmax.f32 %v3302, 0.0
      %v3461 = vmax.f32 %v3307, 0.0
      %v3462 = vmax.f32 %v3312, 0.0
      %v3463 = vmax.f32 %v3317, 0.0
      %v3464 = vmax.f32 %v3322, 0.0
      %v3465 = vmax.f32 %v3327, 0.0
      %v3466 = vmax.f32 %v3332, 0.0
      %v3467 = vmax.f32 %v3337, 0.0
      %v3468 = vmax.f32 %v3342, 0.0
      %v3469 = vmax.f32 %v3347, 0.0
      %v3470 = vmax.f32 %v3352, 0.0
      %v3471 = vmax.f32 %v3357, 0.0
      %v3472 = vmax.f32 %v3362, 0.0
      %v3473 = vmax.f32 %v3367, 0.0
      %v3474 = vmax.f32 %v3372, 0.0
      %v3475 = vmax.f32 %v3377, 0.0
      %v3476 = vmax.f32 %v3382, 0.0
      %v3477 = vmax.f32 %v3387, 0.0
      %v3478 = vmax.f32 %v3392, 0.0
      %v3479 = vmax.f32 %v3397, 0.0
      %v3480 = vmax.f32 %v3402, 0.0
      %v3481 = vmax.f32 %v3407, 0.0
      %v3482 = vmax.f32 %v3412, 0.0
      %v3483 = vmax.f32 %v3417, 0.0
      %v3484 = vmax.f32 %v3422, 0.0
      %v3485 = vmax.f32 %v3427, 0.0
      %v3486 = vmax.f32 %v3432, 0.0
      %v3487 = vmax.f32 %v3437, 0.0
      %v3488 = vmax.f32 %v3442, 0.0
      %v3489 = vmax.f32 %v3447, 0.0
      %v3490 = vmax.f32 %v3452, 0.0
      %v3491 = vmax.f32 %v3457, 0.0
      %v3492 = vld [vmem:[%s1 + $0xf0] sm:$0xff]
      %v3493 = vld [vmem:[%s1 + $0xf8] sm:$0xff]
      %v3494 = vld [vmem:[%s1 + $0x100] sm:$0xff]
      %v3495 = vld [vmem:[%s1 + $0x108] sm:$0xff]
      %v3496 = vld [vmem:[%s2 + $0xc] sm:$0x1]
      %v3497 = vlaneseq
      %v3498 = vshrl.u32 %v3497, 7
      %v3499 = vsub.s32 0, %v3498
      %v3500 = vrot.slane %v3496, %v3499
      %v3502 = vsel %vm575, %v3460, 0
      %v3505 = vsel %vm575, %v3461, 0
      %v3508 = vsel %vm575, %v3462, 0
      %v3511 = vsel %vm575, %v3463, 0
      %v3514 = vsel %vm575, %v3464, 0
      %v3517 = vsel %vm575, %v3465, 0
      %v3520 = vsel %vm575, %v3466, 0
      %v3523 = vsel %vm575, %v3467, 0
      %v3526 = vsel %vm575, %v3468, 0
      %v3529 = vsel %vm575, %v3469, 0
      %v3532 = vsel %vm575, %v3470, 0
      %v3535 = vsel %vm575, %v3471, 0
      %v3538 = vsel %vm575, %v3472, 0
      %v3541 = vsel %vm575, %v3473, 0
      %v3544 = vsel %vm575, %v3474, 0
      %v3547 = vsel %vm575, %v3475, 0
      %v3550 = vsel %vm575, %v3476, 0
      %v3553 = vsel %vm575, %v3477, 0
      %v3556 = vsel %vm575, %v3478, 0
      %v3559 = vsel %vm575, %v3479, 0
      %v3562 = vsel %vm575, %v3480, 0
      %v3565 = vsel %vm575, %v3481, 0
      %v3568 = vsel %vm575, %v3482, 0
      %v3571 = vsel %vm575, %v3483, 0
      %v3574 = vsel %vm575, %v3484, 0
      %v3577 = vsel %vm575, %v3485, 0
      %v3580 = vsel %vm575, %v3486, 0
      %v3583 = vsel %vm575, %v3487, 0
      %v3586 = vsel %vm575, %v3488, 0
      %v3589 = vsel %vm575, %v3489, 0
      %v3592 = vsel %vm575, %v3490, 0
      %v3595 = vsel %vm575, %v3491, 0
      %3597 = vmatprep.subr.mxu0 0.0
      %3598 = vmatpush1.msra.mxu0 %v3492
      %3599 = vmatprep.subr.mxu0 0.0
      %3600 = vmatpush1.msra.mxu0 %v3493
      %3601 = vmatprep.subr.mxu0 0.0
      %3602 = vmatpush1.msra.mxu0 %v3494
      %3603 = vmatprep.subr.mxu0 0.0
      %3604 = vmatpush1.msra.mxu0 %v3495
      %3605 = vmatprep.subr.mxu0 0.0
      %3606 = vmatpush1.msra.mxu0 0.0
      %3607 = vmatprep.subr.mxu0 0.0
      %3608 = vmatpush1.msra.mxu0 0.0
      %3609 = vmatprep.subr.mxu0 0.0
      %3610 = vmatpush1.msra.mxu0 0.0
      %3611 = vmatprep.subr.mxu0 0.0
      %3612 = vmatpush1.msra.mxu0 0.0
      %3613 = vmatprep.subr.mxu0 0.0
      %3614 = vmatpush1.msra.mxu0 0.0
      %3615 = vmatprep.subr.mxu0 0.0
      %3616 = vmatpush1.msra.mxu0 0.0
      %3617 = vmatprep.subr.mxu0 0.0
      %3618 = vmatpush1.msra.mxu0 0.0
      %3619 = vmatprep.subr.mxu0 0.0
      %3620 = vmatpush1.msra.mxu0 0.0
      %3621 = vmatprep.subr.mxu0 0.0
      %3622 = vmatpush1.msra.mxu0 0.0
      %3623 = vmatprep.subr.mxu0 0.0
      %3624 = vmatpush1.msra.mxu0 0.0
      %3625 = vmatprep.subr.mxu0 0.0
      %3626 = vmatpush1.msra.mxu0 0.0
      %3627 = vmatprep.subr.mxu0 0.0
      %3628 = vmatpush1.msra.mxu0 0.0
      %3629 = vmatprep.subr.mxu0 0.0
      %3630 = vmatpush1.msra.mxu0 0.0
      %3631 = vmatprep.subr.mxu0 0.0
      %3632 = vmatpush1.msra.mxu0 0.0
      %3633 = vmatprep.subr.mxu0 0.0
      %3634 = vmatpush1.msra.mxu0 0.0
      %3635 = vmatprep.subr.mxu0 0.0
      %3636 = vmatpush1.msra.mxu0 0.0
      %3637 = vmatprep.subr.mxu0 0.0
      %3638 = vmatpush1.msra.mxu0 0.0
      %3639 = vmatprep.subr.mxu0 0.0
      %3640 = vmatpush1.msra.mxu0 0.0
      %3641 = vmatprep.subr.mxu0 0.0
      %3642 = vmatpush1.msra.mxu0 0.0
      %3643 = vmatprep.subr.mxu0 0.0
      %3644 = vmatpush1.msra.mxu0 0.0
      %3645 = vmatprep.subr.mxu0 0.0
      %3646 = vmatpush1.msra.mxu0 0.0
      %3647 = vmatprep.subr.mxu0 0.0
      %3648 = vmatpush1.msra.mxu0 0.0
      %3649 = vmatprep.subr.mxu0 0.0
      %3650 = vmatpush1.msra.mxu0 0.0
      %3651 = vmatprep.subr.mxu0 0.0
      %3652 = vmatpush1.msra.mxu0 0.0
      %3653 = vmatprep.subr.mxu0 0.0
      %3654 = vmatpush1.msra.mxu0 0.0
      %3655 = vmatprep.subr.mxu0 0.0
      %3656 = vmatpush1.msra.mxu0 0.0
      %3657 = vmatprep.subr.mxu0 0.0
      %3658 = vmatpush1.msra.mxu0 0.0
      %3659 = vmatprep.subr.mxu0 0.0
      %3660 = vmatpush1.msra.mxu0 0.0
      %3661 = vmatprep.mubr.f32.mxu0 0.0
      %3662 = vmatmul.mubr.f32.gmra.mrb[0].mxu0 %v3502
      %v3663 = vpop.f32.mrb[0].mxu0
      %v3664 = vadd.f32 %v3500, %v3663
      %v3665 = vpop.f32.mrb[0].mxu0
      %3666 = vmatprep.mubr.f32.mxu0 0.0
      %3667 = vmatmul.mubr.f32.gmra.mrb[0].mxu0 %v3505
      %v3668 = vpop.f32.mrb[0].mxu0
      %v3669 = vadd.f32 %v3500, %v3668
      %v3670 = vpop.f32.mrb[0].mxu0
      %3671 = vmatprep.mubr.f32.mxu0 0.0
      %3672 = vmatmul.mubr.f32.gmra.mrb[0].mxu0 %v3508
      %v3673 = vpop.f32.mrb[0].mxu0
      %v3674 = vadd.f32 %v3500, %v3673
      %v3675 = vpop.f32.mrb[0].mxu0
      %3676 = vmatprep.mubr.f32.mxu0 0.0
      %3677 = vmatmul.mubr.f32.gmra.mrb[0].mxu0 %v3511
      %v3678 = vpop.f32.mrb[0].mxu0
      %v3679 = vadd.f32 %v3500, %v3678
      %v3680 = vpop.f32.mrb[0].mxu0
      %3681 = vmatprep.mubr.f32.mxu0 0.0
      %3682 = vmatmul.mubr.f32.gmra.mrb[0].mxu0 %v3514
      %v3683 = vpop.f32.mrb[0].mxu0
      %v3684 = vadd.f32 %v3500, %v3683
      %v3685 = vpop.f32.mrb[0].mxu0
      %3686 = vmatprep.mubr.f32.mxu0 0.0
      %3687 = vmatmul.mubr.f32.gmra.mrb[0].mxu0 %v3517
      %v3688 = vpop.f32.mrb[0].mxu0
      %v3689 = vadd.f32 %v3500, %v3688
      %v3690 = vpop.f32.mrb[0].mxu0
      %3691 = vmatprep.mubr.f32.mxu0 0.0
      %3692 = vmatmul.mubr.f32.gmra.mrb[0].mxu0 %v3520
      %v3693 = vpop.f32.mrb[0].mxu0
      %v3694 = vadd.f32 %v3500, %v3693
      %v3695 = vpop.f32.mrb[0].mxu0
      %3696 = vmatprep.mubr.f32.mxu0 0.0
      %3697 = vmatmul.mubr.f32.gmra.mrb[0].mxu0 %v3523
      %v3698 = vpop.f32.mrb[0].mxu0
      %v3699 = vadd.f32 %v3500, %v3698
      %v3700 = vpop.f32.mrb[0].mxu0
      %3701 = vmatprep.mubr.f32.mxu0 0.0
      %3702 = vmatmul.mubr.f32.gmra.mrb[0].mxu0 %v3526
      %v3703 = vpop.f32.mrb[0].mxu0
      %v3704 = vadd.f32 %v3500, %v3703
      %v3705 = vpop.f32.mrb[0].mxu0
      %3706 = vmatprep.mubr.f32.mxu0 0.0
      %3707 = vmatmul.mubr.f32.gmra.mrb[0].mxu0 %v3529
      %v3708 = vpop.f32.mrb[0].mxu0
      %v3709 = vadd.f32 %v3500, %v3708
      %v3710 = vpop.f32.mrb[0].mxu0
      %3711 = vmatprep.mubr.f32.mxu0 0.0
      %3712 = vmatmul.mubr.f32.gmra.mrb[0].mxu0 %v3532
      %v3713 = vpop.f32.mrb[0].mxu0
      %v3714 = vadd.f32 %v3500, %v3713
      %v3715 = vpop.f32.mrb[0].mxu0
      %3716 = vmatprep.mubr.f32.mxu0 0.0
      %3717 = vmatmul.mubr.f32.gmra.mrb[0].mxu0 %v3535
      %v3718 = vpop.f32.mrb[0].mxu0
      %v3719 = vadd.f32 %v3500, %v3718
      %v3720 = vpop.f32.mrb[0].mxu0
      %3721 = vmatprep.mubr.f32.mxu0 0.0
      %3722 = vmatmul.mubr.f32.gmra.mrb[0].mxu0 %v3538
      %v3723 = vpop.f32.mrb[0].mxu0
      %v3724 = vadd.f32 %v3500, %v3723
      %v3725 = vpop.f32.mrb[0].mxu0
      %3726 = vmatprep.mubr.f32.mxu0 0.0
      %3727 = vmatmul.mubr.f32.gmra.mrb[0].mxu0 %v3541
      %v3728 = vpop.f32.mrb[0].mxu0
      %v3729 = vadd.f32 %v3500, %v3728
      %v3730 = vpop.f32.mrb[0].mxu0
      %3731 = vmatprep.mubr.f32.mxu0 0.0
      %3732 = vmatmul.mubr.f32.gmra.mrb[0].mxu0 %v3544
      %v3733 = vpop.f32.mrb[0].mxu0
      %v3734 = vadd.f32 %v3500, %v3733
      %v3735 = vpop.f32.mrb[0].mxu0
      %3736 = vmatprep.mubr.f32.mxu0 0.0
      %3737 = vmatmul.mubr.f32.gmra.mrb[0].mxu0 %v3547
      %v3738 = vpop.f32.mrb[0].mxu0
      %v3739 = vadd.f32 %v3500, %v3738
      %v3740 = vpop.f32.mrb[0].mxu0
      %3741 = vmatprep.mubr.f32.mxu0 0.0
      %3742 = vmatmul.mubr.f32.gmra.mrb[0].mxu0 %v3550
      %v3743 = vpop.f32.mrb[0].mxu0
      %v3744 = vadd.f32 %v3500, %v3743
      %v3745 = vpop.f32.mrb[0].mxu0
      %3746 = vmatprep.mubr.f32.mxu0 0.0
      %3747 = vmatmul.mubr.f32.gmra.mrb[0].mxu0 %v3553
      %v3748 = vpop.f32.mrb[0].mxu0
      %v3749 = vadd.f32 %v3500, %v3748
      %v3750 = vpop.f32.mrb[0].mxu0
      %3751 = vmatprep.mubr.f32.mxu0 0.0
      %3752 = vmatmul.mubr.f32.gmra.mrb[0].mxu0 %v3556
      %v3753 = vpop.f32.mrb[0].mxu0
      %v3754 = vadd.f32 %v3500, %v3753
      %v3755 = vpop.f32.mrb[0].mxu0
      %3756 = vmatprep.mubr.f32.mxu0 0.0
      %3757 = vmatmul.mubr.f32.gmra.mrb[0].mxu0 %v3559
      %v3758 = vpop.f32.mrb[0].mxu0
      %v3759 = vadd.f32 %v3500, %v3758
      %v3760 = vpop.f32.mrb[0].mxu0
      %3761 = vmatprep.mubr.f32.mxu0 0.0
      %3762 = vmatmul.mubr.f32.gmra.mrb[0].mxu0 %v3562
      %v3763 = vpop.f32.mrb[0].mxu0
      %v3764 = vadd.f32 %v3500, %v3763
      %v3765 = vpop.f32.mrb[0].mxu0
      %3766 = vmatprep.mubr.f32.mxu0 0.0
      %3767 = vmatmul.mubr.f32.gmra.mrb[0].mxu0 %v3565
      %v3768 = vpop.f32.mrb[0].mxu0
      %v3769 = vadd.f32 %v3500, %v3768
      %v3770 = vpop.f32.mrb[0].mxu0
      %3771 = vmatprep.mubr.f32.mxu0 0.0
      %3772 = vmatmul.mubr.f32.gmra.mrb[0].mxu0 %v3568
      %v3773 = vpop.f32.mrb[0].mxu0
      %v3774 = vadd.f32 %v3500, %v3773
      %v3775 = vpop.f32.mrb[0].mxu0
      %3776 = vmatprep.mubr.f32.mxu0 0.0
      %3777 = vmatmul.mubr.f32.gmra.mrb[0].mxu0 %v3571
      %v3778 = vpop.f32.mrb[0].mxu0
      %v3779 = vadd.f32 %v3500, %v3778
      %v3780 = vpop.f32.mrb[0].mxu0
      %3781 = vmatprep.mubr.f32.mxu0 0.0
      %3782 = vmatmul.mubr.f32.gmra.mrb[0].mxu0 %v3574
      %v3783 = vpop.f32.mrb[0].mxu0
      %v3784 = vadd.f32 %v3500, %v3783
      %v3785 = vpop.f32.mrb[0].mxu0
      %3786 = vmatprep.mubr.f32.mxu0 0.0
      %3787 = vmatmul.mubr.f32.gmra.mrb[0].mxu0 %v3577
      %v3788 = vpop.f32.mrb[0].mxu0
      %v3789 = vadd.f32 %v3500, %v3788
      %v3790 = vpop.f32.mrb[0].mxu0
      %3791 = vmatprep.mubr.f32.mxu0 0.0
      %3792 = vmatmul.mubr.f32.gmra.mrb[0].mxu0 %v3580
      %v3793 = vpop.f32.mrb[0].mxu0
      %v3794 = vadd.f32 %v3500, %v3793
      %v3795 = vpop.f32.mrb[0].mxu0
      %3796 = vmatprep.mubr.f32.mxu0 0.0
      %3797 = vmatmul.mubr.f32.gmra.mrb[0].mxu0 %v3583
      %v3798 = vpop.f32.mrb[0].mxu0
      %v3799 = vadd.f32 %v3500, %v3798
      %v3800 = vpop.f32.mrb[0].mxu0
      %3801 = vmatprep.mubr.f32.mxu0 0.0
      %3802 = vmatmul.mubr.f32.gmra.mrb[0].mxu0 %v3586
      %v3803 = vpop.f32.mrb[0].mxu0
      %v3804 = vadd.f32 %v3500, %v3803
      %v3805 = vpop.f32.mrb[0].mxu0
      %3806 = vmatprep.mubr.f32.mxu0 0.0
      %3807 = vmatmul.mubr.f32.gmra.mrb[0].mxu0 %v3589
      %v3808 = vpop.f32.mrb[0].mxu0
      %v3809 = vadd.f32 %v3500, %v3808
      %v3810 = vpop.f32.mrb[0].mxu0
      %3811 = vmatprep.mubr.f32.mxu0 0.0
      %3812 = vmatmul.mubr.f32.gmra.mrb[0].mxu0 %v3592
      %v3813 = vpop.f32.mrb[0].mxu0
      %v3814 = vadd.f32 %v3500, %v3813
      %v3815 = vpop.f32.mrb[0].mxu0
      %3816 = vmatprep.mubr.f32.mxu0 0.0
      %3817 = vmatmul.mubr.f32.gmra.mrb[0].mxu0 %v3595
      %v3818 = vpop.f32.mrb[0].mxu0
      %v3819 = vadd.f32 %v3500, %v3818
      %v3820 = vpop.f32.mrb[0].mxu0
      %3821 = vdwg.mxu0
      %v3822 = vsub.f32 %v1983, %v3664
      %v3823 = vsub.f32 %v1984, %v3669
      %v3824 = vsub.f32 %v1985, %v3674
      %v3825 = vsub.f32 %v1986, %v3679
      %v3826 = vsub.f32 %v1987, %v3684
      %v3827 = vsub.f32 %v1988, %v3689
      %v3828 = vsub.f32 %v1989, %v3694
      %v3829 = vsub.f32 %v1990, %v3699
      %v3830 = vsub.f32 %v1991, %v3704
      %v3831 = vsub.f32 %v1992, %v3709
      %v3832 = vsub.f32 %v1993, %v3714
      %v3833 = vsub.f32 %v1994, %v3719
      %v3834 = vsub.f32 %v1995, %v3724
      %v3835 = vsub.f32 %v1996, %v3729
      %v3836 = vsub.f32 %v1997, %v3734
      %v3837 = vsub.f32 %v1998, %v3739
      %v3838 = vsub.f32 %v1999, %v3744
      %v3839 = vsub.f32 %v2000, %v3749
      %v3840 = vsub.f32 %v2001, %v3754
      %v3841 = vsub.f32 %v2002, %v3759
      %v3842 = vsub.f32 %v2003, %v3764
      %v3843 = vsub.f32 %v2004, %v3769
      %v3844 = vsub.f32 %v2005, %v3774
      %v3845 = vsub.f32 %v2006, %v3779
      %v3846 = vsub.f32 %v2007, %v3784
      %v3847 = vsub.f32 %v2008, %v3789
      %v3848 = vsub.f32 %v2009, %v3794
      %v3849 = vsub.f32 %v2010, %v3799
      %v3850 = vsub.f32 %v2011, %v3804
      %v3851 = vsub.f32 %v2012, %v3809
      %v3852 = vsub.f32 %v2013, %v3814
      %v3853 = vsub.f32 %v2014, %v3819
      %v3854 = vadd.f32 %v2015, %v3664
      %v3855 = vadd.f32 %v2016, %v3669
      %v3856 = vadd.f32 %v2017, %v3674
      %v3857 = vadd.f32 %v2018, %v3679
      %v3858 = vadd.f32 %v2019, %v3684
      %v3859 = vadd.f32 %v2020, %v3689
      %v3860 = vadd.f32 %v2021, %v3694
      %v3861 = vadd.f32 %v2022, %v3699
      %v3862 = vadd.f32 %v2023, %v3704
      %v3863 = vadd.f32 %v2024, %v3709
      %v3864 = vadd.f32 %v2025, %v3714
      %v3865 = vadd.f32 %v2026, %v3719
      %v3866 = vadd.f32 %v2027, %v3724
      %v3867 = vadd.f32 %v2028, %v3729
      %v3868 = vadd.f32 %v2029, %v3734
      %v3869 = vadd.f32 %v2030, %v3739
      %v3870 = vadd.f32 %v2031, %v3744
      %v3871 = vadd.f32 %v2032, %v3749
      %v3872 = vadd.f32 %v2033, %v3754
      %v3873 = vadd.f32 %v2034, %v3759
      %v3874 = vadd.f32 %v2035, %v3764
      %v3875 = vadd.f32 %v2036, %v3769
      %v3876 = vadd.f32 %v2037, %v3774
      %v3877 = vadd.f32 %v2038, %v3779
      %v3878 = vadd.f32 %v2039, %v3784
      %v3879 = vadd.f32 %v2040, %v3789
      %v3880 = vadd.f32 %v2041, %v3794
      %v3881 = vadd.f32 %v2042, %v3799
      %v3882 = vadd.f32 %v2043, %v3804
      %v3883 = vadd.f32 %v2044, %v3809
      %v3884 = vadd.f32 %v2045, %v3814
      %v3885 = vadd.f32 %v2046, %v3819
      %v3886 = vld [vmem:[%s1 + $0x110] sm:$0xff]
      %v3887 = vld [vmem:[%s2 + $0x10] sm:$0x1]
      %v3888 = vlaneseq
      %v3889 = vshrl.u32 %v3888, 7
      %v3890 = vsub.s32 0, %v3889
      %v3891 = vrot.slane %v3887, %v3890
      %v3893 = vsel %vm212, %v3822, 0
      %v3896 = vsel %vm212, %v3823, 0
      %v3899 = vsel %vm212, %v3824, 0
      %v3902 = vsel %vm212, %v3825, 0
      %v3905 = vsel %vm212, %v3826, 0
      %v3908 = vsel %vm212, %v3827, 0
      %v3911 = vsel %vm212, %v3828, 0
      %v3914 = vsel %vm212, %v3829, 0
      %v3917 = vsel %vm212, %v3830, 0
      %v3920 = vsel %vm212, %v3831, 0
      %v3923 = vsel %vm212, %v3832, 0
      %v3926 = vsel %vm212, %v3833, 0
      %v3929 = vsel %vm212, %v3834, 0
      %v3932 = vsel %vm212, %v3835, 0
      %v3935 = vsel %vm212, %v3836, 0
      %v3938 = vsel %vm212, %v3837, 0
      %v3941 = vsel %vm212, %v3838, 0
      %v3944 = vsel %vm212, %v3839, 0
      %v3947 = vsel %vm212, %v3840, 0
      %v3950 = vsel %vm212, %v3841, 0
      %v3953 = vsel %vm212, %v3842, 0
      %v3956 = vsel %vm212, %v3843, 0
      %v3959 = vsel %vm212, %v3844, 0
      %v3962 = vsel %vm212, %v3845, 0
      %v3965 = vsel %vm212, %v3846, 0
      %v3968 = vsel %vm212, %v3847, 0
      %v3971 = vsel %vm212, %v3848, 0
      %v3974 = vsel %vm212, %v3849, 0
      %v3977 = vsel %vm212, %v3850, 0
      %v3980 = vsel %vm212, %v3851, 0
      %v3983 = vsel %vm212, %v3852, 0
      %v3986 = vsel %vm212, %v3853, 0
      %3988 = vmatprep.subr.mxu0 0.0
      %3989 = vmatpush1.msra.mxu0 %v3886
      %3990 = vmatprep.subr.mxu0 0.0
      %3991 = vmatpush1.msra.mxu0 0.0
      %3992 = vmatprep.subr.mxu0 0.0
      %3993 = vmatpush1.msra.mxu0 0.0
      %3994 = vmatprep.subr.mxu0 0.0
      %3995 = vmatpush1.msra.mxu0 0.0
      %3996 = vmatprep.subr.mxu0 0.0
      %3997 = vmatpush1.msra.mxu0 0.0
      %3998 = vmatprep.subr.mxu0 0.0
      %3999 = vmatpush1.msra.mxu0 0.0
      %4000 = vmatprep.subr.mxu0 0.0
      %4001 = vmatpush1.msra.mxu0 0.0
      %4002 = vmatprep.subr.mxu0 0.0
      %4003 = vmatpush1.msra.mxu0 0.0
      %4004 = vmatprep.subr.mxu0 0.0
      %4005 = vmatpush1.msra.mxu0 0.0
      %4006 = vmatprep.subr.mxu0 0.0
      %4007 = vmatpush1.msra.mxu0 0.0
      %4008 = vmatprep.subr.mxu0 0.0
      %4009 = vmatpush1.msra.mxu0 0.0
      %4010 = vmatprep.subr.mxu0 0.0
      %4011 = vmatpush1.msra.mxu0 0.0
      %4012 = vmatprep.subr.mxu0 0.0
      %4013 = vmatpush1.msra.mxu0 0.0
      %4014 = vmatprep.subr.mxu0 0.0
      %4015 = vmatpush1.msra.mxu0 0.0
      %4016 = vmatprep.subr.mxu0 0.0
      %4017 = vmatpush1.msra.mxu0 0.0
      %4018 = vmatprep.subr.mxu0 0.0
      %4019 = vmatpush1.msra.mxu0 0.0
      %4020 = vmatprep.subr.mxu0 0.0
      %4021 = vmatpush1.msra.mxu0 0.0
      %4022 = vmatprep.subr.mxu0 0.0
      %4023 = vmatpush1.msra.mxu0 0.0
      %4024 = vmatprep.subr.mxu0 0.0
      %4025 = vmatpush1.msra.mxu0 0.0
      %4026 = vmatprep.subr.mxu0 0.0
      %4027 = vmatpush1.msra.mxu0 0.0
      %4028 = vmatprep.subr.mxu0 0.0
      %4029 = vmatpush1.msra.mxu0 0.0
      %4030 = vmatprep.subr.mxu0 0.0
      %4031 = vmatpush1.msra.mxu0 0.0
      %4032 = vmatprep.subr.mxu0 0.0
      %4033 = vmatpush1.msra.mxu0 0.0
      %4034 = vmatprep.subr.mxu0 0.0
      %4035 = vmatpush1.msra.mxu0 0.0
      %4036 = vmatprep.subr.mxu0 0.0
      %4037 = vmatpush1.msra.mxu0 0.0
      %4038 = vmatprep.subr.mxu0 0.0
      %4039 = vmatpush1.msra.mxu0 0.0
      %4040 = vmatprep.subr.mxu0 0.0
      %4041 = vmatpush1.msra.mxu0 0.0
      %4042 = vmatprep.subr.mxu0 0.0
      %4043 = vmatpush1.msra.mxu0 0.0
      %4044 = vmatprep.subr.mxu0 0.0
      %4045 = vmatpush1.msra.mxu0 0.0
      %4046 = vmatprep.subr.mxu0 0.0
      %4047 = vmatpush1.msra.mxu0 0.0
      %4048 = vmatprep.subr.mxu0 0.0
      %4049 = vmatpush1.msra.mxu0 0.0
      %4050 = vmatprep.subr.mxu0 0.0
      %4051 = vmatpush1.msra.mxu0 0.0
      %4052 = vmatprep.mubr.f32.mxu0 0.0
      %4053 = vmatmul.mubr.f32.gmra.mrb[0].mxu0 %v3893
      %v4054 = vpop.f32.mrb[0].mxu0
      %v4055 = vadd.f32 %v3891, %v4054
      %v4056 = vpop.f32.mrb[0].mxu0
      %4057 = vmatprep.mubr.f32.mxu0 0.0
      %4058 = vmatmul.mubr.f32.gmra.mrb[0].mxu0 %v3896
      %v4059 = vpop.f32.mrb[0].mxu0
      %v4060 = vadd.f32 %v3891, %v4059
      %v4061 = vpop.f32.mrb[0].mxu0
      %4062 = vmatprep.mubr.f32.mxu0 0.0
      %4063 = vmatmul.mubr.f32.gmra.mrb[0].mxu0 %v3899
      %v4064 = vpop.f32.mrb[0].mxu0
      %v4065 = vadd.f32 %v3891, %v4064
      %v4066 = vpop.f32.mrb[0].mxu0
      %4067 = vmatprep.mubr.f32.mxu0 0.0
      %4068 = vmatmul.mubr.f32.gmra.mrb[0].mxu0 %v3902
      %v4069 = vpop.f32.mrb[0].mxu0
      %v4070 = vadd.f32 %v3891, %v4069
      %v4071 = vpop.f32.mrb[0].mxu0
      %4072 = vmatprep.mubr.f32.mxu0 0.0
      %4073 = vmatmul.mubr.f32.gmra.mrb[0].mxu0 %v3905
      %v4074 = vpop.f32.mrb[0].mxu0
      %v4075 = vadd.f32 %v3891, %v4074
      %v4076 = vpop.f32.mrb[0].mxu0
      %4077 = vmatprep.mubr.f32.mxu0 0.0
      %4078 = vmatmul.mubr.f32.gmra.mrb[0].mxu0 %v3908
      %v4079 = vpop.f32.mrb[0].mxu0
      %v4080 = vadd.f32 %v3891, %v4079
      %v4081 = vpop.f32.mrb[0].mxu0
      %4082 = vmatprep.mubr.f32.mxu0 0.0
      %4083 = vmatmul.mubr.f32.gmra.mrb[0].mxu0 %v3911
      %v4084 = vpop.f32.mrb[0].mxu0
      %v4085 = vadd.f32 %v3891, %v4084
      %v4086 = vpop.f32.mrb[0].mxu0
      %4087 = vmatprep.mubr.f32.mxu0 0.0
      %4088 = vmatmul.mubr.f32.gmra.mrb[0].mxu0 %v3914
      %v4089 = vpop.f32.mrb[0].mxu0
      %v4090 = vadd.f32 %v3891, %v4089
      %v4091 = vpop.f32.mrb[0].mxu0
      %4092 = vmatprep.mubr.f32.mxu0 0.0
      %4093 = vmatmul.mubr.f32.gmra.mrb[0].mxu0 %v3917
      %v4094 = vpop.f32.mrb[0].mxu0
      %v4095 = vadd.f32 %v3891, %v4094
      %v4096 = vpop.f32.mrb[0].mxu0
      %4097 = vmatprep.mubr.f32.mxu0 0.0
      %4098 = vmatmul.mubr.f32.gmra.mrb[0].mxu0 %v3920
      %v4099 = vpop.f32.mrb[0].mxu0
      %v4100 = vadd.f32 %v3891, %v4099
      %v4101 = vpop.f32.mrb[0].mxu0
      %4102 = vmatprep.mubr.f32.mxu0 0.0
      %4103 = vmatmul.mubr.f32.gmra.mrb[0].mxu0 %v3923
      %v4104 = vpop.f32.mrb[0].mxu0
      %v4105 = vadd.f32 %v3891, %v4104
      %v4106 = vpop.f32.mrb[0].mxu0
      %4107 = vmatprep.mubr.f32.mxu0 0.0
      %4108 = vmatmul.mubr.f32.gmra.mrb[0].mxu0 %v3926
      %v4109 = vpop.f32.mrb[0].mxu0
      %v4110 = vadd.f32 %v3891, %v4109
      %v4111 = vpop.f32.mrb[0].mxu0
      %4112 = vmatprep.mubr.f32.mxu0 0.0
      %4113 = vmatmul.mubr.f32.gmra.mrb[0].mxu0 %v3929
      %v4114 = vpop.f32.mrb[0].mxu0
      %v4115 = vadd.f32 %v3891, %v4114
      %v4116 = vpop.f32.mrb[0].mxu0
      %4117 = vmatprep.mubr.f32.mxu0 0.0
      %4118 = vmatmul.mubr.f32.gmra.mrb[0].mxu0 %v3932
      %v4119 = vpop.f32.mrb[0].mxu0
      %v4120 = vadd.f32 %v3891, %v4119
      %v4121 = vpop.f32.mrb[0].mxu0
      %4122 = vmatprep.mubr.f32.mxu0 0.0
      %4123 = vmatmul.mubr.f32.gmra.mrb[0].mxu0 %v3935
      %v4124 = vpop.f32.mrb[0].mxu0
      %v4125 = vadd.f32 %v3891, %v4124
      %v4126 = vpop.f32.mrb[0].mxu0
      %4127 = vmatprep.mubr.f32.mxu0 0.0
      %4128 = vmatmul.mubr.f32.gmra.mrb[0].mxu0 %v3938
      %v4129 = vpop.f32.mrb[0].mxu0
      %v4130 = vadd.f32 %v3891, %v4129
      %v4131 = vpop.f32.mrb[0].mxu0
      %4132 = vmatprep.mubr.f32.mxu0 0.0
      %4133 = vmatmul.mubr.f32.gmra.mrb[0].mxu0 %v3941
      %v4134 = vpop.f32.mrb[0].mxu0
      %v4135 = vadd.f32 %v3891, %v4134
      %v4136 = vpop.f32.mrb[0].mxu0
      %4137 = vmatprep.mubr.f32.mxu0 0.0
      %4138 = vmatmul.mubr.f32.gmra.mrb[0].mxu0 %v3944
      %v4139 = vpop.f32.mrb[0].mxu0
      %v4140 = vadd.f32 %v3891, %v4139
      %v4141 = vpop.f32.mrb[0].mxu0
      %4142 = vmatprep.mubr.f32.mxu0 0.0
      %4143 = vmatmul.mubr.f32.gmra.mrb[0].mxu0 %v3947
      %v4144 = vpop.f32.mrb[0].mxu0
      %v4145 = vadd.f32 %v3891, %v4144
      %v4146 = vpop.f32.mrb[0].mxu0
      %4147 = vmatprep.mubr.f32.mxu0 0.0
      %4148 = vmatmul.mubr.f32.gmra.mrb[0].mxu0 %v3950
      %v4149 = vpop.f32.mrb[0].mxu0
      %v4150 = vadd.f32 %v3891, %v4149
      %v4151 = vpop.f32.mrb[0].mxu0
      %4152 = vmatprep.mubr.f32.mxu0 0.0
      %4153 = vmatmul.mubr.f32.gmra.mrb[0].mxu0 %v3953
      %v4154 = vpop.f32.mrb[0].mxu0
      %v4155 = vadd.f32 %v3891, %v4154
      %v4156 = vpop.f32.mrb[0].mxu0
      %4157 = vmatprep.mubr.f32.mxu0 0.0
      %4158 = vmatmul.mubr.f32.gmra.mrb[0].mxu0 %v3956
      %v4159 = vpop.f32.mrb[0].mxu0
      %v4160 = vadd.f32 %v3891, %v4159
      %v4161 = vpop.f32.mrb[0].mxu0
      %4162 = vmatprep.mubr.f32.mxu0 0.0
      %4163 = vmatmul.mubr.f32.gmra.mrb[0].mxu0 %v3959
      %v4164 = vpop.f32.mrb[0].mxu0
      %v4165 = vadd.f32 %v3891, %v4164
      %v4166 = vpop.f32.mrb[0].mxu0
      %4167 = vmatprep.mubr.f32.mxu0 0.0
      %4168 = vmatmul.mubr.f32.gmra.mrb[0].mxu0 %v3962
      %v4169 = vpop.f32.mrb[0].mxu0
      %v4170 = vadd.f32 %v3891, %v4169
      %v4171 = vpop.f32.mrb[0].mxu0
      %4172 = vmatprep.mubr.f32.mxu0 0.0
      %4173 = vmatmul.mubr.f32.gmra.mrb[0].mxu0 %v3965
      %v4174 = vpop.f32.mrb[0].mxu0
      %v4175 = vadd.f32 %v3891, %v4174
      %v4176 = vpop.f32.mrb[0].mxu0
      %4177 = vmatprep.mubr.f32.mxu0 0.0
      %4178 = vmatmul.mubr.f32.gmra.mrb[0].mxu0 %v3968
      %v4179 = vpop.f32.mrb[0].mxu0
      %v4180 = vadd.f32 %v3891, %v4179
      %v4181 = vpop.f32.mrb[0].mxu0
      %4182 = vmatprep.mubr.f32.mxu0 0.0
      %4183 = vmatmul.mubr.f32.gmra.mrb[0].mxu0 %v3971
      %v4184 = vpop.f32.mrb[0].mxu0
      %v4185 = vadd.f32 %v3891, %v4184
      %v4186 = vpop.f32.mrb[0].mxu0
      %4187 = vmatprep.mubr.f32.mxu0 0.0
      %4188 = vmatmul.mubr.f32.gmra.mrb[0].mxu0 %v3974
      %v4189 = vpop.f32.mrb[0].mxu0
      %v4190 = vadd.f32 %v3891, %v4189
      %v4191 = vpop.f32.mrb[0].mxu0
      %4192 = vmatprep.mubr.f32.mxu0 0.0
      %4193 = vmatmul.mubr.f32.gmra.mrb[0].mxu0 %v3977
      %v4194 = vpop.f32.mrb[0].mxu0
      %v4195 = vadd.f32 %v3891, %v4194
      %v4196 = vpop.f32.mrb[0].mxu0
      %4197 = vmatprep.mubr.f32.mxu0 0.0
      %4198 = vmatmul.mubr.f32.gmra.mrb[0].mxu0 %v3980
      %v4199 = vpop.f32.mrb[0].mxu0
      %v4200 = vadd.f32 %v3891, %v4199
      %v4201 = vpop.f32.mrb[0].mxu0
      %4202 = vmatprep.mubr.f32.mxu0 0.0
      %4203 = vmatmul.mubr.f32.gmra.mrb[0].mxu0 %v3983
      %v4204 = vpop.f32.mrb[0].mxu0
      %v4205 = vadd.f32 %v3891, %v4204
      %v4206 = vpop.f32.mrb[0].mxu0
      %4207 = vmatprep.mubr.f32.mxu0 0.0
      %4208 = vmatmul.mubr.f32.gmra.mrb[0].mxu0 %v3986
      %v4209 = vpop.f32.mrb[0].mxu0
      %v4210 = vadd.f32 %v3891, %v4209
      %v4211 = vpop.f32.mrb[0].mxu0
      %4212 = vdwg.mxu0
      %v4213 = vmax.f32 %v4055, 0.0
      %v4214 = vmax.f32 %v4060, 0.0
      %v4215 = vmax.f32 %v4065, 0.0
      %v4216 = vmax.f32 %v4070, 0.0
      %v4217 = vmax.f32 %v4075, 0.0
      %v4218 = vmax.f32 %v4080, 0.0
      %v4219 = vmax.f32 %v4085, 0.0
      %v4220 = vmax.f32 %v4090, 0.0
      %v4221 = vmax.f32 %v4095, 0.0
      %v4222 = vmax.f32 %v4100, 0.0
      %v4223 = vmax.f32 %v4105, 0.0
      %v4224 = vmax.f32 %v4110, 0.0
      %v4225 = vmax.f32 %v4115, 0.0
      %v4226 = vmax.f32 %v4120, 0.0
      %v4227 = vmax.f32 %v4125, 0.0
      %v4228 = vmax.f32 %v4130, 0.0
      %v4229 = vmax.f32 %v4135, 0.0
      %v4230 = vmax.f32 %v4140, 0.0
      %v4231 = vmax.f32 %v4145, 0.0
      %v4232 = vmax.f32 %v4150, 0.0
      %v4233 = vmax.f32 %v4155, 0.0
      %v4234 = vmax.f32 %v4160, 0.0
      %v4235 = vmax.f32 %v4165, 0.0
      %v4236 = vmax.f32 %v4170, 0.0
      %v4237 = vmax.f32 %v4175, 0.0
      %v4238 = vmax.f32 %v4180, 0.0
      %v4239 = vmax.f32 %v4185, 0.0
      %v4240 = vmax.f32 %v4190, 0.0
      %v4241 = vmax.f32 %v4195, 0.0
      %v4242 = vmax.f32 %v4200, 0.0
      %v4243 = vmax.f32 %v4205, 0.0
      %v4244 = vmax.f32 %v4210, 0.0
      %v4245 = vld [vmem:[%s1 + $0x118] sm:$0xff]
      %v4246 = vld [vmem:[%s1 + $0x120] sm:$0xff]
      %v4247 = vld [vmem:[%s1 + $0x128] sm:$0xff]
      %v4248 = vld [vmem:[%s1 + $0x130] sm:$0xff]
      %v4249 = vld [vmem:[%s2 + $0x11] sm:$0x1]
      %v4250 = vlaneseq
      %v4251 = vshrl.u32 %v4250, 7
      %v4252 = vsub.s32 0, %v4251
      %v4253 = vrot.slane %v4249, %v4252
      %v4255 = vsel %vm575, %v4213, 0
      %v4258 = vsel %vm575, %v4214, 0
      %v4261 = vsel %vm575, %v4215, 0
      %v4264 = vsel %vm575, %v4216, 0
      %v4267 = vsel %vm575, %v4217, 0
      %v4270 = vsel %vm575, %v4218, 0
      %v4273 = vsel %vm575, %v4219, 0
      %v4276 = vsel %vm575, %v4220, 0
      %v4279 = vsel %vm575, %v4221, 0
      %v4282 = vsel %vm575, %v4222, 0
      %v4285 = vsel %vm575, %v4223, 0
      %v4288 = vsel %vm575, %v4224, 0
      %v4291 = vsel %vm575, %v4225, 0
      %v4294 = vsel %vm575, %v4226, 0
      %v4297 = vsel %vm575, %v4227, 0
      %v4300 = vsel %vm575, %v4228, 0
      %v4303 = vsel %vm575, %v4229, 0
      %v4306 = vsel %vm575, %v4230, 0
      %v4309 = vsel %vm575, %v4231, 0
      %v4312 = vsel %vm575, %v4232, 0
      %v4315 = vsel %vm575, %v4233, 0
      %v4318 = vsel %vm575, %v4234, 0
      %v4321 = vsel %vm575, %v4235, 0
      %v4324 = vsel %vm575, %v4236, 0
      %v4327 = vsel %vm575, %v4237, 0
      %v4330 = vsel %vm575, %v4238, 0
      %v4333 = vsel %vm575, %v4239, 0
      %v4336 = vsel %vm575, %v4240, 0
      %v4339 = vsel %vm575, %v4241, 0
      %v4342 = vsel %vm575, %v4242, 0
      %v4345 = vsel %vm575, %v4243, 0
      %v4348 = vsel %vm575, %v4244, 0
      %4350 = vmatprep.subr.mxu0 0.0
      %4351 = vmatpush1.msra.mxu0 %v4245
      %4352 = vmatprep.subr.mxu0 0.0
      %4353 = vmatpush1.msra.mxu0 %v4246
      %4354 = vmatprep.subr.mxu0 0.0
      %4355 = vmatpush1.msra.mxu0 %v4247
      %4356 = vmatprep.subr.mxu0 0.0
      %4357 = vmatpush1.msra.mxu0 %v4248
      %4358 = vmatprep.subr.mxu0 0.0
      %4359 = vmatpush1.msra.mxu0 0.0
      %4360 = vmatprep.subr.mxu0 0.0
      %4361 = vmatpush1.msra.mxu0 0.0
      %4362 = vmatprep.subr.mxu0 0.0
      %4363 = vmatpush1.msra.mxu0 0.0
      %4364 = vmatprep.subr.mxu0 0.0
      %4365 = vmatpush1.msra.mxu0 0.0
      %4366 = vmatprep.subr.mxu0 0.0
      %4367 = vmatpush1.msra.mxu0 0.0
      %4368 = vmatprep.subr.mxu0 0.0
      %4369 = vmatpush1.msra.mxu0 0.0
      %4370 = vmatprep.subr.mxu0 0.0
      %4371 = vmatpush1.msra.mxu0 0.0
      %4372 = vmatprep.subr.mxu0 0.0
      %4373 = vmatpush1.msra.mxu0 0.0
      %4374 = vmatprep.subr.mxu0 0.0
      %4375 = vmatpush1.msra.mxu0 0.0
      %4376 = vmatprep.subr.mxu0 0.0
      %4377 = vmatpush1.msra.mxu0 0.0
      %4378 = vmatprep.subr.mxu0 0.0
      %4379 = vmatpush1.msra.mxu0 0.0
      %4380 = vmatprep.subr.mxu0 0.0
      %4381 = vmatpush1.msra.mxu0 0.0
      %4382 = vmatprep.subr.mxu0 0.0
      %4383 = vmatpush1.msra.mxu0 0.0
      %4384 = vmatprep.subr.mxu0 0.0
      %4385 = vmatpush1.msra.mxu0 0.0
      %4386 = vmatprep.subr.mxu0 0.0
      %4387 = vmatpush1.msra.mxu0 0.0
      %4388 = vmatprep.subr.mxu0 0.0
      %4389 = vmatpush1.msra.mxu0 0.0
      %4390 = vmatprep.subr.mxu0 0.0
      %4391 = vmatpush1.msra.mxu0 0.0
      %4392 = vmatprep.subr.mxu0 0.0
      %4393 = vmatpush1.msra.mxu0 0.0
      %4394 = vmatprep.subr.mxu0 0.0
      %4395 = vmatpush1.msra.mxu0 0.0
      %4396 = vmatprep.subr.mxu0 0.0
      %4397 = vmatpush1.msra.mxu0 0.0
      %4398 = vmatprep.subr.mxu0 0.0
      %4399 = vmatpush1.msra.mxu0 0.0
      %4400 = vmatprep.subr.mxu0 0.0
      %4401 = vmatpush1.msra.mxu0 0.0
      %4402 = vmatprep.subr.mxu0 0.0
      %4403 = vmatpush1.msra.mxu0 0.0
      %4404 = vmatprep.subr.mxu0 0.0
      %4405 = vmatpush1.msra.mxu0 0.0
      %4406 = vmatprep.subr.mxu0 0.0
      %4407 = vmatpush1.msra.mxu0 0.0
      %4408 = vmatprep.subr.mxu0 0.0
      %4409 = vmatpush1.msra.mxu0 0.0
      %4410 = vmatprep.subr.mxu0 0.0
      %4411 = vmatpush1.msra.mxu0 0.0
      %4412 = vmatprep.subr.mxu0 0.0
      %4413 = vmatpush1.msra.mxu0 0.0
      %4414 = vmatprep.mubr.f32.mxu0 0.0
      %4415 = vmatmul.mubr.f32.gmra.mrb[0].mxu0 %v4255
      %v4416 = vpop.f32.mrb[0].mxu0
      %v4417 = vadd.f32 %v4253, %v4416
      %v4418 = vpop.f32.mrb[0].mxu0
      %4419 = vmatprep.mubr.f32.mxu0 0.0
      %4420 = vmatmul.mubr.f32.gmra.mrb[0].mxu0 %v4258
      %v4421 = vpop.f32.mrb[0].mxu0
      %v4422 = vadd.f32 %v4253, %v4421
      %v4423 = vpop.f32.mrb[0].mxu0
      %4424 = vmatprep.mubr.f32.mxu0 0.0
      %4425 = vmatmul.mubr.f32.gmra.mrb[0].mxu0 %v4261
      %v4426 = vpop.f32.mrb[0].mxu0
      %v4427 = vadd.f32 %v4253, %v4426
      %v4428 = vpop.f32.mrb[0].mxu0
      %4429 = vmatprep.mubr.f32.mxu0 0.0
      %4430 = vmatmul.mubr.f32.gmra.mrb[0].mxu0 %v4264
      %v4431 = vpop.f32.mrb[0].mxu0
      %v4432 = vadd.f32 %v4253, %v4431
      %v4433 = vpop.f32.mrb[0].mxu0
      %4434 = vmatprep.mubr.f32.mxu0 0.0
      %4435 = vmatmul.mubr.f32.gmra.mrb[0].mxu0 %v4267
      %v4436 = vpop.f32.mrb[0].mxu0
      %v4437 = vadd.f32 %v4253, %v4436
      %v4438 = vpop.f32.mrb[0].mxu0
      %4439 = vmatprep.mubr.f32.mxu0 0.0
      %4440 = vmatmul.mubr.f32.gmra.mrb[0].mxu0 %v4270
      %v4441 = vpop.f32.mrb[0].mxu0
      %v4442 = vadd.f32 %v4253, %v4441
      %v4443 = vpop.f32.mrb[0].mxu0
      %4444 = vmatprep.mubr.f32.mxu0 0.0
      %4445 = vmatmul.mubr.f32.gmra.mrb[0].mxu0 %v4273
      %v4446 = vpop.f32.mrb[0].mxu0
      %v4447 = vadd.f32 %v4253, %v4446
      %v4448 = vpop.f32.mrb[0].mxu0
      %4449 = vmatprep.mubr.f32.mxu0 0.0
      %4450 = vmatmul.mubr.f32.gmra.mrb[0].mxu0 %v4276
      %v4451 = vpop.f32.mrb[0].mxu0
      %v4452 = vadd.f32 %v4253, %v4451
      %v4453 = vpop.f32.mrb[0].mxu0
      %4454 = vmatprep.mubr.f32.mxu0 0.0
      %4455 = vmatmul.mubr.f32.gmra.mrb[0].mxu0 %v4279
      %v4456 = vpop.f32.mrb[0].mxu0
      %v4457 = vadd.f32 %v4253, %v4456
      %v4458 = vpop.f32.mrb[0].mxu0
      %4459 = vmatprep.mubr.f32.mxu0 0.0
      %4460 = vmatmul.mubr.f32.gmra.mrb[0].mxu0 %v4282
      %v4461 = vpop.f32.mrb[0].mxu0
      %v4462 = vadd.f32 %v4253, %v4461
      %v4463 = vpop.f32.mrb[0].mxu0
      %4464 = vmatprep.mubr.f32.mxu0 0.0
      %4465 = vmatmul.mubr.f32.gmra.mrb[0].mxu0 %v4285
      %v4466 = vpop.f32.mrb[0].mxu0
      %v4467 = vadd.f32 %v4253, %v4466
      %v4468 = vpop.f32.mrb[0].mxu0
      %4469 = vmatprep.mubr.f32.mxu0 0.0
      %4470 = vmatmul.mubr.f32.gmra.mrb[0].mxu0 %v4288
      %v4471 = vpop.f32.mrb[0].mxu0
      %v4472 = vadd.f32 %v4253, %v4471
      %v4473 = vpop.f32.mrb[0].mxu0
      %4474 = vmatprep.mubr.f32.mxu0 0.0
      %4475 = vmatmul.mubr.f32.gmra.mrb[0].mxu0 %v4291
      %v4476 = vpop.f32.mrb[0].mxu0
      %v4477 = vadd.f32 %v4253, %v4476
      %v4478 = vpop.f32.mrb[0].mxu0
      %4479 = vmatprep.mubr.f32.mxu0 0.0
      %4480 = vmatmul.mubr.f32.gmra.mrb[0].mxu0 %v4294
      %v4481 = vpop.f32.mrb[0].mxu0
      %v4482 = vadd.f32 %v4253, %v4481
      %v4483 = vpop.f32.mrb[0].mxu0
      %4484 = vmatprep.mubr.f32.mxu0 0.0
      %4485 = vmatmul.mubr.f32.gmra.mrb[0].mxu0 %v4297
      %v4486 = vpop.f32.mrb[0].mxu0
      %v4487 = vadd.f32 %v4253, %v4486
      %v4488 = vpop.f32.mrb[0].mxu0
      %4489 = vmatprep.mubr.f32.mxu0 0.0
      %4490 = vmatmul.mubr.f32.gmra.mrb[0].mxu0 %v4300
      %v4491 = vpop.f32.mrb[0].mxu0
      %v4492 = vadd.f32 %v4253, %v4491
      %v4493 = vpop.f32.mrb[0].mxu0
      %4494 = vmatprep.mubr.f32.mxu0 0.0
      %4495 = vmatmul.mubr.f32.gmra.mrb[0].mxu0 %v4303
      %v4496 = vpop.f32.mrb[0].mxu0
      %v4497 = vadd.f32 %v4253, %v4496
      %v4498 = vpop.f32.mrb[0].mxu0
      %4499 = vmatprep.mubr.f32.mxu0 0.0
      %4500 = vmatmul.mubr.f32.gmra.mrb[0].mxu0 %v4306
      %v4501 = vpop.f32.mrb[0].mxu0
      %v4502 = vadd.f32 %v4253, %v4501
      %v4503 = vpop.f32.mrb[0].mxu0
      %4504 = vmatprep.mubr.f32.mxu0 0.0
      %4505 = vmatmul.mubr.f32.gmra.mrb[0].mxu0 %v4309
      %v4506 = vpop.f32.mrb[0].mxu0
      %v4507 = vadd.f32 %v4253, %v4506
      %v4508 = vpop.f32.mrb[0].mxu0
      %4509 = vmatprep.mubr.f32.mxu0 0.0
      %4510 = vmatmul.mubr.f32.gmra.mrb[0].mxu0 %v4312
      %v4511 = vpop.f32.mrb[0].mxu0
      %v4512 = vadd.f32 %v4253, %v4511
      %v4513 = vpop.f32.mrb[0].mxu0
      %4514 = vmatprep.mubr.f32.mxu0 0.0
      %4515 = vmatmul.mubr.f32.gmra.mrb[0].mxu0 %v4315
      %v4516 = vpop.f32.mrb[0].mxu0
      %v4517 = vadd.f32 %v4253, %v4516
      %v4518 = vpop.f32.mrb[0].mxu0
      %4519 = vmatprep.mubr.f32.mxu0 0.0
      %4520 = vmatmul.mubr.f32.gmra.mrb[0].mxu0 %v4318
      %v4521 = vpop.f32.mrb[0].mxu0
      %v4522 = vadd.f32 %v4253, %v4521
      %v4523 = vpop.f32.mrb[0].mxu0
      %4524 = vmatprep.mubr.f32.mxu0 0.0
      %4525 = vmatmul.mubr.f32.gmra.mrb[0].mxu0 %v4321
      %v4526 = vpop.f32.mrb[0].mxu0
      %v4527 = vadd.f32 %v4253, %v4526
      %v4528 = vpop.f32.mrb[0].mxu0
      %4529 = vmatprep.mubr.f32.mxu0 0.0
      %4530 = vmatmul.mubr.f32.gmra.mrb[0].mxu0 %v4324
      %v4531 = vpop.f32.mrb[0].mxu0
      %v4532 = vadd.f32 %v4253, %v4531
      %v4533 = vpop.f32.mrb[0].mxu0
      %4534 = vmatprep.mubr.f32.mxu0 0.0
      %4535 = vmatmul.mubr.f32.gmra.mrb[0].mxu0 %v4327
      %v4536 = vpop.f32.mrb[0].mxu0
      %v4537 = vadd.f32 %v4253, %v4536
      %v4538 = vpop.f32.mrb[0].mxu0
      %4539 = vmatprep.mubr.f32.mxu0 0.0
      %4540 = vmatmul.mubr.f32.gmra.mrb[0].mxu0 %v4330
      %v4541 = vpop.f32.mrb[0].mxu0
      %v4542 = vadd.f32 %v4253, %v4541
      %v4543 = vpop.f32.mrb[0].mxu0
      %4544 = vmatprep.mubr.f32.mxu0 0.0
      %4545 = vmatmul.mubr.f32.gmra.mrb[0].mxu0 %v4333
      %v4546 = vpop.f32.mrb[0].mxu0
      %v4547 = vadd.f32 %v4253, %v4546
      %v4548 = vpop.f32.mrb[0].mxu0
      %4549 = vmatprep.mubr.f32.mxu0 0.0
      %4550 = vmatmul.mubr.f32.gmra.mrb[0].mxu0 %v4336
      %v4551 = vpop.f32.mrb[0].mxu0
      %v4552 = vadd.f32 %v4253, %v4551
      %v4553 = vpop.f32.mrb[0].mxu0
      %4554 = vmatprep.mubr.f32.mxu0 0.0
      %4555 = vmatmul.mubr.f32.gmra.mrb[0].mxu0 %v4339
      %v4556 = vpop.f32.mrb[0].mxu0
      %v4557 = vadd.f32 %v4253, %v4556
      %v4558 = vpop.f32.mrb[0].mxu0
      %4559 = vmatprep.mubr.f32.mxu0 0.0
      %4560 = vmatmul.mubr.f32.gmra.mrb[0].mxu0 %v4342
      %v4561 = vpop.f32.mrb[0].mxu0
      %v4562 = vadd.f32 %v4253, %v4561
      %v4563 = vpop.f32.mrb[0].mxu0
      %4564 = vmatprep.mubr.f32.mxu0 0.0
      %4565 = vmatmul.mubr.f32.gmra.mrb[0].mxu0 %v4345
      %v4566 = vpop.f32.mrb[0].mxu0
      %v4567 = vadd.f32 %v4253, %v4566
      %v4568 = vpop.f32.mrb[0].mxu0
      %4569 = vmatprep.mubr.f32.mxu0 0.0
      %4570 = vmatmul.mubr.f32.gmra.mrb[0].mxu0 %v4348
      %v4571 = vpop.f32.mrb[0].mxu0
      %v4572 = vadd.f32 %v4253, %v4571
      %v4573 = vpop.f32.mrb[0].mxu0
      %4574 = vdwg.mxu0
      %v4575 = vmax.f32 %v4417, 0.0
      %v4576 = vmax.f32 %v4422, 0.0
      %v4577 = vmax.f32 %v4427, 0.0
      %v4578 = vmax.f32 %v4432, 0.0
      %v4579 = vmax.f32 %v4437, 0.0
      %v4580 = vmax.f32 %v4442, 0.0
      %v4581 = vmax.f32 %v4447, 0.0
      %v4582 = vmax.f32 %v4452, 0.0
      %v4583 = vmax.f32 %v4457, 0.0
      %v4584 = vmax.f32 %v4462, 0.0
      %v4585 = vmax.f32 %v4467, 0.0
      %v4586 = vmax.f32 %v4472, 0.0
      %v4587 = vmax.f32 %v4477, 0.0
      %v4588 = vmax.f32 %v4482, 0.0
      %v4589 = vmax.f32 %v4487, 0.0
      %v4590 = vmax.f32 %v4492, 0.0
      %v4591 = vmax.f32 %v4497, 0.0
      %v4592 = vmax.f32 %v4502, 0.0
      %v4593 = vmax.f32 %v4507, 0.0
      %v4594 = vmax.f32 %v4512, 0.0
      %v4595 = vmax.f32 %v4517, 0.0
      %v4596 = vmax.f32 %v4522, 0.0
      %v4597 = vmax.f32 %v4527, 0.0
      %v4598 = vmax.f32 %v4532, 0.0
      %v4599 = vmax.f32 %v4537, 0.0
      %v4600 = vmax.f32 %v4542, 0.0
      %v4601 = vmax.f32 %v4547, 0.0
      %v4602 = vmax.f32 %v4552, 0.0
      %v4603 = vmax.f32 %v4557, 0.0
      %v4604 = vmax.f32 %v4562, 0.0
      %v4605 = vmax.f32 %v4567, 0.0
      %v4606 = vmax.f32 %v4572, 0.0
      %v4607 = vld [vmem:[%s1 + $0x138] sm:$0xff]
      %v4608 = vld [vmem:[%s1 + $0x140] sm:$0xff]
      %v4609 = vld [vmem:[%s1 + $0x148] sm:$0xff]
      %v4610 = vld [vmem:[%s1 + $0x150] sm:$0xff]
      %v4611 = vld [vmem:[%s2 + $0x12] sm:$0x1]
      %v4612 = vlaneseq
      %v4613 = vshrl.u32 %v4612, 7
      %v4614 = vsub.s32 0, %v4613
      %v4615 = vrot.slane %v4611, %v4614
      %v4617 = vsel %vm575, %v4575, 0
      %v4620 = vsel %vm575, %v4576, 0
      %v4623 = vsel %vm575, %v4577, 0
      %v4626 = vsel %vm575, %v4578, 0
      %v4629 = vsel %vm575, %v4579, 0
      %v4632 = vsel %vm575, %v4580, 0
      %v4635 = vsel %vm575, %v4581, 0
      %v4638 = vsel %vm575, %v4582, 0
      %v4641 = vsel %vm575, %v4583, 0
      %v4644 = vsel %vm575, %v4584, 0
      %v4647 = vsel %vm575, %v4585, 0
      %v4650 = vsel %vm575, %v4586, 0
      %v4653 = vsel %vm575, %v4587, 0
      %v4656 = vsel %vm575, %v4588, 0
      %v4659 = vsel %vm575, %v4589, 0
      %v4662 = vsel %vm575, %v4590, 0
      %v4665 = vsel %vm575, %v4591, 0
      %v4668 = vsel %vm575, %v4592, 0
      %v4671 = vsel %vm575, %v4593, 0
      %v4674 = vsel %vm575, %v4594, 0
      %v4677 = vsel %vm575, %v4595, 0
      %v4680 = vsel %vm575, %v4596, 0
      %v4683 = vsel %vm575, %v4597, 0
      %v4686 = vsel %vm575, %v4598, 0
      %v4689 = vsel %vm575, %v4599, 0
      %v4692 = vsel %vm575, %v4600, 0
      %v4695 = vsel %vm575, %v4601, 0
      %v4698 = vsel %vm575, %v4602, 0
      %v4701 = vsel %vm575, %v4603, 0
      %v4704 = vsel %vm575, %v4604, 0
      %v4707 = vsel %vm575, %v4605, 0
      %v4710 = vsel %vm575, %v4606, 0
      %4712 = vmatprep.subr.mxu0 0.0
      %4713 = vmatpush1.msra.mxu0 %v4607
      %4714 = vmatprep.subr.mxu0 0.0
      %4715 = vmatpush1.msra.mxu0 %v4608
      %4716 = vmatprep.subr.mxu0 0.0
      %4717 = vmatpush1.msra.mxu0 %v4609
      %4718 = vmatprep.subr.mxu0 0.0
      %4719 = vmatpush1.msra.mxu0 %v4610
      %4720 = vmatprep.subr.mxu0 0.0
      %4721 = vmatpush1.msra.mxu0 0.0
      %4722 = vmatprep.subr.mxu0 0.0
      %4723 = vmatpush1.msra.mxu0 0.0
      %4724 = vmatprep.subr.mxu0 0.0
      %4725 = vmatpush1.msra.mxu0 0.0
      %4726 = vmatprep.subr.mxu0 0.0
      %4727 = vmatpush1.msra.mxu0 0.0
      %4728 = vmatprep.subr.mxu0 0.0
      %4729 = vmatpush1.msra.mxu0 0.0
      %4730 = vmatprep.subr.mxu0 0.0
      %4731 = vmatpush1.msra.mxu0 0.0
      %4732 = vmatprep.subr.mxu0 0.0
      %4733 = vmatpush1.msra.mxu0 0.0
      %4734 = vmatprep.subr.mxu0 0.0
      %4735 = vmatpush1.msra.mxu0 0.0
      %4736 = vmatprep.subr.mxu0 0.0
      %4737 = vmatpush1.msra.mxu0 0.0
      %4738 = vmatprep.subr.mxu0 0.0
      %4739 = vmatpush1.msra.mxu0 0.0
      %4740 = vmatprep.subr.mxu0 0.0
      %4741 = vmatpush1.msra.mxu0 0.0
      %4742 = vmatprep.subr.mxu0 0.0
      %4743 = vmatpush1.msra.mxu0 0.0
      %4744 = vmatprep.subr.mxu0 0.0
      %4745 = vmatpush1.msra.mxu0 0.0
      %4746 = vmatprep.subr.mxu0 0.0
      %4747 = vmatpush1.msra.mxu0 0.0
      %4748 = vmatprep.subr.mxu0 0.0
      %4749 = vmatpush1.msra.mxu0 0.0
      %4750 = vmatprep.subr.mxu0 0.0
      %4751 = vmatpush1.msra.mxu0 0.0
      %4752 = vmatprep.subr.mxu0 0.0
      %4753 = vmatpush1.msra.mxu0 0.0
      %4754 = vmatprep.subr.mxu0 0.0
      %4755 = vmatpush1.msra.mxu0 0.0
      %4756 = vmatprep.subr.mxu0 0.0
      %4757 = vmatpush1.msra.mxu0 0.0
      %4758 = vmatprep.subr.mxu0 0.0
      %4759 = vmatpush1.msra.mxu0 0.0
      %4760 = vmatprep.subr.mxu0 0.0
      %4761 = vmatpush1.msra.mxu0 0.0
      %4762 = vmatprep.subr.mxu0 0.0
      %4763 = vmatpush1.msra.mxu0 0.0
      %4764 = vmatprep.subr.mxu0 0.0
      %4765 = vmatpush1.msra.mxu0 0.0
      %4766 = vmatprep.subr.mxu0 0.0
      %4767 = vmatpush1.msra.mxu0 0.0
      %4768 = vmatprep.subr.mxu0 0.0
      %4769 = vmatpush1.msra.mxu0 0.0
      %4770 = vmatprep.subr.mxu0 0.0
      %4771 = vmatpush1.msra.mxu0 0.0
      %4772 = vmatprep.subr.mxu0 0.0
      %4773 = vmatpush1.msra.mxu0 0.0
      %4774 = vmatprep.subr.mxu0 0.0
      %4775 = vmatpush1.msra.mxu0 0.0
      %4776 = vmatprep.mubr.f32.mxu0 0.0
      %4777 = vmatmul.mubr.f32.gmra.mrb[0].mxu0 %v4617
      %v4778 = vpop.f32.mrb[0].mxu0
      %v4779 = vadd.f32 %v4615, %v4778
      %v4780 = vpop.f32.mrb[0].mxu0
      %4781 = vmatprep.mubr.f32.mxu0 0.0
      %4782 = vmatmul.mubr.f32.gmra.mrb[0].mxu0 %v4620
      %v4783 = vpop.f32.mrb[0].mxu0
      %v4784 = vadd.f32 %v4615, %v4783
      %v4785 = vpop.f32.mrb[0].mxu0
      %4786 = vmatprep.mubr.f32.mxu0 0.0
      %4787 = vmatmul.mubr.f32.gmra.mrb[0].mxu0 %v4623
      %v4788 = vpop.f32.mrb[0].mxu0
      %v4789 = vadd.f32 %v4615, %v4788
      %v4790 = vpop.f32.mrb[0].mxu0
      %4791 = vmatprep.mubr.f32.mxu0 0.0
      %4792 = vmatmul.mubr.f32.gmra.mrb[0].mxu0 %v4626
      %v4793 = vpop.f32.mrb[0].mxu0
      %v4794 = vadd.f32 %v4615, %v4793
      %v4795 = vpop.f32.mrb[0].mxu0
      %4796 = vmatprep.mubr.f32.mxu0 0.0
      %4797 = vmatmul.mubr.f32.gmra.mrb[0].mxu0 %v4629
      %v4798 = vpop.f32.mrb[0].mxu0
      %v4799 = vadd.f32 %v4615, %v4798
      %v4800 = vpop.f32.mrb[0].mxu0
      %4801 = vmatprep.mubr.f32.mxu0 0.0
      %4802 = vmatmul.mubr.f32.gmra.mrb[0].mxu0 %v4632
      %v4803 = vpop.f32.mrb[0].mxu0
      %v4804 = vadd.f32 %v4615, %v4803
      %v4805 = vpop.f32.mrb[0].mxu0
      %4806 = vmatprep.mubr.f32.mxu0 0.0
      %4807 = vmatmul.mubr.f32.gmra.mrb[0].mxu0 %v4635
      %v4808 = vpop.f32.mrb[0].mxu0
      %v4809 = vadd.f32 %v4615, %v4808
      %v4810 = vpop.f32.mrb[0].mxu0
      %4811 = vmatprep.mubr.f32.mxu0 0.0
      %4812 = vmatmul.mubr.f32.gmra.mrb[0].mxu0 %v4638
      %v4813 = vpop.f32.mrb[0].mxu0
      %v4814 = vadd.f32 %v4615, %v4813
      %v4815 = vpop.f32.mrb[0].mxu0
      %4816 = vmatprep.mubr.f32.mxu0 0.0
      %4817 = vmatmul.mubr.f32.gmra.mrb[0].mxu0 %v4641
      %v4818 = vpop.f32.mrb[0].mxu0
      %v4819 = vadd.f32 %v4615, %v4818
      %v4820 = vpop.f32.mrb[0].mxu0
      %4821 = vmatprep.mubr.f32.mxu0 0.0
      %4822 = vmatmul.mubr.f32.gmra.mrb[0].mxu0 %v4644
      %v4823 = vpop.f32.mrb[0].mxu0
      %v4824 = vadd.f32 %v4615, %v4823
      %v4825 = vpop.f32.mrb[0].mxu0
      %4826 = vmatprep.mubr.f32.mxu0 0.0
      %4827 = vmatmul.mubr.f32.gmra.mrb[0].mxu0 %v4647
      %v4828 = vpop.f32.mrb[0].mxu0
      %v4829 = vadd.f32 %v4615, %v4828
      %v4830 = vpop.f32.mrb[0].mxu0
      %4831 = vmatprep.mubr.f32.mxu0 0.0
      %4832 = vmatmul.mubr.f32.gmra.mrb[0].mxu0 %v4650
      %v4833 = vpop.f32.mrb[0].mxu0
      %v4834 = vadd.f32 %v4615, %v4833
      %v4835 = vpop.f32.mrb[0].mxu0
      %4836 = vmatprep.mubr.f32.mxu0 0.0
      %4837 = vmatmul.mubr.f32.gmra.mrb[0].mxu0 %v4653
      %v4838 = vpop.f32.mrb[0].mxu0
      %v4839 = vadd.f32 %v4615, %v4838
      %v4840 = vpop.f32.mrb[0].mxu0
      %4841 = vmatprep.mubr.f32.mxu0 0.0
      %4842 = vmatmul.mubr.f32.gmra.mrb[0].mxu0 %v4656
      %v4843 = vpop.f32.mrb[0].mxu0
      %v4844 = vadd.f32 %v4615, %v4843
      %v4845 = vpop.f32.mrb[0].mxu0
      %4846 = vmatprep.mubr.f32.mxu0 0.0
      %4847 = vmatmul.mubr.f32.gmra.mrb[0].mxu0 %v4659
      %v4848 = vpop.f32.mrb[0].mxu0
      %v4849 = vadd.f32 %v4615, %v4848
      %v4850 = vpop.f32.mrb[0].mxu0
      %4851 = vmatprep.mubr.f32.mxu0 0.0
      %4852 = vmatmul.mubr.f32.gmra.mrb[0].mxu0 %v4662
      %v4853 = vpop.f32.mrb[0].mxu0
      %v4854 = vadd.f32 %v4615, %v4853
      %v4855 = vpop.f32.mrb[0].mxu0
      %4856 = vmatprep.mubr.f32.mxu0 0.0
      %4857 = vmatmul.mubr.f32.gmra.mrb[0].mxu0 %v4665
      %v4858 = vpop.f32.mrb[0].mxu0
      %v4859 = vadd.f32 %v4615, %v4858
      %v4860 = vpop.f32.mrb[0].mxu0
      %4861 = vmatprep.mubr.f32.mxu0 0.0
      %4862 = vmatmul.mubr.f32.gmra.mrb[0].mxu0 %v4668
      %v4863 = vpop.f32.mrb[0].mxu0
      %v4864 = vadd.f32 %v4615, %v4863
      %v4865 = vpop.f32.mrb[0].mxu0
      %4866 = vmatprep.mubr.f32.mxu0 0.0
      %4867 = vmatmul.mubr.f32.gmra.mrb[0].mxu0 %v4671
      %v4868 = vpop.f32.mrb[0].mxu0
      %v4869 = vadd.f32 %v4615, %v4868
      %v4870 = vpop.f32.mrb[0].mxu0
      %4871 = vmatprep.mubr.f32.mxu0 0.0
      %4872 = vmatmul.mubr.f32.gmra.mrb[0].mxu0 %v4674
      %v4873 = vpop.f32.mrb[0].mxu0
      %v4874 = vadd.f32 %v4615, %v4873
      %v4875 = vpop.f32.mrb[0].mxu0
      %4876 = vmatprep.mubr.f32.mxu0 0.0
      %4877 = vmatmul.mubr.f32.gmra.mrb[0].mxu0 %v4677
      %v4878 = vpop.f32.mrb[0].mxu0
      %v4879 = vadd.f32 %v4615, %v4878
      %v4880 = vpop.f32.mrb[0].mxu0
      %4881 = vmatprep.mubr.f32.mxu0 0.0
      %4882 = vmatmul.mubr.f32.gmra.mrb[0].mxu0 %v4680
      %v4883 = vpop.f32.mrb[0].mxu0
      %v4884 = vadd.f32 %v4615, %v4883
      %v4885 = vpop.f32.mrb[0].mxu0
      %4886 = vmatprep.mubr.f32.mxu0 0.0
      %4887 = vmatmul.mubr.f32.gmra.mrb[0].mxu0 %v4683
      %v4888 = vpop.f32.mrb[0].mxu0
      %v4889 = vadd.f32 %v4615, %v4888
      %v4890 = vpop.f32.mrb[0].mxu0
      %4891 = vmatprep.mubr.f32.mxu0 0.0
      %4892 = vmatmul.mubr.f32.gmra.mrb[0].mxu0 %v4686
      %v4893 = vpop.f32.mrb[0].mxu0
      %v4894 = vadd.f32 %v4615, %v4893
      %v4895 = vpop.f32.mrb[0].mxu0
      %4896 = vmatprep.mubr.f32.mxu0 0.0
      %4897 = vmatmul.mubr.f32.gmra.mrb[0].mxu0 %v4689
      %v4898 = vpop.f32.mrb[0].mxu0
      %v4899 = vadd.f32 %v4615, %v4898
      %v4900 = vpop.f32.mrb[0].mxu0
      %4901 = vmatprep.mubr.f32.mxu0 0.0
      %4902 = vmatmul.mubr.f32.gmra.mrb[0].mxu0 %v4692
      %v4903 = vpop.f32.mrb[0].mxu0
      %v4904 = vadd.f32 %v4615, %v4903
      %v4905 = vpop.f32.mrb[0].mxu0
      %4906 = vmatprep.mubr.f32.mxu0 0.0
      %4907 = vmatmul.mubr.f32.gmra.mrb[0].mxu0 %v4695
      %v4908 = vpop.f32.mrb[0].mxu0
      %v4909 = vadd.f32 %v4615, %v4908
      %v4910 = vpop.f32.mrb[0].mxu0
      %4911 = vmatprep.mubr.f32.mxu0 0.0
      %4912 = vmatmul.mubr.f32.gmra.mrb[0].mxu0 %v4698
      %v4913 = vpop.f32.mrb[0].mxu0
      %v4914 = vadd.f32 %v4615, %v4913
      %v4915 = vpop.f32.mrb[0].mxu0
      %4916 = vmatprep.mubr.f32.mxu0 0.0
      %4917 = vmatmul.mubr.f32.gmra.mrb[0].mxu0 %v4701
      %v4918 = vpop.f32.mrb[0].mxu0
      %v4919 = vadd.f32 %v4615, %v4918
      %v4920 = vpop.f32.mrb[0].mxu0
      %4921 = vmatprep.mubr.f32.mxu0 0.0
      %4922 = vmatmul.mubr.f32.gmra.mrb[0].mxu0 %v4704
      %v4923 = vpop.f32.mrb[0].mxu0
      %v4924 = vadd.f32 %v4615, %v4923
      %v4925 = vpop.f32.mrb[0].mxu0
      %4926 = vmatprep.mubr.f32.mxu0 0.0
      %4927 = vmatmul.mubr.f32.gmra.mrb[0].mxu0 %v4707
      %v4928 = vpop.f32.mrb[0].mxu0
      %v4929 = vadd.f32 %v4615, %v4928
      %v4930 = vpop.f32.mrb[0].mxu0
      %4931 = vmatprep.mubr.f32.mxu0 0.0
      %4932 = vmatmul.mubr.f32.gmra.mrb[0].mxu0 %v4710
      %v4933 = vpop.f32.mrb[0].mxu0
      %v4934 = vadd.f32 %v4615, %v4933
      %v4935 = vpop.f32.mrb[0].mxu0
      %4936 = vdwg.mxu0
      %v4937 = vmax.f32 %v4779, 0.0
      %v4938 = vmax.f32 %v4784, 0.0
      %v4939 = vmax.f32 %v4789, 0.0
      %v4940 = vmax.f32 %v4794, 0.0
      %v4941 = vmax.f32 %v4799, 0.0
      %v4942 = vmax.f32 %v4804, 0.0
      %v4943 = vmax.f32 %v4809, 0.0
      %v4944 = vmax.f32 %v4814, 0.0
      %v4945 = vmax.f32 %v4819, 0.0
      %v4946 = vmax.f32 %v4824, 0.0
      %v4947 = vmax.f32 %v4829, 0.0
      %v4948 = vmax.f32 %v4834, 0.0
      %v4949 = vmax.f32 %v4839, 0.0
      %v4950 = vmax.f32 %v4844, 0.0
      %v4951 = vmax.f32 %v4849, 0.0
      %v4952 = vmax.f32 %v4854, 0.0
      %v4953 = vmax.f32 %v4859, 0.0
      %v4954 = vmax.f32 %v4864, 0.0
      %v4955 = vmax.f32 %v4869, 0.0
      %v4956 = vmax.f32 %v4874, 0.0
      %v4957 = vmax.f32 %v4879, 0.0
      %v4958 = vmax.f32 %v4884, 0.0
      %v4959 = vmax.f32 %v4889, 0.0
      %v4960 = vmax.f32 %v4894, 0.0
      %v4961 = vmax.f32 %v4899, 0.0
      %v4962 = vmax.f32 %v4904, 0.0
      %v4963 = vmax.f32 %v4909, 0.0
      %v4964 = vmax.f32 %v4914, 0.0
      %v4965 = vmax.f32 %v4919, 0.0
      %v4966 = vmax.f32 %v4924, 0.0
      %v4967 = vmax.f32 %v4929, 0.0
      %v4968 = vmax.f32 %v4934, 0.0
      %v4969 = vld [vmem:[%s1 + $0x158] sm:$0xff]
      %v4970 = vld [vmem:[%s1 + $0x160] sm:$0xff]
      %v4971 = vld [vmem:[%s1 + $0x168] sm:$0xff]
      %v4972 = vld [vmem:[%s1 + $0x170] sm:$0xff]
      %v4973 = vld [vmem:[%s2 + $0x13] sm:$0x1]
      %v4974 = vlaneseq
      %v4975 = vshrl.u32 %v4974, 7
      %v4976 = vsub.s32 0, %v4975
      %v4977 = vrot.slane %v4973, %v4976
      %v4979 = vsel %vm575, %v4937, 0
      %v4982 = vsel %vm575, %v4938, 0
      %v4985 = vsel %vm575, %v4939, 0
      %v4988 = vsel %vm575, %v4940, 0
      %v4991 = vsel %vm575, %v4941, 0
      %v4994 = vsel %vm575, %v4942, 0
      %v4997 = vsel %vm575, %v4943, 0
      %v5000 = vsel %vm575, %v4944, 0
      %v5003 = vsel %vm575, %v4945, 0
      %v5006 = vsel %vm575, %v4946, 0
      %v5009 = vsel %vm575, %v4947, 0
      %v5012 = vsel %vm575, %v4948, 0
      %v5015 = vsel %vm575, %v4949, 0
      %v5018 = vsel %vm575, %v4950, 0
      %v5021 = vsel %vm575, %v4951, 0
      %v5024 = vsel %vm575, %v4952, 0
      %v5027 = vsel %vm575, %v4953, 0
      %v5030 = vsel %vm575, %v4954, 0
      %v5033 = vsel %vm575, %v4955, 0
      %v5036 = vsel %vm575, %v4956, 0
      %v5039 = vsel %vm575, %v4957, 0
      %v5042 = vsel %vm575, %v4958, 0
      %v5045 = vsel %vm575, %v4959, 0
      %v5048 = vsel %vm575, %v4960, 0
      %v5051 = vsel %vm575, %v4961, 0
      %v5054 = vsel %vm575, %v4962, 0
      %v5057 = vsel %vm575, %v4963, 0
      %v5060 = vsel %vm575, %v4964, 0
      %v5063 = vsel %vm575, %v4965, 0
      %v5066 = vsel %vm575, %v4966, 0
      %v5069 = vsel %vm575, %v4967, 0
      %v5072 = vsel %vm575, %v4968, 0
      %5074 = vmatprep.subr.mxu0 0.0
      %5075 = vmatpush1.msra.mxu0 %v4969
      %5076 = vmatprep.subr.mxu0 0.0
      %5077 = vmatpush1.msra.mxu0 %v4970
      %5078 = vmatprep.subr.mxu0 0.0
      %5079 = vmatpush1.msra.mxu0 %v4971
      %5080 = vmatprep.subr.mxu0 0.0
      %5081 = vmatpush1.msra.mxu0 %v4972
      %5082 = vmatprep.subr.mxu0 0.0
      %5083 = vmatpush1.msra.mxu0 0.0
      %5084 = vmatprep.subr.mxu0 0.0
      %5085 = vmatpush1.msra.mxu0 0.0
      %5086 = vmatprep.subr.mxu0 0.0
      %5087 = vmatpush1.msra.mxu0 0.0
      %5088 = vmatprep.subr.mxu0 0.0
      %5089 = vmatpush1.msra.mxu0 0.0
      %5090 = vmatprep.subr.mxu0 0.0
      %5091 = vmatpush1.msra.mxu0 0.0
      %5092 = vmatprep.subr.mxu0 0.0
      %5093 = vmatpush1.msra.mxu0 0.0
      %5094 = vmatprep.subr.mxu0 0.0
      %5095 = vmatpush1.msra.mxu0 0.0
      %5096 = vmatprep.subr.mxu0 0.0
      %5097 = vmatpush1.msra.mxu0 0.0
      %5098 = vmatprep.subr.mxu0 0.0
      %5099 = vmatpush1.msra.mxu0 0.0
      %5100 = vmatprep.subr.mxu0 0.0
      %5101 = vmatpush1.msra.mxu0 0.0
      %5102 = vmatprep.subr.mxu0 0.0
      %5103 = vmatpush1.msra.mxu0 0.0
      %5104 = vmatprep.subr.mxu0 0.0
      %5105 = vmatpush1.msra.mxu0 0.0
      %5106 = vmatprep.subr.mxu0 0.0
      %5107 = vmatpush1.msra.mxu0 0.0
      %5108 = vmatprep.subr.mxu0 0.0
      %5109 = vmatpush1.msra.mxu0 0.0
      %5110 = vmatprep.subr.mxu0 0.0
      %5111 = vmatpush1.msra.mxu0 0.0
      %5112 = vmatprep.subr.mxu0 0.0
      %5113 = vmatpush1.msra.mxu0 0.0
      %5114 = vmatprep.subr.mxu0 0.0
      %5115 = vmatpush1.msra.mxu0 0.0
      %5116 = vmatprep.subr.mxu0 0.0
      %5117 = vmatpush1.msra.mxu0 0.0
      %5118 = vmatprep.subr.mxu0 0.0
      %5119 = vmatpush1.msra.mxu0 0.0
      %5120 = vmatprep.subr.mxu0 0.0
      %5121 = vmatpush1.msra.mxu0 0.0
      %5122 = vmatprep.subr.mxu0 0.0
      %5123 = vmatpush1.msra.mxu0 0.0
      %5124 = vmatprep.subr.mxu0 0.0
      %5125 = vmatpush1.msra.mxu0 0.0
      %5126 = vmatprep.subr.mxu0 0.0
      %5127 = vmatpush1.msra.mxu0 0.0
      %5128 = vmatprep.subr.mxu0 0.0
      %5129 = vmatpush1.msra.mxu0 0.0
      %5130 = vmatprep.subr.mxu0 0.0
      %5131 = vmatpush1.msra.mxu0 0.0
      %5132 = vmatprep.subr.mxu0 0.0
      %5133 = vmatpush1.msra.mxu0 0.0
      %5134 = vmatprep.subr.mxu0 0.0
      %5135 = vmatpush1.msra.mxu0 0.0
      %5136 = vmatprep.subr.mxu0 0.0
      %5137 = vmatpush1.msra.mxu0 0.0
      %5138 = vmatprep.mubr.f32.mxu0 0.0
      %5139 = vmatmul.mubr.f32.gmra.mrb[0].mxu0 %v4979
      %v5140 = vpop.f32.mrb[0].mxu0
      %v5141 = vadd.f32 %v4977, %v5140
      %v5142 = vpop.f32.mrb[0].mxu0
      %5143 = vmatprep.mubr.f32.mxu0 0.0
      %5144 = vmatmul.mubr.f32.gmra.mrb[0].mxu0 %v4982
      %v5145 = vpop.f32.mrb[0].mxu0
      %v5146 = vadd.f32 %v4977, %v5145
      %v5147 = vpop.f32.mrb[0].mxu0
      %5148 = vmatprep.mubr.f32.mxu0 0.0
      %5149 = vmatmul.mubr.f32.gmra.mrb[0].mxu0 %v4985
      %v5150 = vpop.f32.mrb[0].mxu0
      %v5151 = vadd.f32 %v4977, %v5150
      %v5152 = vpop.f32.mrb[0].mxu0
      %5153 = vmatprep.mubr.f32.mxu0 0.0
      %5154 = vmatmul.mubr.f32.gmra.mrb[0].mxu0 %v4988
      %v5155 = vpop.f32.mrb[0].mxu0
      %v5156 = vadd.f32 %v4977, %v5155
      %v5157 = vpop.f32.mrb[0].mxu0
      %5158 = vmatprep.mubr.f32.mxu0 0.0
      %5159 = vmatmul.mubr.f32.gmra.mrb[0].mxu0 %v4991
      %v5160 = vpop.f32.mrb[0].mxu0
      %v5161 = vadd.f32 %v4977, %v5160
      %v5162 = vpop.f32.mrb[0].mxu0
      %5163 = vmatprep.mubr.f32.mxu0 0.0
      %5164 = vmatmul.mubr.f32.gmra.mrb[0].mxu0 %v4994
      %v5165 = vpop.f32.mrb[0].mxu0
      %v5166 = vadd.f32 %v4977, %v5165
      %v5167 = vpop.f32.mrb[0].mxu0
      %5168 = vmatprep.mubr.f32.mxu0 0.0
      %5169 = vmatmul.mubr.f32.gmra.mrb[0].mxu0 %v4997
      %v5170 = vpop.f32.mrb[0].mxu0
      %v5171 = vadd.f32 %v4977, %v5170
      %v5172 = vpop.f32.mrb[0].mxu0
      %5173 = vmatprep.mubr.f32.mxu0 0.0
      %5174 = vmatmul.mubr.f32.gmra.mrb[0].mxu0 %v5000
      %v5175 = vpop.f32.mrb[0].mxu0
      %v5176 = vadd.f32 %v4977, %v5175
      %v5177 = vpop.f32.mrb[0].mxu0
      %5178 = vmatprep.mubr.f32.mxu0 0.0
      %5179 = vmatmul.mubr.f32.gmra.mrb[0].mxu0 %v5003
      %v5180 = vpop.f32.mrb[0].mxu0
      %v5181 = vadd.f32 %v4977, %v5180
      %v5182 = vpop.f32.mrb[0].mxu0
      %5183 = vmatprep.mubr.f32.mxu0 0.0
      %5184 = vmatmul.mubr.f32.gmra.mrb[0].mxu0 %v5006
      %v5185 = vpop.f32.mrb[0].mxu0
      %v5186 = vadd.f32 %v4977, %v5185
      %v5187 = vpop.f32.mrb[0].mxu0
      %5188 = vmatprep.mubr.f32.mxu0 0.0
      %5189 = vmatmul.mubr.f32.gmra.mrb[0].mxu0 %v5009
      %v5190 = vpop.f32.mrb[0].mxu0
      %v5191 = vadd.f32 %v4977, %v5190
      %v5192 = vpop.f32.mrb[0].mxu0
      %5193 = vmatprep.mubr.f32.mxu0 0.0
      %5194 = vmatmul.mubr.f32.gmra.mrb[0].mxu0 %v5012
      %v5195 = vpop.f32.mrb[0].mxu0
      %v5196 = vadd.f32 %v4977, %v5195
      %v5197 = vpop.f32.mrb[0].mxu0
      %5198 = vmatprep.mubr.f32.mxu0 0.0
      %5199 = vmatmul.mubr.f32.gmra.mrb[0].mxu0 %v5015
      %v5200 = vpop.f32.mrb[0].mxu0
      %v5201 = vadd.f32 %v4977, %v5200
      %v5202 = vpop.f32.mrb[0].mxu0
      %5203 = vmatprep.mubr.f32.mxu0 0.0
      %5204 = vmatmul.mubr.f32.gmra.mrb[0].mxu0 %v5018
      %v5205 = vpop.f32.mrb[0].mxu0
      %v5206 = vadd.f32 %v4977, %v5205
      %v5207 = vpop.f32.mrb[0].mxu0
      %5208 = vmatprep.mubr.f32.mxu0 0.0
      %5209 = vmatmul.mubr.f32.gmra.mrb[0].mxu0 %v5021
      %v5210 = vpop.f32.mrb[0].mxu0
      %v5211 = vadd.f32 %v4977, %v5210
      %v5212 = vpop.f32.mrb[0].mxu0
      %5213 = vmatprep.mubr.f32.mxu0 0.0
      %5214 = vmatmul.mubr.f32.gmra.mrb[0].mxu0 %v5024
      %v5215 = vpop.f32.mrb[0].mxu0
      %v5216 = vadd.f32 %v4977, %v5215
      %v5217 = vpop.f32.mrb[0].mxu0
      %5218 = vmatprep.mubr.f32.mxu0 0.0
      %5219 = vmatmul.mubr.f32.gmra.mrb[0].mxu0 %v5027
      %v5220 = vpop.f32.mrb[0].mxu0
      %v5221 = vadd.f32 %v4977, %v5220
      %v5222 = vpop.f32.mrb[0].mxu0
      %5223 = vmatprep.mubr.f32.mxu0 0.0
      %5224 = vmatmul.mubr.f32.gmra.mrb[0].mxu0 %v5030
      %v5225 = vpop.f32.mrb[0].mxu0
      %v5226 = vadd.f32 %v4977, %v5225
      %v5227 = vpop.f32.mrb[0].mxu0
      %5228 = vmatprep.mubr.f32.mxu0 0.0
      %5229 = vmatmul.mubr.f32.gmra.mrb[0].mxu0 %v5033
      %v5230 = vpop.f32.mrb[0].mxu0
      %v5231 = vadd.f32 %v4977, %v5230
      %v5232 = vpop.f32.mrb[0].mxu0
      %5233 = vmatprep.mubr.f32.mxu0 0.0
      %5234 = vmatmul.mubr.f32.gmra.mrb[0].mxu0 %v5036
      %v5235 = vpop.f32.mrb[0].mxu0
      %v5236 = vadd.f32 %v4977, %v5235
      %v5237 = vpop.f32.mrb[0].mxu0
      %5238 = vmatprep.mubr.f32.mxu0 0.0
      %5239 = vmatmul.mubr.f32.gmra.mrb[0].mxu0 %v5039
      %v5240 = vpop.f32.mrb[0].mxu0
      %v5241 = vadd.f32 %v4977, %v5240
      %v5242 = vpop.f32.mrb[0].mxu0
      %5243 = vmatprep.mubr.f32.mxu0 0.0
      %5244 = vmatmul.mubr.f32.gmra.mrb[0].mxu0 %v5042
      %v5245 = vpop.f32.mrb[0].mxu0
      %v5246 = vadd.f32 %v4977, %v5245
      %v5247 = vpop.f32.mrb[0].mxu0
      %5248 = vmatprep.mubr.f32.mxu0 0.0
      %5249 = vmatmul.mubr.f32.gmra.mrb[0].mxu0 %v5045
      %v5250 = vpop.f32.mrb[0].mxu0
      %v5251 = vadd.f32 %v4977, %v5250
      %v5252 = vpop.f32.mrb[0].mxu0
      %5253 = vmatprep.mubr.f32.mxu0 0.0
      %5254 = vmatmul.mubr.f32.gmra.mrb[0].mxu0 %v5048
      %v5255 = vpop.f32.mrb[0].mxu0
      %v5256 = vadd.f32 %v4977, %v5255
      %v5257 = vpop.f32.mrb[0].mxu0
      %5258 = vmatprep.mubr.f32.mxu0 0.0
      %5259 = vmatmul.mubr.f32.gmra.mrb[0].mxu0 %v5051
      %v5260 = vpop.f32.mrb[0].mxu0
      %v5261 = vadd.f32 %v4977, %v5260
      %v5262 = vpop.f32.mrb[0].mxu0
      %5263 = vmatprep.mubr.f32.mxu0 0.0
      %5264 = vmatmul.mubr.f32.gmra.mrb[0].mxu0 %v5054
      %v5265 = vpop.f32.mrb[0].mxu0
      %v5266 = vadd.f32 %v4977, %v5265
      %v5267 = vpop.f32.mrb[0].mxu0
      %5268 = vmatprep.mubr.f32.mxu0 0.0
      %5269 = vmatmul.mubr.f32.gmra.mrb[0].mxu0 %v5057
      %v5270 = vpop.f32.mrb[0].mxu0
      %v5271 = vadd.f32 %v4977, %v5270
      %v5272 = vpop.f32.mrb[0].mxu0
      %5273 = vmatprep.mubr.f32.mxu0 0.0
      %5274 = vmatmul.mubr.f32.gmra.mrb[0].mxu0 %v5060
      %v5275 = vpop.f32.mrb[0].mxu0
      %v5276 = vadd.f32 %v4977, %v5275
      %v5277 = vpop.f32.mrb[0].mxu0
      %5278 = vmatprep.mubr.f32.mxu0 0.0
      %5279 = vmatmul.mubr.f32.gmra.mrb[0].mxu0 %v5063
      %v5280 = vpop.f32.mrb[0].mxu0
      %v5281 = vadd.f32 %v4977, %v5280
      %v5282 = vpop.f32.mrb[0].mxu0
      %5283 = vmatprep.mubr.f32.mxu0 0.0
      %5284 = vmatmul.mubr.f32.gmra.mrb[0].mxu0 %v5066
      %v5285 = vpop.f32.mrb[0].mxu0
      %v5286 = vadd.f32 %v4977, %v5285
      %v5287 = vpop.f32.mrb[0].mxu0
      %5288 = vmatprep.mubr.f32.mxu0 0.0
      %5289 = vmatmul.mubr.f32.gmra.mrb[0].mxu0 %v5069
      %v5290 = vpop.f32.mrb[0].mxu0
      %v5291 = vadd.f32 %v4977, %v5290
      %v5292 = vpop.f32.mrb[0].mxu0
      %5293 = vmatprep.mubr.f32.mxu0 0.0
      %5294 = vmatmul.mubr.f32.gmra.mrb[0].mxu0 %v5072
      %v5295 = vpop.f32.mrb[0].mxu0
      %v5296 = vadd.f32 %v4977, %v5295
      %v5297 = vpop.f32.mrb[0].mxu0
      %5298 = vdwg.mxu0
      %v5299 = vmax.f32 %v5141, 0.0
      %v5300 = vmax.f32 %v5146, 0.0
      %v5301 = vmax.f32 %v5151, 0.0
      %v5302 = vmax.f32 %v5156, 0.0
      %v5303 = vmax.f32 %v5161, 0.0
      %v5304 = vmax.f32 %v5166, 0.0
      %v5305 = vmax.f32 %v5171, 0.0
      %v5306 = vmax.f32 %v5176, 0.0
      %v5307 = vmax.f32 %v5181, 0.0
      %v5308 = vmax.f32 %v5186, 0.0
      %v5309 = vmax.f32 %v5191, 0.0
      %v5310 = vmax.f32 %v5196, 0.0
      %v5311 = vmax.f32 %v5201, 0.0
      %v5312 = vmax.f32 %v5206, 0.0
      %v5313 = vmax.f32 %v5211, 0.0
      %v5314 = vmax.f32 %v5216, 0.0
      %v5315 = vmax.f32 %v5221, 0.0
      %v5316 = vmax.f32 %v5226, 0.0
      %v5317 = vmax.f32 %v5231, 0.0
      %v5318 = vmax.f32 %v5236, 0.0
      %v5319 = vmax.f32 %v5241, 0.0
      %v5320 = vmax.f32 %v5246, 0.0
      %v5321 = vmax.f32 %v5251, 0.0
      %v5322 = vmax.f32 %v5256, 0.0
      %v5323 = vmax.f32 %v5261, 0.0
      %v5324 = vmax.f32 %v5266, 0.0
      %v5325 = vmax.f32 %v5271, 0.0
      %v5326 = vmax.f32 %v5276, 0.0
      %v5327 = vmax.f32 %v5281, 0.0
      %v5328 = vmax.f32 %v5286, 0.0
      %v5329 = vmax.f32 %v5291, 0.0
      %v5330 = vmax.f32 %v5296, 0.0
      %v5331 = vld [vmem:[%s1 + $0x178] sm:$0xff]
      %v5332 = vld [vmem:[%s1 + $0x180] sm:$0xff]
      %v5333 = vld [vmem:[%s1 + $0x188] sm:$0xff]
      %v5334 = vld [vmem:[%s1 + $0x190] sm:$0xff]
      %v5335 = vld [vmem:[%s2 + $0x14] sm:$0x1]
      %v5336 = vlaneseq
      %v5337 = vshrl.u32 %v5336, 7
      %v5338 = vsub.s32 0, %v5337
      %v5339 = vrot.slane %v5335, %v5338
      %v5341 = vsel %vm575, %v5299, 0
      %v5344 = vsel %vm575, %v5300, 0
      %v5347 = vsel %vm575, %v5301, 0
      %v5350 = vsel %vm575, %v5302, 0
      %v5353 = vsel %vm575, %v5303, 0
      %v5356 = vsel %vm575, %v5304, 0
      %v5359 = vsel %vm575, %v5305, 0
      %v5362 = vsel %vm575, %v5306, 0
      %v5365 = vsel %vm575, %v5307, 0
      %v5368 = vsel %vm575, %v5308, 0
      %v5371 = vsel %vm575, %v5309, 0
      %v5374 = vsel %vm575, %v5310, 0
      %v5377 = vsel %vm575, %v5311, 0
      %v5380 = vsel %vm575, %v5312, 0
      %v5383 = vsel %vm575, %v5313, 0
      %v5386 = vsel %vm575, %v5314, 0
      %v5389 = vsel %vm575, %v5315, 0
      %v5392 = vsel %vm575, %v5316, 0
      %v5395 = vsel %vm575, %v5317, 0
      %v5398 = vsel %vm575, %v5318, 0
      %v5401 = vsel %vm575, %v5319, 0
      %v5404 = vsel %vm575, %v5320, 0
      %v5407 = vsel %vm575, %v5321, 0
      %v5410 = vsel %vm575, %v5322, 0
      %v5413 = vsel %vm575, %v5323, 0
      %v5416 = vsel %vm575, %v5324, 0
      %v5419 = vsel %vm575, %v5325, 0
      %v5422 = vsel %vm575, %v5326, 0
      %v5425 = vsel %vm575, %v5327, 0
      %v5428 = vsel %vm575, %v5328, 0
      %v5431 = vsel %vm575, %v5329, 0
      %v5434 = vsel %vm575, %v5330, 0
      %5436 = vmatprep.subr.mxu0 0.0
      %5437 = vmatpush1.msra.mxu0 %v5331
      %5438 = vmatprep.subr.mxu0 0.0
      %5439 = vmatpush1.msra.mxu0 %v5332
      %5440 = vmatprep.subr.mxu0 0.0
      %5441 = vmatpush1.msra.mxu0 %v5333
      %5442 = vmatprep.subr.mxu0 0.0
      %5443 = vmatpush1.msra.mxu0 %v5334
      %5444 = vmatprep.subr.mxu0 0.0
      %5445 = vmatpush1.msra.mxu0 0.0
      %5446 = vmatprep.subr.mxu0 0.0
      %5447 = vmatpush1.msra.mxu0 0.0
      %5448 = vmatprep.subr.mxu0 0.0
      %5449 = vmatpush1.msra.mxu0 0.0
      %5450 = vmatprep.subr.mxu0 0.0
      %5451 = vmatpush1.msra.mxu0 0.0
      %5452 = vmatprep.subr.mxu0 0.0
      %5453 = vmatpush1.msra.mxu0 0.0
      %5454 = vmatprep.subr.mxu0 0.0
      %5455 = vmatpush1.msra.mxu0 0.0
      %5456 = vmatprep.subr.mxu0 0.0
      %5457 = vmatpush1.msra.mxu0 0.0
      %5458 = vmatprep.subr.mxu0 0.0
      %5459 = vmatpush1.msra.mxu0 0.0
      %5460 = vmatprep.subr.mxu0 0.0
      %5461 = vmatpush1.msra.mxu0 0.0
      %5462 = vmatprep.subr.mxu0 0.0
      %5463 = vmatpush1.msra.mxu0 0.0
      %5464 = vmatprep.subr.mxu0 0.0
      %5465 = vmatpush1.msra.mxu0 0.0
      %5466 = vmatprep.subr.mxu0 0.0
      %5467 = vmatpush1.msra.mxu0 0.0
      %5468 = vmatprep.subr.mxu0 0.0
      %5469 = vmatpush1.msra.mxu0 0.0
      %5470 = vmatprep.subr.mxu0 0.0
      %5471 = vmatpush1.msra.mxu0 0.0
      %5472 = vmatprep.subr.mxu0 0.0
      %5473 = vmatpush1.msra.mxu0 0.0
      %5474 = vmatprep.subr.mxu0 0.0
      %5475 = vmatpush1.msra.mxu0 0.0
      %5476 = vmatprep.subr.mxu0 0.0
      %5477 = vmatpush1.msra.mxu0 0.0
      %5478 = vmatprep.subr.mxu0 0.0
      %5479 = vmatpush1.msra.mxu0 0.0
      %5480 = vmatprep.subr.mxu0 0.0
      %5481 = vmatpush1.msra.mxu0 0.0
      %5482 = vmatprep.subr.mxu0 0.0
      %5483 = vmatpush1.msra.mxu0 0.0
      %5484 = vmatprep.subr.mxu0 0.0
      %5485 = vmatpush1.msra.mxu0 0.0
      %5486 = vmatprep.subr.mxu0 0.0
      %5487 = vmatpush1.msra.mxu0 0.0
      %5488 = vmatprep.subr.mxu0 0.0
      %5489 = vmatpush1.msra.mxu0 0.0
      %5490 = vmatprep.subr.mxu0 0.0
      %5491 = vmatpush1.msra.mxu0 0.0
      %5492 = vmatprep.subr.mxu0 0.0
      %5493 = vmatpush1.msra.mxu0 0.0
      %5494 = vmatprep.subr.mxu0 0.0
      %5495 = vmatpush1.msra.mxu0 0.0
      %5496 = vmatprep.subr.mxu0 0.0
      %5497 = vmatpush1.msra.mxu0 0.0
      %5498 = vmatprep.subr.mxu0 0.0
      %5499 = vmatpush1.msra.mxu0 0.0
      %5500 = vmatprep.mubr.f32.mxu0 0.0
      %5501 = vmatmul.mubr.f32.gmra.mrb[0].mxu0 %v5341
      %v5502 = vpop.f32.mrb[0].mxu0
      %v5503 = vadd.f32 %v5339, %v5502
      %v5504 = vpop.f32.mrb[0].mxu0
      %5505 = vmatprep.mubr.f32.mxu0 0.0
      %5506 = vmatmul.mubr.f32.gmra.mrb[0].mxu0 %v5344
      %v5507 = vpop.f32.mrb[0].mxu0
      %v5508 = vadd.f32 %v5339, %v5507
      %v5509 = vpop.f32.mrb[0].mxu0
      %5510 = vmatprep.mubr.f32.mxu0 0.0
      %5511 = vmatmul.mubr.f32.gmra.mrb[0].mxu0 %v5347
      %v5512 = vpop.f32.mrb[0].mxu0
      %v5513 = vadd.f32 %v5339, %v5512
      %v5514 = vpop.f32.mrb[0].mxu0
      %5515 = vmatprep.mubr.f32.mxu0 0.0
      %5516 = vmatmul.mubr.f32.gmra.mrb[0].mxu0 %v5350
      %v5517 = vpop.f32.mrb[0].mxu0
      %v5518 = vadd.f32 %v5339, %v5517
      %v5519 = vpop.f32.mrb[0].mxu0
      %5520 = vmatprep.mubr.f32.mxu0 0.0
      %5521 = vmatmul.mubr.f32.gmra.mrb[0].mxu0 %v5353
      %v5522 = vpop.f32.mrb[0].mxu0
      %v5523 = vadd.f32 %v5339, %v5522
      %v5524 = vpop.f32.mrb[0].mxu0
      %5525 = vmatprep.mubr.f32.mxu0 0.0
      %5526 = vmatmul.mubr.f32.gmra.mrb[0].mxu0 %v5356
      %v5527 = vpop.f32.mrb[0].mxu0
      %v5528 = vadd.f32 %v5339, %v5527
      %v5529 = vpop.f32.mrb[0].mxu0
      %5530 = vmatprep.mubr.f32.mxu0 0.0
      %5531 = vmatmul.mubr.f32.gmra.mrb[0].mxu0 %v5359
      %v5532 = vpop.f32.mrb[0].mxu0
      %v5533 = vadd.f32 %v5339, %v5532
      %v5534 = vpop.f32.mrb[0].mxu0
      %5535 = vmatprep.mubr.f32.mxu0 0.0
      %5536 = vmatmul.mubr.f32.gmra.mrb[0].mxu0 %v5362
      %v5537 = vpop.f32.mrb[0].mxu0
      %v5538 = vadd.f32 %v5339, %v5537
      %v5539 = vpop.f32.mrb[0].mxu0
      %5540 = vmatprep.mubr.f32.mxu0 0.0
      %5541 = vmatmul.mubr.f32.gmra.mrb[0].mxu0 %v5365
      %v5542 = vpop.f32.mrb[0].mxu0
      %v5543 = vadd.f32 %v5339, %v5542
      %v5544 = vpop.f32.mrb[0].mxu0
      %5545 = vmatprep.mubr.f32.mxu0 0.0
      %5546 = vmatmul.mubr.f32.gmra.mrb[0].mxu0 %v5368
      %v5547 = vpop.f32.mrb[0].mxu0
      %v5548 = vadd.f32 %v5339, %v5547
      %v5549 = vpop.f32.mrb[0].mxu0
      %5550 = vmatprep.mubr.f32.mxu0 0.0
      %5551 = vmatmul.mubr.f32.gmra.mrb[0].mxu0 %v5371
      %v5552 = vpop.f32.mrb[0].mxu0
      %v5553 = vadd.f32 %v5339, %v5552
      %v5554 = vpop.f32.mrb[0].mxu0
      %5555 = vmatprep.mubr.f32.mxu0 0.0
      %5556 = vmatmul.mubr.f32.gmra.mrb[0].mxu0 %v5374
      %v5557 = vpop.f32.mrb[0].mxu0
      %v5558 = vadd.f32 %v5339, %v5557
      %v5559 = vpop.f32.mrb[0].mxu0
      %5560 = vmatprep.mubr.f32.mxu0 0.0
      %5561 = vmatmul.mubr.f32.gmra.mrb[0].mxu0 %v5377
      %v5562 = vpop.f32.mrb[0].mxu0
      %v5563 = vadd.f32 %v5339, %v5562
      %v5564 = vpop.f32.mrb[0].mxu0
      %5565 = vmatprep.mubr.f32.mxu0 0.0
      %5566 = vmatmul.mubr.f32.gmra.mrb[0].mxu0 %v5380
      %v5567 = vpop.f32.mrb[0].mxu0
      %v5568 = vadd.f32 %v5339, %v5567
      %v5569 = vpop.f32.mrb[0].mxu0
      %5570 = vmatprep.mubr.f32.mxu0 0.0
      %5571 = vmatmul.mubr.f32.gmra.mrb[0].mxu0 %v5383
      %v5572 = vpop.f32.mrb[0].mxu0
      %v5573 = vadd.f32 %v5339, %v5572
      %v5574 = vpop.f32.mrb[0].mxu0
      %5575 = vmatprep.mubr.f32.mxu0 0.0
      %5576 = vmatmul.mubr.f32.gmra.mrb[0].mxu0 %v5386
      %v5577 = vpop.f32.mrb[0].mxu0
      %v5578 = vadd.f32 %v5339, %v5577
      %v5579 = vpop.f32.mrb[0].mxu0
      %5580 = vmatprep.mubr.f32.mxu0 0.0
      %5581 = vmatmul.mubr.f32.gmra.mrb[0].mxu0 %v5389
      %v5582 = vpop.f32.mrb[0].mxu0
      %v5583 = vadd.f32 %v5339, %v5582
      %v5584 = vpop.f32.mrb[0].mxu0
      %5585 = vmatprep.mubr.f32.mxu0 0.0
      %5586 = vmatmul.mubr.f32.gmra.mrb[0].mxu0 %v5392
      %v5587 = vpop.f32.mrb[0].mxu0
      %v5588 = vadd.f32 %v5339, %v5587
      %v5589 = vpop.f32.mrb[0].mxu0
      %5590 = vmatprep.mubr.f32.mxu0 0.0
      %5591 = vmatmul.mubr.f32.gmra.mrb[0].mxu0 %v5395
      %v5592 = vpop.f32.mrb[0].mxu0
      %v5593 = vadd.f32 %v5339, %v5592
      %v5594 = vpop.f32.mrb[0].mxu0
      %5595 = vmatprep.mubr.f32.mxu0 0.0
      %5596 = vmatmul.mubr.f32.gmra.mrb[0].mxu0 %v5398
      %v5597 = vpop.f32.mrb[0].mxu0
      %v5598 = vadd.f32 %v5339, %v5597
      %v5599 = vpop.f32.mrb[0].mxu0
      %5600 = vmatprep.mubr.f32.mxu0 0.0
      %5601 = vmatmul.mubr.f32.gmra.mrb[0].mxu0 %v5401
      %v5602 = vpop.f32.mrb[0].mxu0
      %v5603 = vadd.f32 %v5339, %v5602
      %v5604 = vpop.f32.mrb[0].mxu0
      %5605 = vmatprep.mubr.f32.mxu0 0.0
      %5606 = vmatmul.mubr.f32.gmra.mrb[0].mxu0 %v5404
      %v5607 = vpop.f32.mrb[0].mxu0
      %v5608 = vadd.f32 %v5339, %v5607
      %v5609 = vpop.f32.mrb[0].mxu0
      %5610 = vmatprep.mubr.f32.mxu0 0.0
      %5611 = vmatmul.mubr.f32.gmra.mrb[0].mxu0 %v5407
      %v5612 = vpop.f32.mrb[0].mxu0
      %v5613 = vadd.f32 %v5339, %v5612
      %v5614 = vpop.f32.mrb[0].mxu0
      %5615 = vmatprep.mubr.f32.mxu0 0.0
      %5616 = vmatmul.mubr.f32.gmra.mrb[0].mxu0 %v5410
      %v5617 = vpop.f32.mrb[0].mxu0
      %v5618 = vadd.f32 %v5339, %v5617
      %v5619 = vpop.f32.mrb[0].mxu0
      %5620 = vmatprep.mubr.f32.mxu0 0.0
      %5621 = vmatmul.mubr.f32.gmra.mrb[0].mxu0 %v5413
      %v5622 = vpop.f32.mrb[0].mxu0
      %v5623 = vadd.f32 %v5339, %v5622
      %v5624 = vpop.f32.mrb[0].mxu0
      %5625 = vmatprep.mubr.f32.mxu0 0.0
      %5626 = vmatmul.mubr.f32.gmra.mrb[0].mxu0 %v5416
      %v5627 = vpop.f32.mrb[0].mxu0
      %v5628 = vadd.f32 %v5339, %v5627
      %v5629 = vpop.f32.mrb[0].mxu0
      %5630 = vmatprep.mubr.f32.mxu0 0.0
      %5631 = vmatmul.mubr.f32.gmra.mrb[0].mxu0 %v5419
      %v5632 = vpop.f32.mrb[0].mxu0
      %v5633 = vadd.f32 %v5339, %v5632
      %v5634 = vpop.f32.mrb[0].mxu0
      %5635 = vmatprep.mubr.f32.mxu0 0.0
      %5636 = vmatmul.mubr.f32.gmra.mrb[0].mxu0 %v5422
      %v5637 = vpop.f32.mrb[0].mxu0
      %v5638 = vadd.f32 %v5339, %v5637
      %v5639 = vpop.f32.mrb[0].mxu0
      %5640 = vmatprep.mubr.f32.mxu0 0.0
      %5641 = vmatmul.mubr.f32.gmra.mrb[0].mxu0 %v5425
      %v5642 = vpop.f32.mrb[0].mxu0
      %v5643 = vadd.f32 %v5339, %v5642
      %v5644 = vpop.f32.mrb[0].mxu0
      %5645 = vmatprep.mubr.f32.mxu0 0.0
      %5646 = vmatmul.mubr.f32.gmra.mrb[0].mxu0 %v5428
      %v5647 = vpop.f32.mrb[0].mxu0
      %v5648 = vadd.f32 %v5339, %v5647
      %v5649 = vpop.f32.mrb[0].mxu0
      %5650 = vmatprep.mubr.f32.mxu0 0.0
      %5651 = vmatmul.mubr.f32.gmra.mrb[0].mxu0 %v5431
      %v5652 = vpop.f32.mrb[0].mxu0
      %v5653 = vadd.f32 %v5339, %v5652
      %v5654 = vpop.f32.mrb[0].mxu0
      %5655 = vmatprep.mubr.f32.mxu0 0.0
      %5656 = vmatmul.mubr.f32.gmra.mrb[0].mxu0 %v5434
      %v5657 = vpop.f32.mrb[0].mxu0
      %v5658 = vadd.f32 %v5339, %v5657
      %v5659 = vpop.f32.mrb[0].mxu0
      %5660 = vdwg.mxu0
      %v5661 = vadd.f32 %v3854, %v5503
      %v5662 = vadd.f32 %v3855, %v5508
      %v5663 = vadd.f32 %v3856, %v5513
      %v5664 = vadd.f32 %v3857, %v5518
      %v5665 = vadd.f32 %v3858, %v5523
      %v5666 = vadd.f32 %v3859, %v5528
      %v5667 = vadd.f32 %v3860, %v5533
      %v5668 = vadd.f32 %v3861, %v5538
      %v5669 = vadd.f32 %v3862, %v5543
      %v5670 = vadd.f32 %v3863, %v5548
      %v5671 = vadd.f32 %v3864, %v5553
      %v5672 = vadd.f32 %v3865, %v5558
      %v5673 = vadd.f32 %v3866, %v5563
      %v5674 = vadd.f32 %v3867, %v5568
      %v5675 = vadd.f32 %v3868, %v5573
      %v5676 = vadd.f32 %v3869, %v5578
      %v5677 = vadd.f32 %v3870, %v5583
      %v5678 = vadd.f32 %v3871, %v5588
      %v5679 = vadd.f32 %v3872, %v5593
      %v5680 = vadd.f32 %v3873, %v5598
      %v5681 = vadd.f32 %v3874, %v5603
      %v5682 = vadd.f32 %v3875, %v5608
      %v5683 = vadd.f32 %v3876, %v5613
      %v5684 = vadd.f32 %v3877, %v5618
      %v5685 = vadd.f32 %v3878, %v5623
      %v5686 = vadd.f32 %v3879, %v5628
      %v5687 = vadd.f32 %v3880, %v5633
      %v5688 = vadd.f32 %v3881, %v5638
      %v5689 = vadd.f32 %v3882, %v5643
      %v5690 = vadd.f32 %v3883, %v5648
      %v5691 = vadd.f32 %v3884, %v5653
      %v5692 = vadd.f32 %v3885, %v5658
      %5725 = vrot.lane.b32.xlu0 %v5661, 120
      %v5726 = vpop.permute.xlu0 %5725
      %5727 = vrot.lane.b32.xlu0 %v5662, 120
      %v5728 = vpop.permute.xlu0 %5727
      %5729 = vrot.lane.b32.xlu0 %v5663, 120
      %v5730 = vpop.permute.xlu0 %5729
      %5731 = vrot.lane.b32.xlu0 %v5664, 120
      %v5732 = vpop.permute.xlu0 %5731
      %5733 = vrot.lane.b32.xlu0 %v5665, 120
      %v5734 = vpop.permute.xlu0 %5733
      %5735 = vrot.lane.b32.xlu0 %v5666, 120
      %v5736 = vpop.permute.xlu0 %5735
      %5737 = vrot.lane.b32.xlu0 %v5667, 120
      %v5738 = vpop.permute.xlu0 %5737
      %5739 = vrot.lane.b32.xlu0 %v5668, 120
      %v5740 = vpop.permute.xlu0 %5739
      %5741 = vrot.lane.b32.xlu0 %v5669, 120
      %v5742 = vpop.permute.xlu0 %5741
      %5743 = vrot.lane.b32.xlu0 %v5670, 120
      %v5744 = vpop.permute.xlu0 %5743
      %5745 = vrot.lane.b32.xlu0 %v5671, 120
      %v5746 = vpop.permute.xlu0 %5745
      %5747 = vrot.lane.b32.xlu0 %v5672, 120
      %v5748 = vpop.permute.xlu0 %5747
      %5749 = vrot.lane.b32.xlu0 %v5673, 120
      %v5750 = vpop.permute.xlu0 %5749
      %5751 = vrot.lane.b32.xlu0 %v5674, 120
      %v5752 = vpop.permute.xlu0 %5751
      %5753 = vrot.lane.b32.xlu0 %v5675, 120
      %v5754 = vpop.permute.xlu0 %5753
      %5755 = vrot.lane.b32.xlu0 %v5676, 120
      %v5756 = vpop.permute.xlu0 %5755
      %5757 = vrot.lane.b32.xlu0 %v5677, 120
      %v5758 = vpop.permute.xlu0 %5757
      %5759 = vrot.lane.b32.xlu0 %v5678, 120
      %v5760 = vpop.permute.xlu0 %5759
      %5761 = vrot.lane.b32.xlu0 %v5679, 120
      %v5762 = vpop.permute.xlu0 %5761
      %5763 = vrot.lane.b32.xlu0 %v5680, 120
      %v5764 = vpop.permute.xlu0 %5763
      %5765 = vrot.lane.b32.xlu0 %v5681, 120
      %v5766 = vpop.permute.xlu0 %5765
      %5767 = vrot.lane.b32.xlu0 %v5682, 120
      %v5768 = vpop.permute.xlu0 %5767
      %5769 = vrot.lane.b32.xlu0 %v5683, 120
      %v5770 = vpop.permute.xlu0 %5769
      %5771 = vrot.lane.b32.xlu0 %v5684, 120
      %v5772 = vpop.permute.xlu0 %5771
      %5773 = vrot.lane.b32.xlu0 %v5685, 120
      %v5774 = vpop.permute.xlu0 %5773
      %5775 = vrot.lane.b32.xlu0 %v5686, 120
      %v5776 = vpop.permute.xlu0 %5775
      %5777 = vrot.lane.b32.xlu0 %v5687, 120
      %v5778 = vpop.permute.xlu0 %5777
      %5779 = vrot.lane.b32.xlu0 %v5688, 120
      %v5780 = vpop.permute.xlu0 %5779
      %5781 = vrot.lane.b32.xlu0 %v5689, 120
      %v5782 = vpop.permute.xlu0 %5781
      %5783 = vrot.lane.b32.xlu0 %v5690, 120
      %v5784 = vpop.permute.xlu0 %5783
      %5785 = vrot.lane.b32.xlu0 %v5691, 120
      %v5786 = vpop.permute.xlu0 %5785
      %5787 = vrot.lane.b32.xlu0 %v5692, 120
      %v5788 = vpop.permute.xlu0 %5787
      %vm5821 = vcmask 7168
      %5822 = vst.msk [vmem:[%s172] sm:$0xff] %vm5821, %v5726
      %5823 = vst.msk [vmem:[%s172 + $0x8] sm:$0xff] %vm5821, %v5728
      %5824 = vst.msk [vmem:[%s172 + $0x10] sm:$0xff] %vm5821, %v5730
      %5825 = vst.msk [vmem:[%s172 + $0x18] sm:$0xff] %vm5821, %v5732
      %5826 = vst.msk [vmem:[%s172 + $0x20] sm:$0xff] %vm5821, %v5734
      %5827 = vst.msk [vmem:[%s172 + $0x28] sm:$0xff] %vm5821, %v5736
      %5828 = vst.msk [vmem:[%s172 + $0x30] sm:$0xff] %vm5821, %v5738
      %5829 = vst.msk [vmem:[%s172 + $0x38] sm:$0xff] %vm5821, %v5740
      %5830 = vst.msk [vmem:[%s172 + $0x40] sm:$0xff] %vm5821, %v5742
      %5831 = vst.msk [vmem:[%s172 + $0x48] sm:$0xff] %vm5821, %v5744
      %5832 = vst.msk [vmem:[%s172 + $0x50] sm:$0xff] %vm5821, %v5746
      %5833 = vst.msk [vmem:[%s172 + $0x58] sm:$0xff] %vm5821, %v5748
      %5834 = vst.msk [vmem:[%s172 + $0x60] sm:$0xff] %vm5821, %v5750
      %5835 = vst.msk [vmem:[%s172 + $0x68] sm:$0xff] %vm5821, %v5752
      %5836 = vst.msk [vmem:[%s172 + $0x70] sm:$0xff] %vm5821, %v5754
      %5837 = vst.msk [vmem:[%s172 + $0x78] sm:$0xff] %vm5821, %v5756
      %5838 = vst.msk [vmem:[%s172 + $0x80] sm:$0xff] %vm5821, %v5758
      %5839 = vst.msk [vmem:[%s172 + $0x88] sm:$0xff] %vm5821, %v5760
      %5840 = vst.msk [vmem:[%s172 + $0x90] sm:$0xff] %vm5821, %v5762
      %5841 = vst.msk [vmem:[%s172 + $0x98] sm:$0xff] %vm5821, %v5764
      %5842 = vst.msk [vmem:[%s172 + $0xa0] sm:$0xff] %vm5821, %v5766
      %5843 = vst.msk [vmem:[%s172 + $0xa8] sm:$0xff] %vm5821, %v5768
      %5844 = vst.msk [vmem:[%s172 + $0xb0] sm:$0xff] %vm5821, %v5770
      %5845 = vst.msk [vmem:[%s172 + $0xb8] sm:$0xff] %vm5821, %v5772
      %5846 = vst.msk [vmem:[%s172 + $0xc0] sm:$0xff] %vm5821, %v5774
      %5847 = vst.msk [vmem:[%s172 + $0xc8] sm:$0xff] %vm5821, %v5776
      %5848 = vst.msk [vmem:[%s172 + $0xd0] sm:$0xff] %vm5821, %v5778
      %5849 = vst.msk [vmem:[%s172 + $0xd8] sm:$0xff] %vm5821, %v5780
      %5850 = vst.msk [vmem:[%s172 + $0xe0] sm:$0xff] %vm5821, %v5782
      %5851 = vst.msk [vmem:[%s172 + $0xe8] sm:$0xff] %vm5821, %v5784
      %5852 = vst.msk [vmem:[%s172 + $0xf0] sm:$0xff] %vm5821, %v5786
      %5853 = vst.msk [vmem:[%s172 + $0xf8] sm:$0xff] %vm5821, %v5788
      %s5854 = smul.u32 32, %s14
      %p5855 = scmp.lt.s32.totalorder %s5854, 63
      %s5856 = scalar_select %p5855, %s5854, 63
      %s5857 = smul.addr %s5856, 8
      %s5858 = scalar_lea.vmem %s3, %s5857
      // Predicated region
      $region33: #{nbeats_forward.1} parent=31 // pred_check
        %p5859 = pneg %p100
      $region34: #{nbeats_forward.1} parent=31 // pred_check_branch
        %5861 = sbr.rel (%p5859) target = $region36
      $region35: #{nbeats_forward.1} parent=31 // pred_region
        %s5862 = smul.u32 32, %s14
      $region36: #{nbeats_forward.1} parent=31 // pred_fallthru
        _
    $region32: #{nbeats_forward.1} parent=5 // pred_fallthru
      _
    %p5863 = scmp.le.s32.totalorder 2, %s9
    // Predicated region
    $region37: #{nbeats_forward.1} parent=5 // pred_check
      %p5864 = pneg %p5863
    $region38: #{nbeats_forward.1} parent=5 // pred_check_branch
      %5866 = sbr.rel (%p5864) target = $region40
    $region39: #{nbeats_forward.1} parent=5 // pred_region
      %s5867 = ssub.s32 %s9, 2
      // Predicated region
      $region41: #{nbeats_forward.1} parent=39 // pred_check
        %p5868 = pneg %p106
      $region42: #{nbeats_forward.1} parent=39 // pred_check_branch
        %5870 = sbr.rel (%p5868) target = $region44
      $region43: #{nbeats_forward.1} parent=39 // pred_region
        %s5871 = smul.u32 32, %s15
        %p5872 = scmp.lt.s32.totalorder %s5871, 63
        %s5873 = scalar_select %p5872, %s5871, 63
        %s5874 = smul.addr %s5873, 8
        %s5875 = scalar_lea.vmem %s3, %s5874
      $region44: #{nbeats_forward.1} parent=39 // pred_fallthru
        _
    $region40: #{nbeats_forward.1} parent=5 // pred_fallthru
      _
  $region6: #{nbeats_forward.1} parent=0 // loop_footer
    %s13 = sadd.s32 1, %s9
  $region7: #{nbeats_forward.1} parent=0 // loop_footer_branch
    %8 = sbr.rel target = $region3
  $region8: #{nbeats_forward.1} parent=0 // loop_exit
    _

</llo_original>
